<compile_context>
chip_gen: v7x
topology: tpu7x:2x2x1
jax: 0.10.0
libtpu: 0.0.40
codegen_flags: <defaults>
</compile_context>

<pallas_src>
import math
import functools

import jax
import jax.numpy as jnp
from jax.experimental import pallas as pl
from jax.experimental.pallas import tpu as pltpu

BF16 = jnp.bfloat16
F32 = jnp.float32
_LN_EPS = 1e-5


# ----------------------------------------------------------------------------
# helpers shared by kernels
# ----------------------------------------------------------------------------

def _cparams(semantics):
    # vmem_limit set explicitly; at production sizes re-derive tiles against
    # 64 MiB physical VMEM on v7x (blocks here are KB-scale).
    return pltpu.CompilerParams(
        dimension_semantics=semantics,
        vmem_limit_bytes=32 * 1024 * 1024,
    )


def _layer_norm(y, gamma, beta):
    mean = jnp.mean(y, axis=-1, keepdims=True)
    var = jnp.mean((y - mean) ** 2, axis=-1, keepdims=True)
    return (y - mean) * jax.lax.rsqrt(var + _LN_EPS) * gamma + beta


def _heads_attention(q2d, k2d, v2d, mask, n_heads, scale):
    """q2d: (S, D), k2d/v2d: (T, D) f32, mask: (S, T) additive or None.

    Heads are taken as static lane slices of the packed D = H*Dh axis, so no
    host-side transpose/reshape of the activation is ever materialized.
    """
    S, D = q2d.shape
    Dh = D // n_heads
    outs = []
    for h in range(n_heads):
        qh = q2d[:, h * Dh:(h + 1) * Dh]
        kh = k2d[:, h * Dh:(h + 1) * Dh]
        vh = v2d[:, h * Dh:(h + 1) * Dh]
        # contract last dims of both (== q @ k^T) without an explicit transpose
        s = jax.lax.dot_general(qh, kh, (((1,), (1,)), ((), ())),
                                preferred_element_type=jnp.float32) * scale
        if mask is not None:
            s = s + mask
        s = s - jnp.max(s, axis=-1, keepdims=True)
        p = jnp.exp(s)
        p = p * pl.reciprocal(jnp.sum(p, axis=-1, keepdims=True), approx=True)
        outs.append(jnp.dot(p, vh, preferred_element_type=jnp.float32))
    return jnp.concatenate(outs, axis=-1)  # (S, D)


# ----------------------------------------------------------------------------
# fused Pallas kernels
# ----------------------------------------------------------------------------

def _self_attn_block_kernel(x_ref, mask_ref, wqkv_ref, bqkv_ref, wo_ref, bo_ref,
                            g_ref, bln_ref, o_ref, *, n_heads, scale):
    """Packed QKV proj -> causal MHA -> out proj -> residual -> LayerNorm."""
    D = x_ref.shape[2]
    x = x_ref[0]                                              # (S, D) f32
    qkv = jnp.dot(x.astype(BF16), wqkv_ref[...],
                  preferred_element_type=jnp.float32) + bqkv_ref[...]   # (S, 3D)
    q2d = qkv[:, 0 * D:1 * D]
    k2d = qkv[:, 1 * D:2 * D]
    v2d = qkv[:, 2 * D:3 * D]
    o = _heads_attention(q2d, k2d, v2d, mask_ref[...], n_heads, scale)
    attn = jnp.dot(o.astype(BF16), wo_ref[...],
                   preferred_element_type=jnp.float32) + bo_ref[...]
    o_ref[0] = _layer_norm(x + attn, g_ref[...], bln_ref[...])


def _cross_attn_block_kernel(x_ref, mem_ref, wq_ref, bq_ref, wkv_ref, bkv_ref,
                             wo_ref, bo_ref, g_ref, bln_ref, o_ref,
                             *, n_heads, scale):
    """Q proj + packed KV proj -> cross MHA -> out proj -> residual -> LN."""
    D = x_ref.shape[2]
    x = x_ref[0]                                              # (S, D) f32
    mem = mem_ref[0]                                          # (T, D) f32
    q2d = jnp.dot(x.astype(BF16), wq_ref[...],
                  preferred_element_type=jnp.float32) + bq_ref[...]
    kv = jnp.dot(mem.astype(BF16), wkv_ref[...],
                 preferred_element_type=jnp.float32) + bkv_ref[...]     # (T, 2D)
    k2d = kv[:, 0 * D:1 * D]
    v2d = kv[:, 1 * D:2 * D]
    # frame_embs_pad_mask is None in the reference forward -> no mask.
    o = _heads_attention(q2d, k2d, v2d, None, n_heads, scale)
    attn = jnp.dot(o.astype(BF16), wo_ref[...],
                   preferred_element_type=jnp.float32) + bo_ref[...]
    o_ref[0] = _layer_norm(x + attn, g_ref[...], bln_ref[...])


def _ff_block_kernel(x_ref, w1_ref, b1_ref, w2_ref, b2_ref, g_ref, bln_ref, o_ref):
    """FF1 + GELU + FF2 + residual + LayerNorm, one row-tile per grid step."""
    x = x_ref[...]                                            # (tm, D) f32
    h = jnp.dot(x.astype(BF16), w1_ref[...],
                preferred_element_type=jnp.float32) + b1_ref[...]
    # TODO(synk): PyTorch nn.GELU defaults to the exact erf form (and
    # nn.TransformerDecoderLayer defaults to ReLU unless CoNeTTE configures
    # GELU); tanh-approximate GELU is used here for robust Mosaic lowering.
    h = jax.nn.gelu(h)
    y = x + jnp.dot(h.astype(BF16), w2_ref[...],
                    preferred_element_type=jnp.float32) + b2_ref[...]
    o_ref[...] = _layer_norm(y, g_ref[...], bln_ref[...])


def _final_cls_kernel(x_ref, g_ref, bln_ref, w_ref, b_ref, o_ref):
    """Final LayerNorm fused into the tiled vocab classifier."""
    xn = _layer_norm(x_ref[...], g_ref[...], bln_ref[...])
    o_ref[...] = jnp.dot(xn.astype(BF16), w_ref[...],
                         preferred_element_type=jnp.float32) + b_ref[...]


# ----------------------------------------------------------------------------
# pallas_call wrappers
# ----------------------------------------------------------------------------

def _row(v):
    return v.reshape(1, -1)


def _pick_tile(n, prefs=(512, 256, 128, 64, 32, 16, 8)):
    for t in prefs:
        if n % t == 0:
            return t
    return n   # block == full dim is always legal


def self_attn_block(x, mask, p, ln_g, ln_b, n_heads):
    B, S, D = x.shape
    scale = 1.0 / math.sqrt(D // n_heads)
    kernel = functools.partial(_self_attn_block_kernel, n_heads=n_heads, scale=scale)
    rep = lambda b: (0, 0)
    return pl.pallas_call(
        kernel,
        out_shape=jax.ShapeDtypeStruct((B, S, D), jnp.float32),
        grid=(B,),
        in_specs=[
            pl.BlockSpec((1, S, D), lambda b: (b, 0, 0)),
            pl.BlockSpec((S, S), rep),
            pl.BlockSpec((D, 3 * D), rep),
            pl.BlockSpec((1, 3 * D), rep),
            pl.BlockSpec((D, D), rep),
            pl.BlockSpec((1, D), rep),
            pl.BlockSpec((1, D), rep),
            pl.BlockSpec((1, D), rep),
        ],
        out_specs=pl.BlockSpec((1, S, D), lambda b: (b, 0, 0)),
        compiler_params=_cparams(("parallel",)),
    )(x, mask, p["wqkv"], _row(p["bqkv"]), p["wo"], _row(p["bo"]),
      _row(ln_g), _row(ln_b))


def cross_attn_block(x, mem, p, ln_g, ln_b, n_heads):
    B, S, D = x.shape
    T = mem.shape[1]
    scale = 1.0 / math.sqrt(D // n_heads)
    kernel = functools.partial(_cross_attn_block_kernel, n_heads=n_heads, scale=scale)
    rep = lambda b: (0, 0)
    return pl.pallas_call(
        kernel,
        out_shape=jax.ShapeDtypeStruct((B, S, D), jnp.float32),
        grid=(B,),
        in_specs=[
            pl.BlockSpec((1, S, D), lambda b: (b, 0, 0)),
            pl.BlockSpec((1, T, D), lambda b: (b, 0, 0)),
            pl.BlockSpec((D, D), rep),
            pl.BlockSpec((1, D), rep),
            pl.BlockSpec((D, 2 * D), rep),
            pl.BlockSpec((1, 2 * D), rep),
            pl.BlockSpec((D, D), rep),
            pl.BlockSpec((1, D), rep),
            pl.BlockSpec((1, D), rep),
            pl.BlockSpec((1, D), rep),
        ],
        out_specs=pl.BlockSpec((1, S, D), lambda b: (b, 0, 0)),
        compiler_params=_cparams(("parallel",)),
    )(x, mem, p["wq"], _row(p["bq"]), p["wkv"], _row(p["bkv"]),
      p["wo"], _row(p["bo"]), _row(ln_g), _row(ln_b))


def ff_block(x, w1, b1, w2, b2, ln_g, ln_b):
    B, S, D = x.shape
    M = B * S
    FF = w1.shape[1]
    tm = _pick_tile(M)
    x2 = x.reshape(M, D)
    rep = lambda i: (0, 0)
    y = pl.pallas_call(
        _ff_block_kernel,
        out_shape=jax.ShapeDtypeStruct((M, D), jnp.float32),
        grid=(M // tm,),
        in_specs=[
            pl.BlockSpec((tm, D), lambda i: (i, 0)),
            pl.BlockSpec((D, FF), rep),
            pl.BlockSpec((1, FF), rep),
            pl.BlockSpec((FF, D), rep),
            pl.BlockSpec((1, D), rep),
            pl.BlockSpec((1, D), rep),
            pl.BlockSpec((1, D), rep),
        ],
        out_specs=pl.BlockSpec((tm, D), lambda i: (i, 0)),
        compiler_params=_cparams(("parallel",)),
    )(x2, w1, _row(b1), w2, _row(b2), _row(ln_g), _row(ln_b))
    return y.reshape(B, S, D)


def final_norm_classifier(x2, ln_g, ln_b, w, b):
    M, D = x2.shape
    N = w.shape[1]
    tm = _pick_tile(M)
    tn = _pick_tile(N, prefs=(512, 256, 128))
    rep = lambda i, j: (0, 0)
    return pl.pallas_call(
        _final_cls_kernel,
        out_shape=jax.ShapeDtypeStruct((M, N), jnp.float32),
        grid=(M // tm, N // tn),
        in_specs=[
            pl.BlockSpec((tm, D), lambda i, j: (i, 0)),
            pl.BlockSpec((1, D), rep),
            pl.BlockSpec((1, D), rep),
            pl.BlockSpec((D, tn), lambda i, j: (0, j)),
            pl.BlockSpec((1, tn), lambda i, j: (0, j)),
        ],
        out_specs=pl.BlockSpec((tm, tn), lambda i, j: (i, j)),
        compiler_params=_cparams(("parallel", "parallel")),
    )(x2, _row(ln_g), _row(ln_b), w, _row(b))


# ----------------------------------------------------------------------------
# forward (glue around the fused kernels)
# ----------------------------------------------------------------------------

def sinusoidal_pos_enc(max_len, d):
    pos = jnp.arange(max_len, dtype=jnp.float32)[:, None]
    div = jnp.exp(jnp.arange(0, d, 2, dtype=jnp.float32) * (-math.log(10000.0) / d))
    pe = jnp.zeros((max_len, d), jnp.float32)
    pe = pe.at[:, 0::2].set(jnp.sin(pos * div))
    pe = pe.at[:, 1::2].set(jnp.cos(pos * div))
    return pe


def export_conette_forward(params, input_ids, encoder_hidden_states,
                           past_key_values=None):
    """Replicates ExportCoNeTTE.forward.

    input_ids:             (B, S) int32
    encoder_hidden_states: (B, T, d_model) f32
    returns dict(last_hidden_state=(B, S, vocab) f32, past_key_values=...)
    """
    B, S = input_ids.shape
    D = params["d_model"]
    H = params["n_heads"]

    # caps_in_sq_mask = triu(ones*(-inf), diagonal=1)
    causal_mask = jnp.where(jnp.triu(jnp.ones((S, S), jnp.bool_), k=1),
                            jnp.float32(-jnp.inf), jnp.float32(0.0))

    # token embedding (scaled) + sinusoidal positional encoding (plain-JAX glue)
    x = params["emb"][input_ids] * jnp.float32(math.sqrt(D))   # (B, S, D)
    x = x + params["pos_enc"][:S][None, :, :]
    mem = encoder_hidden_states.astype(jnp.float32)            # (B, T, D)

    for lp in params["layers"]:
        x = self_attn_block(x, causal_mask, lp["self_attn"],
                            lp["ln1_g"], lp["ln1_b"], H)
        x = cross_attn_block(x, mem, lp["cross_attn"],
                             lp["ln2_g"], lp["ln2_b"], H)
        x = ff_block(x, lp["w_ff1"], lp["b_ff1"], lp["w_ff2"], lp["b_ff2"],
                     lp["ln3_g"], lp["ln3_b"])

    logits = final_norm_classifier(x.reshape(B * S, D), params["lnf_g"],
                                   params["lnf_b"], params["w_cls"], params["b_cls"])
    logits = logits.reshape(B, S, params["vocab_size"])

    # PyTorch wrapper: past_key_values is passed through untouched
    return {"last_hidden_state": logits, "past_key_values": past_key_values}


# ----------------------------------------------------------------------------
# Deterministic parameter init (synthetic; shapes follow a standard CoNeTTE-
# style decoder). Matmul weights stored bf16 (MXU inputs), norms/biases f32.
# TODO(synk): the real CoNeTTE decoder internals/weights are not part of the
# provided module; a standard post-norm transformer decoder is used here.
# ----------------------------------------------------------------------------

def init_params(key, *, d_model, n_heads, d_ff, n_layers, vocab_size, max_len):
    def nrm(k, shape, scale=0.02):
        return jax.random.normal(k, shape, jnp.float32) * scale

    keys = jax.random.split(key, 2 + n_layers)
    params = {
        "d_model": d_model,
        "n_heads": n_heads,
        "vocab_size": vocab_size,
        "emb": nrm(keys[0], (vocab_size, d_model)),
        "pos_enc": sinusoidal_pos_enc(max_len, d_model),
        "lnf_g": jnp.ones((d_model,), F32),
        "lnf_b": jnp.zeros((d_model,), F32),
        "w_cls": nrm(keys[1], (d_model, vocab_size)).astype(BF16),
        "b_cls": jnp.zeros((vocab_size,), F32),
        "layers": [],
    }

    def self_attn_p(k):
        ks = jax.random.split(k, 4)
        wqkv = jnp.concatenate([nrm(ks[0], (d_model, d_model)),
                                nrm(ks[1], (d_model, d_model)),
                                nrm(ks[2], (d_model, d_model))], axis=1)
        return {
            "wqkv": wqkv.astype(BF16),
            "bqkv": jnp.zeros((3 * d_model,), F32),
            "wo": nrm(ks[3], (d_model, d_model)).astype(BF16),
            "bo": jnp.zeros((d_model,), F32),
        }

    def cross_attn_p(k):
        ks = jax.random.split(k, 4)
        wkv = jnp.concatenate([nrm(ks[1], (d_model, d_model)),
                               nrm(ks[2], (d_model, d_model))], axis=1)
        return {
            "wq": nrm(ks[0], (d_model, d_model)).astype(BF16),
            "bq": jnp.zeros((d_model,), F32),
            "wkv": wkv.astype(BF16),
            "bkv": jnp.zeros((2 * d_model,), F32),
            "wo": nrm(ks[3], (d_model, d_model)).astype(BF16),
            "bo": jnp.zeros((d_model,), F32),
        }

    for li in range(n_layers):
        ks = jax.random.split(keys[2 + li], 4)
        params["layers"].append({
            "self_attn": self_attn_p(ks[0]),
            "cross_attn": cross_attn_p(ks[1]),
            "w_ff1": nrm(ks[2], (d_model, d_ff)).astype(BF16),
            "b_ff1": jnp.zeros((d_ff,), F32),
            "w_ff2": nrm(ks[3], (d_ff, d_model)).astype(BF16),
            "b_ff2": jnp.zeros((d_model,), F32),
            "ln1_g": jnp.ones((d_model,), F32), "ln1_b": jnp.zeros((d_model,), F32),
            "ln2_g": jnp.ones((d_model,), F32), "ln2_b": jnp.zeros((d_model,), F32),
            "ln3_g": jnp.ones((d_model,), F32), "ln3_b": jnp.zeros((d_model,), F32),
        })
    return params


# ----------------------------------------------------------------------------
# Main
# ----------------------------------------------------------------------------

if __name__ == "__main__":
    B, S, T = 2, 8, 16          # batch, decoder seq len, encoder frames
    D, H, FF, L, V = 32, 4, 64, 2, 64

    root = jax.random.PRNGKey(0)
    k_params, k_ids, k_enc = jax.random.split(root, 3)

    params = init_params(k_params, d_model=D, n_heads=H, d_ff=FF,
                         n_layers=L, vocab_size=V, max_len=64)

    input_ids = jax.random.randint(k_ids, (B, S), 0, V, dtype=jnp.int32)
    encoder_hidden_states = jax.random.normal(k_enc, (B, T, D), jnp.float32)

    # single jitted dispatch around the fused Pallas kernels
    fwd = jax.jit(functools.partial(export_conette_forward, params))
    out = fwd(input_ids, encoder_hidden_states)
    logits = jax.block_until_ready(out["last_hidden_state"])

    assert logits.shape == (B, S, V), logits.shape
    assert out["past_key_values"] is None
    assert bool(jnp.all(jnp.isfinite(logits)))
    print("KERNEL_OK")
</pallas_src>

<mosaic_0001>
module attributes {stable_mosaic.version = 11 : i64} {
  func.func @_final_cls_kernel(%arg0: i32, %arg1: i32, %arg2: memref<16x32xf32, #tpu.memory_space<vmem>>, %arg3: memref<1x32xf32, #tpu.memory_space<vmem>>, %arg4: memref<1x32xf32, #tpu.memory_space<vmem>>, %arg5: memref<32x64xbf16, #tpu.memory_space<vmem>>, %arg6: memref<1x64xf32, #tpu.memory_space<vmem>>, %arg7: memref<16x64xf32, #tpu.memory_space<vmem>>) attributes {dimension_semantics = [#tpu.dimension_semantics<parallel>, #tpu.dimension_semantics<parallel>], iteration_bounds = array<i64: 1, 1>, scalar_prefetch = 0 : i64, scratch_operands = 0 : i64, tpu.core_type = #tpu.core_type<tc>, window_params = [{transform_indices = @transform_0, window_bounds = array<i64: 16, 32>}, {pipeline_mode = #tpu.pipeline_mode<synchronous>, transform_indices = @transform_1, window_bounds = array<i64: 1, 32>}, {pipeline_mode = #tpu.pipeline_mode<synchronous>, transform_indices = @transform_2, window_bounds = array<i64: 1, 32>}, {transform_indices = @transform_3, window_bounds = array<i64: 32, 64>}, {transform_indices = @transform_4, window_bounds = array<i64: 1, 64>}, {transform_indices = @transform_5, window_bounds = array<i64: 16, 64>}]} {
    %c0 = arith.constant 0 : index
    %c0_0 = arith.constant 0 : index
    %0 = vector.load %arg2[%c0, %c0_0] : memref<16x32xf32, #tpu.memory_space<vmem>>, vector<16x32xf32>
    %c0_1 = arith.constant 0 : index
    %c0_2 = arith.constant 0 : index
    %1 = vector.load %arg3[%c0_1, %c0_2] : memref<1x32xf32, #tpu.memory_space<vmem>>, vector<1x32xf32>
    %c0_3 = arith.constant 0 : index
    %c0_4 = arith.constant 0 : index
    %2 = vector.load %arg4[%c0_3, %c0_4] : memref<1x32xf32, #tpu.memory_space<vmem>>, vector<1x32xf32>
    %cst = arith.constant dense<0.000000e+00> : vector<16xf32>
    %3 = vector.multi_reduction <add>, %0, %cst [1] : vector<16x32xf32> to vector<16xf32>
    %4 = vector.shape_cast %3 : vector<16xf32> to vector<16x1xf32>
    %cst_5 = arith.constant 3.200000e+01 : f32
    %5 = vector.broadcast %cst_5 : f32 to vector<16x1xf32>
    %6 = arith.divf %4, %5 : vector<16x1xf32>
    %7 = vector.broadcast %6 : vector<16x1xf32> to vector<16x32xf32>
    %8 = arith.subf %0, %7 : vector<16x32xf32>
    %9 = arith.mulf %8, %8 : vector<16x32xf32>
    %cst_6 = arith.constant dense<0.000000e+00> : vector<16xf32>
    %10 = vector.multi_reduction <add>, %9, %cst_6 [1] : vector<16x32xf32> to vector<16xf32>
    %11 = vector.shape_cast %10 : vector<16xf32> to vector<16x1xf32>
    %cst_7 = arith.constant 3.200000e+01 : f32
    %12 = vector.broadcast %cst_7 : f32 to vector<16x1xf32>
    %13 = arith.divf %11, %12 : vector<16x1xf32>
    %14 = vector.broadcast %6 : vector<16x1xf32> to vector<16x32xf32>
    %15 = arith.subf %0, %14 : vector<16x32xf32>
    %cst_8 = arith.constant 9.99999974E-6 : f32
    %16 = vector.broadcast %cst_8 : f32 to vector<16x1xf32>
    %17 = arith.addf %13, %16 : vector<16x1xf32>
    %18 = math.rsqrt %17 : vector<16x1xf32>
    %19 = vector.broadcast %18 : vector<16x1xf32> to vector<16x32xf32>
    %20 = arith.mulf %15, %19 : vector<16x32xf32>
    %21 = vector.broadcast %1 : vector<1x32xf32> to vector<16x32xf32>
    %22 = arith.mulf %20, %21 : vector<16x32xf32>
    %23 = vector.broadcast %2 : vector<1x32xf32> to vector<16x32xf32>
    %24 = arith.addf %22, %23 : vector<16x32xf32>
    %25 = arith.truncf %24 : vector<16x32xf32> to vector<16x32xbf16>
    %c0_9 = arith.constant 0 : index
    %c0_10 = arith.constant 0 : index
    %26 = vector.load %arg5[%c0_9, %c0_10] : memref<32x64xbf16, #tpu.memory_space<vmem>>, vector<32x64xbf16>
    %cst_11 = arith.constant dense<0.000000e+00> : vector<16x64xf32>
    %27 = tpu.matmul %25, %26, %cst_11 {dimension_numbers = #tpu.dot_dimension_numbers<[1], [0], [0], [1], [0, 0, 1, 1], [], []>} : vector<16x32xbf16>, vector<32x64xbf16>, vector<16x64xf32> -> vector<16x64xf32>
    %c0_12 = arith.constant 0 : index
    %c0_13 = arith.constant 0 : index
    %28 = vector.load %arg6[%c0_12, %c0_13] : memref<1x64xf32, #tpu.memory_space<vmem>>, vector<1x64xf32>
    %29 = vector.broadcast %28 : vector<1x64xf32> to vector<16x64xf32>
    %30 = arith.addf %27, %29 : vector<16x64xf32>
    %c0_14 = arith.constant 0 : index
    %c0_15 = arith.constant 0 : index
    %31 = vector.load %arg7[%c0_14, %c0_15] : memref<16x64xf32, #tpu.memory_space<vmem>>, vector<16x64xf32>
    tpu.vector_store %arg7[%c0_14, %c0_15], %30 {strides = array<i32>} : memref<16x64xf32, #tpu.memory_space<vmem>>, vector<16x64xf32>,
    return
  }
  func.func @transform_0(%arg0: i32, %arg1: i32) -> (i32, i32) {
    %c0_i32 = arith.constant 0 : i32
    %c0_i32_0 = arith.constant 0 : i32
    return %arg0, %c0_i32 : i32, i32
  }
  func.func @transform_1(%arg0: i32, %arg1: i32) -> (i32, i32) {
    %c0_i32 = arith.constant 0 : i32
    %c0_i32_0 = arith.constant 0 : i32
    %c0_i32_1 = arith.constant 0 : i32
    return %c0_i32, %c0_i32_0 : i32, i32
  }
  func.func @transform_2(%arg0: i32, %arg1: i32) -> (i32, i32) {
    %c0_i32 = arith.constant 0 : i32
    %c0_i32_0 = arith.constant 0 : i32
    %c0_i32_1 = arith.constant 0 : i32
    return %c0_i32, %c0_i32_0 : i32, i32
  }
  func.func @transform_3(%arg0: i32, %arg1: i32) -> (i32, i32) {
    %c0_i32 = arith.constant 0 : i32
    %c0_i32_0 = arith.constant 0 : i32
    return %c0_i32, %arg1 : i32, i32
  }
  func.func @transform_4(%arg0: i32, %arg1: i32) -> (i32, i32) {
    %c0_i32 = arith.constant 0 : i32
    %c0_i32_0 = arith.constant 0 : i32
    return %c0_i32, %arg1 : i32, i32
  }
  func.func @transform_5(%arg0: i32, %arg1: i32) -> (i32, i32) {
    %c0_i32 = arith.constant 0 : i32
    return %arg0, %arg1 : i32, i32
  }
}

module attributes {stable_mosaic.version = 11 : i64} {
  func.func @_cross_attn_block_kernel(%arg0: i32, %arg1: memref<1x8x32xf32, #tpu.memory_space<vmem>>, %arg2: memref<1x16x32xf32, #tpu.memory_space<vmem>>, %arg3: memref<32x32xbf16, #tpu.memory_space<vmem>>, %arg4: memref<1x32xf32, #tpu.memory_space<vmem>>, %arg5: memref<32x64xbf16, #tpu.memory_space<vmem>>, %arg6: memref<1x64xf32, #tpu.memory_space<vmem>>, %arg7: memref<32x32xbf16, #tpu.memory_space<vmem>>, %arg8: memref<1x32xf32, #tpu.memory_space<vmem>>, %arg9: memref<1x32xf32, #tpu.memory_space<vmem>>, %arg10: memref<1x32xf32, #tpu.memory_space<vmem>>, %arg11: memref<1x8x32xf32, #tpu.memory_space<vmem>>) attributes {dimension_semantics = [#tpu.dimension_semantics<parallel>], iteration_bounds = array<i64: 2>, scalar_prefetch = 0 : i64, scratch_operands = 0 : i64, tpu.core_type = #tpu.core_type<tc>, window_params = [{transform_indices = @transform_0, window_bounds = array<i64: 1, 8, 32>}, {transform_indices = @transform_1, window_bounds = array<i64: 1, 16, 32>}, {pipeline_mode = #tpu.pipeline_mode<synchronous>, transform_indices = @transform_2, window_bounds = array<i64: 32, 32>}, {pipeline_mode = #tpu.pipeline_mode<synchronous>, transform_indices = @transform_3, window_bounds = array<i64: 1, 32>}, {pipeline_mode = #tpu.pipeline_mode<synchronous>, transform_indices = @transform_4, window_bounds = array<i64: 32, 64>}, {pipeline_mode = #tpu.pipeline_mode<synchronous>, transform_indices = @transform_5, window_bounds = array<i64: 1, 64>}, {pipeline_mode = #tpu.pipeline_mode<synchronous>, transform_indices = @transform_6, window_bounds = array<i64: 32, 32>}, {pipeline_mode = #tpu.pipeline_mode<synchronous>, transform_indices = @transform_7, window_bounds = array<i64: 1, 32>}, {pipeline_mode = #tpu.pipeline_mode<synchronous>, transform_indices = @transform_8, window_bounds = array<i64: 1, 32>}, {pipeline_mode = #tpu.pipeline_mode<synchronous>, transform_indices = @transform_9, window_bounds = array<i64: 1, 32>}, {transform_indices = @transform_10, window_bounds = array<i64: 1, 8, 32>}]} {
    %c0 = arith.constant 0 : index
    %c0_0 = arith.constant 0 : index
    %c0_1 = arith.constant 0 : index
    %0 = vector.load %arg1[%c0, %c0_0, %c0_1] : memref<1x8x32xf32, #tpu.memory_space<vmem>>, vector<1x8x32xf32>
    %1 = vector.shape_cast %0 : vector<1x8x32xf32> to vector<8x32xf32>
    %c0_2 = arith.constant 0 : index
    %c0_3 = arith.constant 0 : index
    %c0_4 = arith.constant 0 : index
    %2 = vector.load %arg2[%c0_2, %c0_3, %c0_4] : memref<1x16x32xf32, #tpu.memory_space<vmem>>, vector<1x16x32xf32>
    %3 = vector.shape_cast %2 : vector<1x16x32xf32> to vector<16x32xf32>
    %4 = arith.truncf %1 : vector<8x32xf32> to vector<8x32xbf16>
    %c0_5 = arith.constant 0 : index
    %c0_6 = arith.constant 0 : index
    %5 = vector.load %arg3[%c0_5, %c0_6] : memref<32x32xbf16, #tpu.memory_space<vmem>>, vector<32x32xbf16>
    %cst = arith.constant dense<0.000000e+00> : vector<8x32xf32>
    %6 = tpu.matmul %4, %5, %cst {dimension_numbers = #tpu.dot_dimension_numbers<[1], [0], [0], [1], [0, 0, 1, 1], [], []>} : vector<8x32xbf16>, vector<32x32xbf16>, vector<8x32xf32> -> vector<8x32xf32>
    %c0_7 = arith.constant 0 : index
    %c0_8 = arith.constant 0 : index
    %7 = vector.load %arg4[%c0_7, %c0_8] : memref<1x32xf32, #tpu.memory_space<vmem>>, vector<1x32xf32>
    %8 = vector.broadcast %7 : vector<1x32xf32> to vector<8x32xf32>
    %9 = arith.addf %6, %8 : vector<8x32xf32>
    %10 = arith.truncf %3 : vector<16x32xf32> to vector<16x32xbf16>
    %c0_9 = arith.constant 0 : index
    %c0_10 = arith.constant 0 : index
    %11 = vector.load %arg5[%c0_9, %c0_10] : memref<32x64xbf16, #tpu.memory_space<vmem>>, vector<32x64xbf16>
    %cst_11 = arith.constant dense<0.000000e+00> : vector<16x64xf32>
    %12 = tpu.matmul %10, %11, %cst_11 {dimension_numbers = #tpu.dot_dimension_numbers<[1], [0], [0], [1], [0, 0, 1, 1], [], []>} : vector<16x32xbf16>, vector<32x64xbf16>, vector<16x64xf32> -> vector<16x64xf32>
    %c0_12 = arith.constant 0 : index
    %c0_13 = arith.constant 0 : index
    %13 = vector.load %arg6[%c0_12, %c0_13] : memref<1x64xf32, #tpu.memory_space<vmem>>, vector<1x64xf32>
    %14 = vector.broadcast %13 : vector<1x64xf32> to vector<16x64xf32>
    %15 = arith.addf %12, %14 : vector<16x64xf32>
    %16 = vector.extract_strided_slice %15 {offsets = [0, 0], sizes = [16, 32], strides = [1, 1]} : vector<16x64xf32> to vector<16x32xf32>
    %17 = vector.extract_strided_slice %15 {offsets = [0, 32], sizes = [16, 32], strides = [1, 1]} : vector<16x64xf32> to vector<16x32xf32>
    %18 = vector.extract_strided_slice %9 {offsets = [0, 0], sizes = [8, 8], strides = [1, 1]} : vector<8x32xf32> to vector<8x8xf32>
    %19 = vector.extract_strided_slice %16 {offsets = [0, 0], sizes = [16, 8], strides = [1, 1]} : vector<16x32xf32> to vector<16x8xf32>
    %20 = vector.extract_strided_slice %17 {offsets = [0, 0], sizes = [16, 8], strides = [1, 1]} : vector<16x32xf32> to vector<16x8xf32>
    %cst_14 = arith.constant dense<0.000000e+00> : vector<8x16xf32>
    %21 = tpu.matmul %18, %19, %cst_14 {dimension_numbers = #tpu.dot_dimension_numbers<[1], [1], [0], [0], [0, 0, 1, 0], [], []>} : vector<8x8xf32>, vector<16x8xf32>, vector<8x16xf32> -> vector<8x16xf32>
    %cst_15 = arith.constant 0.353553385 : f32
    %22 = vector.broadcast %cst_15 : f32 to vector<8x16xf32>
    %23 = arith.mulf %21, %22 : vector<8x16xf32>
    %cst_16 = arith.constant dense<0xFF800000> : vector<8xf32>
    %24 = vector.multi_reduction <maximumf>, %23, %cst_16 [1] : vector<8x16xf32> to vector<8xf32>
    %25 = vector.shape_cast %24 : vector<8xf32> to vector<8x1xf32>
    %26 = vector.broadcast %25 : vector<8x1xf32> to vector<8x16xf32>
    %27 = arith.subf %23, %26 : vector<8x16xf32>
    %28 = math.exp %27 : vector<8x16xf32>
    %cst_17 = arith.constant dense<0.000000e+00> : vector<8xf32>
    %29 = vector.multi_reduction <add>, %28, %cst_17 [1] : vector<8x16xf32> to vector<8xf32>
    %30 = vector.shape_cast %29 : vector<8xf32> to vector<8x1xf32>
    %31 = tpu.reciprocal %30 {approx = true} : vector<8x1xf32> -> vector<8x1xf32>
    %32 = vector.broadcast %31 : vector<8x1xf32> to vector<8x16xf32>
    %33 = arith.mulf %28, %32 : vector<8x16xf32>
    %cst_18 = arith.constant dense<0.000000e+00> : vector<8x8xf32>
    %34 = tpu.matmul %33, %20, %cst_18 {dimension_numbers = #tpu.dot_dimension_numbers<[1], [0], [0], [1], [0, 0, 1, 1], [], []>} : vector<8x16xf32>, vector<16x8xf32>, vector<8x8xf32> -> vector<8x8xf32>
    %35 = vector.extract_strided_slice %9 {offsets = [0, 8], sizes = [8, 8], strides = [1, 1]} : vector<8x32xf32> to vector<8x8xf32>
    %36 = vector.extract_strided_slice %16 {offsets = [0, 8], sizes = [16, 8], strides = [1, 1]} : vector<16x32xf32> to vector<16x8xf32>
    %37 = vector.extract_strided_slice %17 {offsets = [0, 8], sizes = [16, 8], strides = [1, 1]} : vector<16x32xf32> to vector<16x8xf32>
    %cst_19 = arith.constant dense<0.000000e+00> : vector<8x16xf32>
    %38 = tpu.matmul %35, %36, %cst_19 {dimension_numbers = #tpu.dot_dimension_numbers<[1], [1], [0], [0], [0, 0, 1, 0], [], []>} : vector<8x8xf32>, vector<16x8xf32>, vector<8x16xf32> -> vector<8x16xf32>
    %cst_20 = arith.constant 0.353553385 : f32
    %39 = vector.broadcast %cst_20 : f32 to vector<8x16xf32>
    %40 = arith.mulf %38, %39 : vector<8x16xf32>
    %cst_21 = arith.constant dense<0xFF800000> : vector<8xf32>
    %41 = vector.multi_reduction <maximumf>, %40, %cst_21 [1] : vector<8x16xf32> to vector<8xf32>
    %42 = vector.shape_cast %41 : vector<8xf32> to vector<8x1xf32>
    %43 = vector.broadcast %42 : vector<8x1xf32> to vector<8x16xf32>
    %44 = arith.subf %40, %43 : vector<8x16xf32>
    %45 = math.exp %44 : vector<8x16xf32>
    %cst_22 = arith.constant dense<0.000000e+00> : vector<8xf32>
    %46 = vector.multi_reduction <add>, %45, %cst_22 [1] : vector<8x16xf32> to vector<8xf32>
    %47 = vector.shape_cast %46 : vector<8xf32> to vector<8x1xf32>
    %48 = tpu.reciprocal %47 {approx = true} : vector<8x1xf32> -> vector<8x1xf32>
    %49 = vector.broadcast %48 : vector<8x1xf32> to vector<8x16xf32>
    %50 = arith.mulf %45, %49 : vector<8x16xf32>
    %cst_23 = arith.constant dense<0.000000e+00> : vector<8x8xf32>
    %51 = tpu.matmul %50, %37, %cst_23 {dimension_numbers = #tpu.dot_dimension_numbers<[1], [0], [0], [1], [0, 0, 1, 1], [], []>} : vector<8x16xf32>, vector<16x8xf32>, vector<8x8xf32> -> vector<8x8xf32>
    %52 = vector.extract_strided_slice %9 {offsets = [0, 16], sizes = [8, 8], strides = [1, 1]} : vector<8x32xf32> to vector<8x8xf32>
    %53 = vector.extract_strided_slice %16 {offsets = [0, 16], sizes = [16, 8], strides = [1, 1]} : vector<16x32xf32> to vector<16x8xf32>
    %54 = vector.extract_strided_slice %17 {offsets = [0, 16], sizes = [16, 8], strides = [1, 1]} : vector<16x32xf32> to vector<16x8xf32>
    %cst_24 = arith.constant dense<0.000000e+00> : vector<8x16xf32>
    %55 = tpu.matmul %52, %53, %cst_24 {dimension_numbers = #tpu.dot_dimension_numbers<[1], [1], [0], [0], [0, 0, 1, 0], [], []>} : vector<8x8xf32>, vector<16x8xf32>, vector<8x16xf32> -> vector<8x16xf32>
    %cst_25 = arith.constant 0.353553385 : f32
    %56 = vector.broadcast %cst_25 : f32 to vector<8x16xf32>
    %57 = arith.mulf %55, %56 : vector<8x16xf32>
    %cst_26 = arith.constant dense<0xFF800000> : vector<8xf32>
    %58 = vector.multi_reduction <maximumf>, %57, %cst_26 [1] : vector<8x16xf32> to vector<8xf32>
    %59 = vector.shape_cast %58 : vector<8xf32> to vector<8x1xf32>
    %60 = vector.broadcast %59 : vector<8x1xf32> to vector<8x16xf32>
    %61 = arith.subf %57, %60 : vector<8x16xf32>
    %62 = math.exp %61 : vector<8x16xf32>
    %cst_27 = arith.constant dense<0.000000e+00> : vector<8xf32>
    %63 = vector.multi_reduction <add>, %62, %cst_27 [1] : vector<8x16xf32> to vector<8xf32>
    %64 = vector.shape_cast %63 : vector<8xf32> to vector<8x1xf32>
    %65 = tpu.reciprocal %64 {approx = true} : vector<8x1xf32> -> vector<8x1xf32>
    %66 = vector.broadcast %65 : vector<8x1xf32> to vector<8x16xf32>
    %67 = arith.mulf %62, %66 : vector<8x16xf32>
    %cst_28 = arith.constant dense<0.000000e+00> : vector<8x8xf32>
    %68 = tpu.matmul %67, %54, %cst_28 {dimension_numbers = #tpu.dot_dimension_numbers<[1], [0], [0], [1], [0, 0, 1, 1], [], []>} : vector<8x16xf32>, vector<16x8xf32>, vector<8x8xf32> -> vector<8x8xf32>
    %69 = vector.extract_strided_slice %9 {offsets = [0, 24], sizes = [8, 8], strides = [1, 1]} : vector<8x32xf32> to vector<8x8xf32>
    %70 = vector.extract_strided_slice %16 {offsets = [0, 24], sizes = [16, 8], strides = [1, 1]} : vector<16x32xf32> to vector<16x8xf32>
    %71 = vector.extract_strided_slice %17 {offsets = [0, 24], sizes = [16, 8], strides = [1, 1]} : vector<16x32xf32> to vector<16x8xf32>
    %cst_29 = arith.constant dense<0.000000e+00> : vector<8x16xf32>
    %72 = tpu.matmul %69, %70, %cst_29 {dimension_numbers = #tpu.dot_dimension_numbers<[1], [1], [0], [0], [0, 0, 1, 0], [], []>} : vector<8x8xf32>, vector<16x8xf32>, vector<8x16xf32> -> vector<8x16xf32>
    %cst_30 = arith.constant 0.353553385 : f32
    %73 = vector.broadcast %cst_30 : f32 to vector<8x16xf32>
    %74 = arith.mulf %72, %73 : vector<8x16xf32>
    %cst_31 = arith.constant dense<0xFF800000> : vector<8xf32>
    %75 = vector.multi_reduction <maximumf>, %74, %cst_31 [1] : vector<8x16xf32> to vector<8xf32>
    %76 = vector.shape_cast %75 : vector<8xf32> to vector<8x1xf32>
    %77 = vector.broadcast %76 : vector<8x1xf32> to vector<8x16xf32>
    %78 = arith.subf %74, %77 : vector<8x16xf32>
    %79 = math.exp %78 : vector<8x16xf32>
    %cst_32 = arith.constant dense<0.000000e+00> : vector<8xf32>
    %80 = vector.multi_reduction <add>, %79, %cst_32 [1] : vector<8x16xf32> to vector<8xf32>
    %81 = vector.shape_cast %80 : vector<8xf32> to vector<8x1xf32>
    %82 = tpu.reciprocal %81 {approx = true} : vector<8x1xf32> -> vector<8x1xf32>
    %83 = vector.broadcast %82 : vector<8x1xf32> to vector<8x16xf32>
    %84 = arith.mulf %79, %83 : vector<8x16xf32>
    %cst_33 = arith.constant dense<0.000000e+00> : vector<8x8xf32>
    %85 = tpu.matmul %84, %71, %cst_33 {dimension_numbers = #tpu.dot_dimension_numbers<[1], [0], [0], [1], [0, 0, 1, 1], [], []>} : vector<8x16xf32>, vector<16x8xf32>, vector<8x8xf32> -> vector<8x8xf32>
    %86 = tpu.concatenate %34, %51, %68, %85 in 1 : vector<8x8xf32>, vector<8x8xf32>, vector<8x8xf32>, vector<8x8xf32> -> vector<8x32xf32>
    %87 = arith.truncf %86 : vector<8x32xf32> to vector<8x32xbf16>
    %c0_34 = arith.constant 0 : index
    %c0_35 = arith.constant 0 : index
    %88 = vector.load %arg7[%c0_34, %c0_35] : memref<32x32xbf16, #tpu.memory_space<vmem>>, vector<32x32xbf16>
    %cst_36 = arith.constant dense<0.000000e+00> : vector<8x32xf32>
    %89 = tpu.matmul %87, %88, %cst_36 {dimension_numbers = #tpu.dot_dimension_numbers<[1], [0], [0], [1], [0, 0, 1, 1], [], []>} : vector<8x32xbf16>, vector<32x32xbf16>, vector<8x32xf32> -> vector<8x32xf32>
    %c0_37 = arith.constant 0 : index
    %c0_38 = arith.constant 0 : index
    %90 = vector.load %arg8[%c0_37, %c0_38] : memref<1x32xf32, #tpu.memory_space<vmem>>, vector<1x32xf32>
    %91 = vector.broadcast %90 : vector<1x32xf32> to vector<8x32xf32>
    %92 = arith.addf %89, %91 : vector<8x32xf32>
    %93 = arith.addf %1, %92 : vector<8x32xf32>
    %c0_39 = arith.constant 0 : index
    %c0_40 = arith.constant 0 : index
    %94 = vector.load %arg9[%c0_39, %c0_40] : memref<1x32xf32, #tpu.memory_space<vmem>>, vector<1x32xf32>
    %c0_41 = arith.constant 0 : index
    %c0_42 = arith.constant 0 : index
    %95 = vector.load %arg10[%c0_41, %c0_42] : memref<1x32xf32, #tpu.memory_space<vmem>>, vector<1x32xf32>
    %cst_43 = arith.constant dense<0.000000e+00> : vector<8xf32>
    %96 = vector.multi_reduction <add>, %93, %cst_43 [1] : vector<8x32xf32> to vector<8xf32>
    %97 = vector.shape_cast %96 : vector<8xf32> to vector<8x1xf32>
    %cst_44 = arith.constant 3.200000e+01 : f32
    %98 = vector.broadcast %cst_44 : f32 to vector<8x1xf32>
    %99 = arith.divf %97, %98 : vector<8x1xf32>
    %100 = vector.broadcast %99 : vector<8x1xf32> to vector<8x32xf32>
    %101 = arith.subf %93, %100 : vector<8x32xf32>
    %102 = arith.mulf %101, %101 : vector<8x32xf32>
    %cst_45 = arith.constant dense<0.000000e+00> : vector<8xf32>
    %103 = vector.multi_reduction <add>, %102, %cst_45 [1] : vector<8x32xf32> to vector<8xf32>
    %104 = vector.shape_cast %103 : vector<8xf32> to vector<8x1xf32>
    %cst_46 = arith.constant 3.200000e+01 : f32
    %105 = vector.broadcast %cst_46 : f32 to vector<8x1xf32>
    %106 = arith.divf %104, %105 : vector<8x1xf32>
    %107 = vector.broadcast %99 : vector<8x1xf32> to vector<8x32xf32>
    %108 = arith.subf %93, %107 : vector<8x32xf32>
    %cst_47 = arith.constant 9.99999974E-6 : f32
    %109 = vector.broadcast %cst_47 : f32 to vector<8x1xf32>
    %110 = arith.addf %106, %109 : vector<8x1xf32>
    %111 = math.rsqrt %110 : vector<8x1xf32>
    %112 = vector.broadcast %111 : vector<8x1xf32> to vector<8x32xf32>
    %113 = arith.mulf %108, %112 : vector<8x32xf32>
    %114 = vector.broadcast %94 : vector<1x32xf32> to vector<8x32xf32>
    %115 = arith.mulf %113, %114 : vector<8x32xf32>
    %116 = vector.broadcast %95 : vector<1x32xf32> to vector<8x32xf32>
    %117 = arith.addf %115, %116 : vector<8x32xf32>
    %c0_48 = arith.constant 0 : index
    %c0_49 = arith.constant 0 : index
    %c0_50 = arith.constant 0 : index
    %118 = vector.load %arg11[%c0_48, %c0_49, %c0_50] : memref<1x8x32xf32, #tpu.memory_space<vmem>>, vector<1x8x32xf32>
    %119 = vector.shape_cast %118 : vector<1x8x32xf32> to vector<8x32xf32>
    %120 = vector.shape_cast %117 : vector<8x32xf32> to vector<1x8x32xf32>
    tpu.vector_store %arg11[%c0_48, %c0_49, %c0_50], %120 {strides = array<i32>} : memref<1x8x32xf32, #tpu.memory_space<vmem>>, vector<1x8x32xf32>,
    return
  }
  func.func @transform_0(%arg0: i32) -> (i32, i32, i32) {
    %c0_i32 = arith.constant 0 : i32
    %c0_i32_0 = arith.constant 0 : i32
    %c0_i32_1 = arith.constant 0 : i32
    return %arg0, %c0_i32, %c0_i32_0 : i32, i32, i32
  }
  func.func @transform_1(%arg0: i32) -> (i32, i32, i32) {
    %c0_i32 = arith.constant 0 : i32
    %c0_i32_0 = arith.constant 0 : i32
    %c0_i32_1 = arith.constant 0 : i32
    return %arg0, %c0_i32, %c0_i32_0 : i32, i32, i32
  }
  func.func @transform_2(%arg0: i32) -> (i32, i32) {
    %c0_i32 = arith.constant 0 : i32
    %c0_i32_0 = arith.constant 0 : i32
    %c0_i32_1 = arith.constant 0 : i32
    return %c0_i32, %c0_i32_0 : i32, i32
  }
  func.func @transform_3(%arg0: i32) -> (i32, i32) {
    %c0_i32 = arith.constant 0 : i32
    %c0_i32_0 = arith.constant 0 : i32
    %c0_i32_1 = arith.constant 0 : i32
    return %c0_i32, %c0_i32_0 : i32, i32
  }
  func.func @transform_4(%arg0: i32) -> (i32, i32) {
    %c0_i32 = arith.constant 0 : i32
    %c0_i32_0 = arith.constant 0 : i32
    %c0_i32_1 = arith.constant 0 : i32
    return %c0_i32, %c0_i32_0 : i32, i32
  }
  func.func @transform_5(%arg0: i32) -> (i32, i32) {
    %c0_i32 = arith.constant 0 : i32
    %c0_i32_0 = arith.constant 0 : i32
    %c0_i32_1 = arith.constant 0 : i32
    return %c0_i32, %c0_i32_0 : i32, i32
  }
  func.func @transform_6(%arg0: i32) -> (i32, i32) {
    %c0_i32 = arith.constant 0 : i32
    %c0_i32_0 = arith.constant 0 : i32
    %c0_i32_1 = arith.constant 0 : i32
    return %c0_i32, %c0_i32_0 : i32, i32
  }
  func.func @transform_7(%arg0: i32) -> (i32, i32) {
    %c0_i32 = arith.constant 0 : i32
    %c0_i32_0 = arith.constant 0 : i32
    %c0_i32_1 = arith.constant 0 : i32
    return %c0_i32, %c0_i32_0 : i32, i32
  }
  func.func @transform_8(%arg0: i32) -> (i32, i32) {
    %c0_i32 = arith.constant 0 : i32
    %c0_i32_0 = arith.constant 0 : i32
    %c0_i32_1 = arith.constant 0 : i32
    return %c0_i32, %c0_i32_0 : i32, i32
  }
  func.func @transform_9(%arg0: i32) -> (i32, i32) {
    %c0_i32 = arith.constant 0 : i32
    %c0_i32_0 = arith.constant 0 : i32
    %c0_i32_1 = arith.constant 0 : i32
    return %c0_i32, %c0_i32_0 : i32, i32
  }
  func.func @transform_10(%arg0: i32) -> (i32, i32, i32) {
    %c0_i32 = arith.constant 0 : i32
    %c0_i32_0 = arith.constant 0 : i32
    %c0_i32_1 = arith.constant 0 : i32
    return %arg0, %c0_i32, %c0_i32_0 : i32, i32, i32
  }
}

module attributes {stable_mosaic.version = 11 : i64} {
  func.func @_self_attn_block_kernel(%arg0: i32, %arg1: memref<1x8x32xf32, #tpu.memory_space<vmem>>, %arg2: memref<8x8xf32, #tpu.memory_space<vmem>>, %arg3: memref<32x96xbf16, #tpu.memory_space<vmem>>, %arg4: memref<1x96xf32, #tpu.memory_space<vmem>>, %arg5: memref<32x32xbf16, #tpu.memory_space<vmem>>, %arg6: memref<1x32xf32, #tpu.memory_space<vmem>>, %arg7: memref<1x32xf32, #tpu.memory_space<vmem>>, %arg8: memref<1x32xf32, #tpu.memory_space<vmem>>, %arg9: memref<1x8x32xf32, #tpu.memory_space<vmem>>) attributes {dimension_semantics = [#tpu.dimension_semantics<parallel>], iteration_bounds = array<i64: 2>, scalar_prefetch = 0 : i64, scratch_operands = 0 : i64, tpu.core_type = #tpu.core_type<tc>, window_params = [{transform_indices = @transform_0, window_bounds = array<i64: 1, 8, 32>}, {pipeline_mode = #tpu.pipeline_mode<synchronous>, transform_indices = @transform_1, window_bounds = array<i64: 8, 8>}, {pipeline_mode = #tpu.pipeline_mode<synchronous>, transform_indices = @transform_2, window_bounds = array<i64: 32, 96>}, {pipeline_mode = #tpu.pipeline_mode<synchronous>, transform_indices = @transform_3, window_bounds = array<i64: 1, 96>}, {pipeline_mode = #tpu.pipeline_mode<synchronous>, transform_indices = @transform_4, window_bounds = array<i64: 32, 32>}, {pipeline_mode = #tpu.pipeline_mode<synchronous>, transform_indices = @transform_5, window_bounds = array<i64: 1, 32>}, {pipeline_mode = #tpu.pipeline_mode<synchronous>, transform_indices = @transform_6, window_bounds = array<i64: 1, 32>}, {pipeline_mode = #tpu.pipeline_mode<synchronous>, transform_indices = @transform_7, window_bounds = array<i64: 1, 32>}, {transform_indices = @transform_8, window_bounds = array<i64: 1, 8, 32>}]} {
    %c0 = arith.constant 0 : index
    %c0_0 = arith.constant 0 : index
    %c0_1 = arith.constant 0 : index
    %0 = vector.load %arg1[%c0, %c0_0, %c0_1] : memref<1x8x32xf32, #tpu.memory_space<vmem>>, vector<1x8x32xf32>
    %1 = vector.shape_cast %0 : vector<1x8x32xf32> to vector<8x32xf32>
    %2 = arith.truncf %1 : vector<8x32xf32> to vector<8x32xbf16>
    %c0_2 = arith.constant 0 : index
    %c0_3 = arith.constant 0 : index
    %3 = vector.load %arg3[%c0_2, %c0_3] : memref<32x96xbf16, #tpu.memory_space<vmem>>, vector<32x96xbf16>
    %cst = arith.constant dense<0.000000e+00> : vector<8x96xf32>
    %4 = tpu.matmul %2, %3, %cst {dimension_numbers = #tpu.dot_dimension_numbers<[1], [0], [0], [1], [0, 0, 1, 1], [], []>} : vector<8x32xbf16>, vector<32x96xbf16>, vector<8x96xf32> -> vector<8x96xf32>
    %c0_4 = arith.constant 0 : index
    %c0_5 = arith.constant 0 : index
    %5 = vector.load %arg4[%c0_4, %c0_5] : memref<1x96xf32, #tpu.memory_space<vmem>>, vector<1x96xf32>
    %6 = vector.broadcast %5 : vector<1x96xf32> to vector<8x96xf32>
    %7 = arith.addf %4, %6 : vector<8x96xf32>
    %8 = vector.extract_strided_slice %7 {offsets = [0, 0], sizes = [8, 32], strides = [1, 1]} : vector<8x96xf32> to vector<8x32xf32>
    %9 = vector.extract_strided_slice %7 {offsets = [0, 32], sizes = [8, 32], strides = [1, 1]} : vector<8x96xf32> to vector<8x32xf32>
    %10 = vector.extract_strided_slice %7 {offsets = [0, 64], sizes = [8, 32], strides = [1, 1]} : vector<8x96xf32> to vector<8x32xf32>
    %c0_6 = arith.constant 0 : index
    %c0_7 = arith.constant 0 : index
    %11 = vector.load %arg2[%c0_6, %c0_7] : memref<8x8xf32, #tpu.memory_space<vmem>>, vector<8x8xf32>
    %12 = vector.extract_strided_slice %8 {offsets = [0, 0], sizes = [8, 8], strides = [1, 1]} : vector<8x32xf32> to vector<8x8xf32>
    %13 = vector.extract_strided_slice %9 {offsets = [0, 0], sizes = [8, 8], strides = [1, 1]} : vector<8x32xf32> to vector<8x8xf32>
    %14 = vector.extract_strided_slice %10 {offsets = [0, 0], sizes = [8, 8], strides = [1, 1]} : vector<8x32xf32> to vector<8x8xf32>
    %cst_8 = arith.constant dense<0.000000e+00> : vector<8x8xf32>
    %15 = tpu.matmul %12, %13, %cst_8 {dimension_numbers = #tpu.dot_dimension_numbers<[1], [1], [0], [0], [0, 0, 1, 0], [], []>} : vector<8x8xf32>, vector<8x8xf32>, vector<8x8xf32> -> vector<8x8xf32>
    %cst_9 = arith.constant 0.353553385 : f32
    %16 = vector.broadcast %cst_9 : f32 to vector<8x8xf32>
    %17 = arith.mulf %15, %16 : vector<8x8xf32>
    %18 = arith.addf %17, %11 : vector<8x8xf32>
    %cst_10 = arith.constant dense<0xFF800000> : vector<8xf32>
    %19 = vector.multi_reduction <maximumf>, %18, %cst_10 [1] : vector<8x8xf32> to vector<8xf32>
    %20 = vector.shape_cast %19 : vector<8xf32> to vector<8x1xf32>
    %21 = vector.broadcast %20 : vector<8x1xf32> to vector<8x8xf32>
    %22 = arith.subf %18, %21 : vector<8x8xf32>
    %23 = math.exp %22 : vector<8x8xf32>
    %cst_11 = arith.constant dense<0.000000e+00> : vector<8xf32>
    %24 = vector.multi_reduction <add>, %23, %cst_11 [1] : vector<8x8xf32> to vector<8xf32>
    %25 = vector.shape_cast %24 : vector<8xf32> to vector<8x1xf32>
    %26 = tpu.reciprocal %25 {approx = true} : vector<8x1xf32> -> vector<8x1xf32>
    %27 = vector.broadcast %26 : vector<8x1xf32> to vector<8x8xf32>
    %28 = arith.mulf %23, %27 : vector<8x8xf32>
    %cst_12 = arith.constant dense<0.000000e+00> : vector<8x8xf32>
    %29 = tpu.matmul %28, %14, %cst_12 {dimension_numbers = #tpu.dot_dimension_numbers<[1], [0], [0], [1], [0, 0, 1, 1], [], []>} : vector<8x8xf32>, vector<8x8xf32>, vector<8x8xf32> -> vector<8x8xf32>
    %30 = vector.extract_strided_slice %8 {offsets = [0, 8], sizes = [8, 8], strides = [1, 1]} : vector<8x32xf32> to vector<8x8xf32>
    %31 = vector.extract_strided_slice %9 {offsets = [0, 8], sizes = [8, 8], strides = [1, 1]} : vector<8x32xf32> to vector<8x8xf32>
    %32 = vector.extract_strided_slice %10 {offsets = [0, 8], sizes = [8, 8], strides = [1, 1]} : vector<8x32xf32> to vector<8x8xf32>
    %cst_13 = arith.constant dense<0.000000e+00> : vector<8x8xf32>
    %33 = tpu.matmul %30, %31, %cst_13 {dimension_numbers = #tpu.dot_dimension_numbers<[1], [1], [0], [0], [0, 0, 1, 0], [], []>} : vector<8x8xf32>, vector<8x8xf32>, vector<8x8xf32> -> vector<8x8xf32>
    %cst_14 = arith.constant 0.353553385 : f32
    %34 = vector.broadcast %cst_14 : f32 to vector<8x8xf32>
    %35 = arith.mulf %33, %34 : vector<8x8xf32>
    %36 = arith.addf %35, %11 : vector<8x8xf32>
    %cst_15 = arith.constant dense<0xFF800000> : vector<8xf32>
    %37 = vector.multi_reduction <maximumf>, %36, %cst_15 [1] : vector<8x8xf32> to vector<8xf32>
    %38 = vector.shape_cast %37 : vector<8xf32> to vector<8x1xf32>
    %39 = vector.broadcast %38 : vector<8x1xf32> to vector<8x8xf32>
    %40 = arith.subf %36, %39 : vector<8x8xf32>
    %41 = math.exp %40 : vector<8x8xf32>
    %cst_16 = arith.constant dense<0.000000e+00> : vector<8xf32>
    %42 = vector.multi_reduction <add>, %41, %cst_16 [1] : vector<8x8xf32> to vector<8xf32>
    %43 = vector.shape_cast %42 : vector<8xf32> to vector<8x1xf32>
    %44 = tpu.reciprocal %43 {approx = true} : vector<8x1xf32> -> vector<8x1xf32>
    %45 = vector.broadcast %44 : vector<8x1xf32> to vector<8x8xf32>
    %46 = arith.mulf %41, %45 : vector<8x8xf32>
    %cst_17 = arith.constant dense<0.000000e+00> : vector<8x8xf32>
    %47 = tpu.matmul %46, %32, %cst_17 {dimension_numbers = #tpu.dot_dimension_numbers<[1], [0], [0], [1], [0, 0, 1, 1], [], []>} : vector<8x8xf32>, vector<8x8xf32>, vector<8x8xf32> -> vector<8x8xf32>
    %48 = vector.extract_strided_slice %8 {offsets = [0, 16], sizes = [8, 8], strides = [1, 1]} : vector<8x32xf32> to vector<8x8xf32>
    %49 = vector.extract_strided_slice %9 {offsets = [0, 16], sizes = [8, 8], strides = [1, 1]} : vector<8x32xf32> to vector<8x8xf32>
    %50 = vector.extract_strided_slice %10 {offsets = [0, 16], sizes = [8, 8], strides = [1, 1]} : vector<8x32xf32> to vector<8x8xf32>
    %cst_18 = arith.constant dense<0.000000e+00> : vector<8x8xf32>
    %51 = tpu.matmul %48, %49, %cst_18 {dimension_numbers = #tpu.dot_dimension_numbers<[1], [1], [0], [0], [0, 0, 1, 0], [], []>} : vector<8x8xf32>, vector<8x8xf32>, vector<8x8xf32> -> vector<8x8xf32>
    %cst_19 = arith.constant 0.353553385 : f32
    %52 = vector.broadcast %cst_19 : f32 to vector<8x8xf32>
    %53 = arith.mulf %51, %52 : vector<8x8xf32>
    %54 = arith.addf %53, %11 : vector<8x8xf32>
    %cst_20 = arith.constant dense<0xFF800000> : vector<8xf32>
    %55 = vector.multi_reduction <maximumf>, %54, %cst_20 [1] : vector<8x8xf32> to vector<8xf32>
    %56 = vector.shape_cast %55 : vector<8xf32> to vector<8x1xf32>
    %57 = vector.broadcast %56 : vector<8x1xf32> to vector<8x8xf32>
    %58 = arith.subf %54, %57 : vector<8x8xf32>
    %59 = math.exp %58 : vector<8x8xf32>
    %cst_21 = arith.constant dense<0.000000e+00> : vector<8xf32>
    %60 = vector.multi_reduction <add>, %59, %cst_21 [1] : vector<8x8xf32> to vector<8xf32>
    %61 = vector.shape_cast %60 : vector<8xf32> to vector<8x1xf32>
    %62 = tpu.reciprocal %61 {approx = true} : vector<8x1xf32> -> vector<8x1xf32>
    %63 = vector.broadcast %62 : vector<8x1xf32> to vector<8x8xf32>
    %64 = arith.mulf %59, %63 : vector<8x8xf32>
    %cst_22 = arith.constant dense<0.000000e+00> : vector<8x8xf32>
    %65 = tpu.matmul %64, %50, %cst_22 {dimension_numbers = #tpu.dot_dimension_numbers<[1], [0], [0], [1], [0, 0, 1, 1], [], []>} : vector<8x8xf32>, vector<8x8xf32>, vector<8x8xf32> -> vector<8x8xf32>
    %66 = vector.extract_strided_slice %8 {offsets = [0, 24], sizes = [8, 8], strides = [1, 1]} : vector<8x32xf32> to vector<8x8xf32>
    %67 = vector.extract_strided_slice %9 {offsets = [0, 24], sizes = [8, 8], strides = [1, 1]} : vector<8x32xf32> to vector<8x8xf32>
    %68 = vector.extract_strided_slice %10 {offsets = [0, 24], sizes = [8, 8], strides = [1, 1]} : vector<8x32xf32> to vector<8x8xf32>
    %cst_23 = arith.constant dense<0.000000e+00> : vector<8x8xf32>
    %69 = tpu.matmul %66, %67, %cst_23 {dimension_numbers = #tpu.dot_dimension_numbers<[1], [1], [0], [0], [0, 0, 1, 0], [], []>} : vector<8x8xf32>, vector<8x8xf32>, vector<8x8xf32> -> vector<8x8xf32>
    %cst_24 = arith.constant 0.353553385 : f32
    %70 = vector.broadcast %cst_24 : f32 to vector<8x8xf32>
    %71 = arith.mulf %69, %70 : vector<8x8xf32>
    %72 = arith.addf %71, %11 : vector<8x8xf32>
    %cst_25 = arith.constant dense<0xFF800000> : vector<8xf32>
    %73 = vector.multi_reduction <maximumf>, %72, %cst_25 [1] : vector<8x8xf32> to vector<8xf32>
    %74 = vector.shape_cast %73 : vector<8xf32> to vector<8x1xf32>
    %75 = vector.broadcast %74 : vector<8x1xf32> to vector<8x8xf32>
    %76 = arith.subf %72, %75 : vector<8x8xf32>
    %77 = math.exp %76 : vector<8x8xf32>
    %cst_26 = arith.constant dense<0.000000e+00> : vector<8xf32>
    %78 = vector.multi_reduction <add>, %77, %cst_26 [1] : vector<8x8xf32> to vector<8xf32>
    %79 = vector.shape_cast %78 : vector<8xf32> to vector<8x1xf32>
    %80 = tpu.reciprocal %79 {approx = true} : vector<8x1xf32> -> vector<8x1xf32>
    %81 = vector.broadcast %80 : vector<8x1xf32> to vector<8x8xf32>
    %82 = arith.mulf %77, %81 : vector<8x8xf32>
    %cst_27 = arith.constant dense<0.000000e+00> : vector<8x8xf32>
    %83 = tpu.matmul %82, %68, %cst_27 {dimension_numbers = #tpu.dot_dimension_numbers<[1], [0], [0], [1], [0, 0, 1, 1], [], []>} : vector<8x8xf32>, vector<8x8xf32>, vector<8x8xf32> -> vector<8x8xf32>
    %84 = tpu.concatenate %29, %47, %65, %83 in 1 : vector<8x8xf32>, vector<8x8xf32>, vector<8x8xf32>, vector<8x8xf32> -> vector<8x32xf32>
    %85 = arith.truncf %84 : vector<8x32xf32> to vector<8x32xbf16>
    %c0_28 = arith.constant 0 : index
    %c0_29 = arith.constant 0 : index
    %86 = vector.load %arg5[%c0_28, %c0_29] : memref<32x32xbf16, #tpu.memory_space<vmem>>, vector<32x32xbf16>
    %cst_30 = arith.constant dense<0.000000e+00> : vector<8x32xf32>
    %87 = tpu.matmul %85, %86, %cst_30 {dimension_numbers = #tpu.dot_dimension_numbers<[1], [0], [0], [1], [0, 0, 1, 1], [], []>} : vector<8x32xbf16>, vector<32x32xbf16>, vector<8x32xf32> -> vector<8x32xf32>
    %c0_31 = arith.constant 0 : index
    %c0_32 = arith.constant 0 : index
    %88 = vector.load %arg6[%c0_31, %c0_32] : memref<1x32xf32, #tpu.memory_space<vmem>>, vector<1x32xf32>
    %89 = vector.broadcast %88 : vector<1x32xf32> to vector<8x32xf32>
    %90 = arith.addf %87, %89 : vector<8x32xf32>
    %91 = arith.addf %1, %90 : vector<8x32xf32>
    %c0_33 = arith.constant 0 : index
    %c0_34 = arith.constant 0 : index
    %92 = vector.load %arg7[%c0_33, %c0_34] : memref<1x32xf32, #tpu.memory_space<vmem>>, vector<1x32xf32>
    %c0_35 = arith.constant 0 : index
    %c0_36 = arith.constant 0 : index
    %93 = vector.load %arg8[%c0_35, %c0_36] : memref<1x32xf32, #tpu.memory_space<vmem>>, vector<1x32xf32>
    %cst_37 = arith.constant dense<0.000000e+00> : vector<8xf32>
    %94 = vector.multi_reduction <add>, %91, %cst_37 [1] : vector<8x32xf32> to vector<8xf32>
    %95 = vector.shape_cast %94 : vector<8xf32> to vector<8x1xf32>
    %cst_38 = arith.constant 3.200000e+01 : f32
    %96 = vector.broadcast %cst_38 : f32 to vector<8x1xf32>
    %97 = arith.divf %95, %96 : vector<8x1xf32>
    %98 = vector.broadcast %97 : vector<8x1xf32> to vector<8x32xf32>
    %99 = arith.subf %91, %98 : vector<8x32xf32>
    %100 = arith.mulf %99, %99 : vector<8x32xf32>
    %cst_39 = arith.constant dense<0.000000e+00> : vector<8xf32>
    %101 = vector.multi_reduction <add>, %100, %cst_39 [1] : vector<8x32xf32> to vector<8xf32>
    %102 = vector.shape_cast %101 : vector<8xf32> to vector<8x1xf32>
    %cst_40 = arith.constant 3.200000e+01 : f32
    %103 = vector.broadcast %cst_40 : f32 to vector<8x1xf32>
    %104 = arith.divf %102, %103 : vector<8x1xf32>
    %105 = vector.broadcast %97 : vector<8x1xf32> to vector<8x32xf32>
    %106 = arith.subf %91, %105 : vector<8x32xf32>
    %cst_41 = arith.constant 9.99999974E-6 : f32
    %107 = vector.broadcast %cst_41 : f32 to vector<8x1xf32>
    %108 = arith.addf %104, %107 : vector<8x1xf32>
    %109 = math.rsqrt %108 : vector<8x1xf32>
    %110 = vector.broadcast %109 : vector<8x1xf32> to vector<8x32xf32>
    %111 = arith.mulf %106, %110 : vector<8x32xf32>
    %112 = vector.broadcast %92 : vector<1x32xf32> to vector<8x32xf32>
    %113 = arith.mulf %111, %112 : vector<8x32xf32>
    %114 = vector.broadcast %93 : vector<1x32xf32> to vector<8x32xf32>
    %115 = arith.addf %113, %114 : vector<8x32xf32>
    %c0_42 = arith.constant 0 : index
    %c0_43 = arith.constant 0 : index
    %c0_44 = arith.constant 0 : index
    %116 = vector.load %arg9[%c0_42, %c0_43, %c0_44] : memref<1x8x32xf32, #tpu.memory_space<vmem>>, vector<1x8x32xf32>
    %117 = vector.shape_cast %116 : vector<1x8x32xf32> to vector<8x32xf32>
    %118 = vector.shape_cast %115 : vector<8x32xf32> to vector<1x8x32xf32>
    tpu.vector_store %arg9[%c0_42, %c0_43, %c0_44], %118 {strides = array<i32>} : memref<1x8x32xf32, #tpu.memory_space<vmem>>, vector<1x8x32xf32>,
    return
  }
  func.func @transform_0(%arg0: i32) -> (i32, i32, i32) {
    %c0_i32 = arith.constant 0 : i32
    %c0_i32_0 = arith.constant 0 : i32
    %c0_i32_1 = arith.constant 0 : i32
    return %arg0, %c0_i32, %c0_i32_0 : i32, i32, i32
  }
  func.func @transform_1(%arg0: i32) -> (i32, i32) {
    %c0_i32 = arith.constant 0 : i32
    %c0_i32_0 = arith.constant 0 : i32
    %c0_i32_1 = arith.constant 0 : i32
    return %c0_i32, %c0_i32_0 : i32, i32
  }
  func.func @transform_2(%arg0: i32) -> (i32, i32) {
    %c0_i32 = arith.constant 0 : i32
    %c0_i32_0 = arith.constant 0 : i32
    %c0_i32_1 = arith.constant 0 : i32
    return %c0_i32, %c0_i32_0 : i32, i32
  }
  func.func @transform_3(%arg0: i32) -> (i32, i32) {
    %c0_i32 = arith.constant 0 : i32
    %c0_i32_0 = arith.constant 0 : i32
    %c0_i32_1 = arith.constant 0 : i32
    return %c0_i32, %c0_i32_0 : i32, i32
  }
  func.func @transform_4(%arg0: i32) -> (i32, i32) {
    %c0_i32 = arith.constant 0 : i32
    %c0_i32_0 = arith.constant 0 : i32
    %c0_i32_1 = arith.constant 0 : i32
    return %c0_i32, %c0_i32_0 : i32, i32
  }
  func.func @transform_5(%arg0: i32) -> (i32, i32) {
    %c0_i32 = arith.constant 0 : i32
    %c0_i32_0 = arith.constant 0 : i32
    %c0_i32_1 = arith.constant 0 : i32
    return %c0_i32, %c0_i32_0 : i32, i32
  }
  func.func @transform_6(%arg0: i32) -> (i32, i32) {
    %c0_i32 = arith.constant 0 : i32
    %c0_i32_0 = arith.constant 0 : i32
    %c0_i32_1 = arith.constant 0 : i32
    return %c0_i32, %c0_i32_0 : i32, i32
  }
  func.func @transform_7(%arg0: i32) -> (i32, i32) {
    %c0_i32 = arith.constant 0 : i32
    %c0_i32_0 = arith.constant 0 : i32
    %c0_i32_1 = arith.constant 0 : i32
    return %c0_i32, %c0_i32_0 : i32, i32
  }
  func.func @transform_8(%arg0: i32) -> (i32, i32, i32) {
    %c0_i32 = arith.constant 0 : i32
    %c0_i32_0 = arith.constant 0 : i32
    %c0_i32_1 = arith.constant 0 : i32
    return %arg0, %c0_i32, %c0_i32_0 : i32, i32, i32
  }
}

module attributes {stable_mosaic.version = 11 : i64} {
  func.func @_ff_block_kernel(%arg0: i32, %arg1: memref<16x32xf32, #tpu.memory_space<vmem>>, %arg2: memref<32x64xbf16, #tpu.memory_space<vmem>>, %arg3: memref<1x64xf32, #tpu.memory_space<vmem>>, %arg4: memref<64x32xbf16, #tpu.memory_space<vmem>>, %arg5: memref<1x32xf32, #tpu.memory_space<vmem>>, %arg6: memref<1x32xf32, #tpu.memory_space<vmem>>, %arg7: memref<1x32xf32, #tpu.memory_space<vmem>>, %arg8: memref<16x32xf32, #tpu.memory_space<vmem>>) attributes {dimension_semantics = [#tpu.dimension_semantics<parallel>], iteration_bounds = array<i64: 1>, scalar_prefetch = 0 : i64, scratch_operands = 0 : i64, tpu.core_type = #tpu.core_type<tc>, window_params = [{transform_indices = @transform_0, window_bounds = array<i64: 16, 32>}, {pipeline_mode = #tpu.pipeline_mode<synchronous>, transform_indices = @transform_1, window_bounds = array<i64: 32, 64>}, {pipeline_mode = #tpu.pipeline_mode<synchronous>, transform_indices = @transform_2, window_bounds = array<i64: 1, 64>}, {pipeline_mode = #tpu.pipeline_mode<synchronous>, transform_indices = @transform_3, window_bounds = array<i64: 64, 32>}, {pipeline_mode = #tpu.pipeline_mode<synchronous>, transform_indices = @transform_4, window_bounds = array<i64: 1, 32>}, {pipeline_mode = #tpu.pipeline_mode<synchronous>, transform_indices = @transform_5, window_bounds = array<i64: 1, 32>}, {pipeline_mode = #tpu.pipeline_mode<synchronous>, transform_indices = @transform_6, window_bounds = array<i64: 1, 32>}, {transform_indices = @transform_7, window_bounds = array<i64: 16, 32>}]} {
    %c0 = arith.constant 0 : index
    %c0_0 = arith.constant 0 : index
    %0 = vector.load %arg1[%c0, %c0_0] : memref<16x32xf32, #tpu.memory_space<vmem>>, vector<16x32xf32>
    %1 = arith.truncf %0 : vector<16x32xf32> to vector<16x32xbf16>
    %c0_1 = arith.constant 0 : index
    %c0_2 = arith.constant 0 : index
    %2 = vector.load %arg2[%c0_1, %c0_2] : memref<32x64xbf16, #tpu.memory_space<vmem>>, vector<32x64xbf16>
    %cst = arith.constant dense<0.000000e+00> : vector<16x64xf32>
    %3 = tpu.matmul %1, %2, %cst {dimension_numbers = #tpu.dot_dimension_numbers<[1], [0], [0], [1], [0, 0, 1, 1], [], []>} : vector<16x32xbf16>, vector<32x64xbf16>, vector<16x64xf32> -> vector<16x64xf32>
    %c0_3 = arith.constant 0 : index
    %c0_4 = arith.constant 0 : index
    %4 = vector.load %arg3[%c0_3, %c0_4] : memref<1x64xf32, #tpu.memory_space<vmem>>, vector<1x64xf32>
    %5 = vector.broadcast %4 : vector<1x64xf32> to vector<16x64xf32>
    %6 = arith.addf %3, %5 : vector<16x64xf32>
    %7 = arith.mulf %6, %6 : vector<16x64xf32>
    %8 = arith.mulf %6, %7 : vector<16x64xf32>
    %cst_5 = arith.constant 4.471500e-02 : f32
    %9 = vector.broadcast %cst_5 : f32 to vector<16x64xf32>
    %10 = arith.mulf %9, %8 : vector<16x64xf32>
    %11 = arith.addf %6, %10 : vector<16x64xf32>
    %cst_6 = arith.constant 0.797884583 : f32
    %12 = vector.broadcast %cst_6 : f32 to vector<16x64xf32>
    %13 = arith.mulf %12, %11 : vector<16x64xf32>
    %14 = math.tanh %13 : vector<16x64xf32>
    %cst_7 = arith.constant 1.000000e+00 : f32
    %15 = vector.broadcast %cst_7 : f32 to vector<16x64xf32>
    %16 = arith.addf %15, %14 : vector<16x64xf32>
    %cst_8 = arith.constant 5.000000e-01 : f32
    %17 = vector.broadcast %cst_8 : f32 to vector<16x64xf32>
    %18 = arith.mulf %17, %16 : vector<16x64xf32>
    %19 = arith.mulf %6, %18 : vector<16x64xf32>
    %20 = arith.truncf %19 : vector<16x64xf32> to vector<16x64xbf16>
    %c0_9 = arith.constant 0 : index
    %c0_10 = arith.constant 0 : index
    %21 = vector.load %arg4[%c0_9, %c0_10] : memref<64x32xbf16, #tpu.memory_space<vmem>>, vector<64x32xbf16>
    %cst_11 = arith.constant dense<0.000000e+00> : vector<16x32xf32>
    %22 = tpu.matmul %20, %21, %cst_11 {dimension_numbers = #tpu.dot_dimension_numbers<[1], [0], [0], [1], [0, 0, 1, 1], [], []>} : vector<16x64xbf16>, vector<64x32xbf16>, vector<16x32xf32> -> vector<16x32xf32>
    %23 = arith.addf %0, %22 : vector<16x32xf32>
    %c0_12 = arith.constant 0 : index
    %c0_13 = arith.constant 0 : index
    %24 = vector.load %arg5[%c0_12, %c0_13] : memref<1x32xf32, #tpu.memory_space<vmem>>, vector<1x32xf32>
    %25 = vector.broadcast %24 : vector<1x32xf32> to vector<16x32xf32>
    %26 = arith.addf %23, %25 : vector<16x32xf32>
    %c0_14 = arith.constant 0 : index
    %c0_15 = arith.constant 0 : index
    %27 = vector.load %arg6[%c0_14, %c0_15] : memref<1x32xf32, #tpu.memory_space<vmem>>, vector<1x32xf32>
    %c0_16 = arith.constant 0 : index
    %c0_17 = arith.constant 0 : index
    %28 = vector.load %arg7[%c0_16, %c0_17] : memref<1x32xf32, #tpu.memory_space<vmem>>, vector<1x32xf32>
    %cst_18 = arith.constant dense<0.000000e+00> : vector<16xf32>
    %29 = vector.multi_reduction <add>, %26, %cst_18 [1] : vector<16x32xf32> to vector<16xf32>
    %30 = vector.shape_cast %29 : vector<16xf32> to vector<16x1xf32>
    %cst_19 = arith.constant 3.200000e+01 : f32
    %31 = vector.broadcast %cst_19 : f32 to vector<16x1xf32>
    %32 = arith.divf %30, %31 : vector<16x1xf32>
    %33 = vector.broadcast %32 : vector<16x1xf32> to vector<16x32xf32>
    %34 = arith.subf %26, %33 : vector<16x32xf32>
    %35 = arith.mulf %34, %34 : vector<16x32xf32>
    %cst_20 = arith.constant dense<0.000000e+00> : vector<16xf32>
    %36 = vector.multi_reduction <add>, %35, %cst_20 [1] : vector<16x32xf32> to vector<16xf32>
    %37 = vector.shape_cast %36 : vector<16xf32> to vector<16x1xf32>
    %cst_21 = arith.constant 3.200000e+01 : f32
    %38 = vector.broadcast %cst_21 : f32 to vector<16x1xf32>
    %39 = arith.divf %37, %38 : vector<16x1xf32>
    %40 = vector.broadcast %32 : vector<16x1xf32> to vector<16x32xf32>
    %41 = arith.subf %26, %40 : vector<16x32xf32>
    %cst_22 = arith.constant 9.99999974E-6 : f32
    %42 = vector.broadcast %cst_22 : f32 to vector<16x1xf32>
    %43 = arith.addf %39, %42 : vector<16x1xf32>
    %44 = math.rsqrt %43 : vector<16x1xf32>
    %45 = vector.broadcast %44 : vector<16x1xf32> to vector<16x32xf32>
    %46 = arith.mulf %41, %45 : vector<16x32xf32>
    %47 = vector.broadcast %27 : vector<1x32xf32> to vector<16x32xf32>
    %48 = arith.mulf %46, %47 : vector<16x32xf32>
    %49 = vector.broadcast %28 : vector<1x32xf32> to vector<16x32xf32>
    %50 = arith.addf %48, %49 : vector<16x32xf32>
    %c0_23 = arith.constant 0 : index
    %c0_24 = arith.constant 0 : index
    %51 = vector.load %arg8[%c0_23, %c0_24] : memref<16x32xf32, #tpu.memory_space<vmem>>, vector<16x32xf32>
    tpu.vector_store %arg8[%c0_23, %c0_24], %50 {strides = array<i32>} : memref<16x32xf32, #tpu.memory_space<vmem>>, vector<16x32xf32>,
    return
  }
  func.func @transform_0(%arg0: i32) -> (i32, i32) {
    %c0_i32 = arith.constant 0 : i32
    %c0_i32_0 = arith.constant 0 : i32
    return %arg0, %c0_i32 : i32, i32
  }
  func.func @transform_1(%arg0: i32) -> (i32, i32) {
    %c0_i32 = arith.constant 0 : i32
    %c0_i32_0 = arith.constant 0 : i32
    %c0_i32_1 = arith.constant 0 : i32
    return %c0_i32, %c0_i32_0 : i32, i32
  }
  func.func @transform_2(%arg0: i32) -> (i32, i32) {
    %c0_i32 = arith.constant 0 : i32
    %c0_i32_0 = arith.constant 0 : i32
    %c0_i32_1 = arith.constant 0 : i32
    return %c0_i32, %c0_i32_0 : i32, i32
  }
  func.func @transform_3(%arg0: i32) -> (i32, i32) {
    %c0_i32 = arith.constant 0 : i32
    %c0_i32_0 = arith.constant 0 : i32
    %c0_i32_1 = arith.constant 0 : i32
    return %c0_i32, %c0_i32_0 : i32, i32
  }
  func.func @transform_4(%arg0: i32) -> (i32, i32) {
    %c0_i32 = arith.constant 0 : i32
    %c0_i32_0 = arith.constant 0 : i32
    %c0_i32_1 = arith.constant 0 : i32
    return %c0_i32, %c0_i32_0 : i32, i32
  }
  func.func @transform_5(%arg0: i32) -> (i32, i32) {
    %c0_i32 = arith.constant 0 : i32
    %c0_i32_0 = arith.constant 0 : i32
    %c0_i32_1 = arith.constant 0 : i32
    return %c0_i32, %c0_i32_0 : i32, i32
  }
  func.func @transform_6(%arg0: i32) -> (i32, i32) {
    %c0_i32 = arith.constant 0 : i32
    %c0_i32_0 = arith.constant 0 : i32
    %c0_i32_1 = arith.constant 0 : i32
    return %c0_i32, %c0_i32_0 : i32, i32
  }
  func.func @transform_7(%arg0: i32) -> (i32, i32) {
    %c0_i32 = arith.constant 0 : i32
    %c0_i32_0 = arith.constant 0 : i32
    return %arg0, %c0_i32 : i32, i32
  }
}

</mosaic_0001>

<llo_original>
// kernel: export_conette_forward.13
$region0: #{export_conette_forward.13}
  #allocation0 [shape = 'u32[]', space=smem, size = 0x4, offset = 0x4, fixed_abs, tag = 'smem constant byte address 0x4 - core index']
  #allocation1 [shape = 'u32[144,128]{1,0:T(1,128)}', space=vmem, size = 0x12000, scoped, tag = 'internal scratch']
  %s0 = inlined_call_operand.vmem [shape: f32[16,32], index: 0, kind: input, shape index: {}]
  %s1 = inlined_call_operand.vmem [shape: f32[1,32], index: 1, kind: input, shape index: {}]
  %s2 = inlined_call_operand.vmem [shape: f32[1,32], index: 2, kind: input, shape index: {}]
  %s3 = inlined_call_operand.vmem [shape: bf16[32,64], index: 3, kind: input, shape index: {}]
  %s4 = inlined_call_operand.vmem [shape: f32[1,64], index: 4, kind: input, shape index: {}]
  %s5 = inlined_call_operand.hbm [shape: f32[16,64], index: 5, kind: output, shape index: {}]
  %s6 = sld [smem:[#allocation0]]
  $region30: #{export_conette_forward.13} parent=0
    _
  %s8 = ssub.s32 1, %s6
  %s9 = scalar_select 0, %s8, %s6
  $region1: #{export_conette_forward.13} parent=0
    #allocation2 [shape = 'u8[8192]{0}', space=vmem, size = 0x2000, scoped, tag = 'output window, operand 0, single buffered']
    #allocation3 [shape = 's32[1]{0}', space=sflag, size = 0x4, scoped, tag = 'scoped memory for export_conette_forward.13']
    %10 = vsyncpa [#allocation3], 0
    // Predicated region
    $region2: #{export_conette_forward.13} parent=1 // pred_check
      _
    $region3: #{export_conette_forward.13} parent=1 // pred_check_branch
      %12 = sbr.rel (0) target = $region5
    $region4: #{export_conette_forward.13} parent=1 // pred_region
      _
    $region5: #{export_conette_forward.13} parent=1 // pred_fallthru
      _
    // Predicated region
    $region6: #{export_conette_forward.13} parent=1 // pred_check
      _
    $region7: #{export_conette_forward.13} parent=1 // pred_check_branch
      %14 = sbr.rel (0) target = $region9
    $region8: #{export_conette_forward.13} parent=1 // pred_region
      _
    $region9: #{export_conette_forward.13} parent=1 // pred_fallthru
      _
    // Predicated region
    $region10: #{export_conette_forward.13} parent=1 // pred_check
      _
    $region11: #{export_conette_forward.13} parent=1 // pred_check_branch
      %16 = sbr.rel (0) target = $region13
    $region12: #{export_conette_forward.13} parent=1 // pred_region
      _
    $region13: #{export_conette_forward.13} parent=1 // pred_fallthru
      _
    // Predicated region
    $region14: #{export_conette_forward.13} parent=1 // pred_check
      _
    $region15: #{export_conette_forward.13} parent=1 // pred_check_branch
      %18 = sbr.rel (0) target = $region17
    $region16: #{export_conette_forward.13} parent=1 // pred_region
      _
    $region17: #{export_conette_forward.13} parent=1 // pred_fallthru
      _
    // Predicated region
    $region18: #{export_conette_forward.13} parent=1 // pred_check
      _
    $region19: #{export_conette_forward.13} parent=1 // pred_check_branch
      %20 = sbr.rel (0) target = $region21
    $region20: #{export_conette_forward.13} parent=1 // pred_region
      _
    $region21: #{export_conette_forward.13} parent=1 // pred_fallthru
      _
    %v22 = vld [vmem:[%s0] sm:$0xff]
    %v23 = vld [vmem:[%s0 + $0x8] sm:$0xff]
    %v24 = vld [vmem:[%s1] sm:$0x1]
    %v25 = vld [vmem:[%s2] sm:$0x1]
    %vm26 = vcmask 261120
    %v27 = vsel %vm26, %v22, 0.0
    %28 = vadd.xlane.f32.xlu0 %v27
    %v29 = vpop.xlane.xlu0 %28
    %v30 = vsel %vm26, %v23, 0.0
    %31 = vadd.xlane.f32.xlu0 %v30
    %v32 = vpop.xlane.xlu0 %31
    %v33 = vrcp.pop 32.0
    %v34 = vmul.f32 %v29, %v33
    %v35 = vmul.f32 %v32, %v33
    %v36 = vsub.f32 %v22, %v34
    %v37 = vsub.f32 %v23, %v35
    %v38 = vmul.f32 %v36, %v36
    %v39 = vmul.f32 %v37, %v37
    %v40 = vsel %vm26, %v38, 0.0
    %41 = vadd.xlane.f32.xlu0 %v40
    %v42 = vpop.xlane.xlu0 %41
    %v43 = vsel %vm26, %v39, 0.0
    %44 = vadd.xlane.f32.xlu0 %v43
    %v45 = vpop.xlane.xlu0 %44
    %v46 = vmul.f32 %v42, %v33
    %v47 = vmul.f32 %v45, %v33
    %v48 = vadd.f32 %v46, 1e-05
    %v49 = vadd.f32 %v47, 1e-05
    %v50 = vrsqrt.pop %v48
    %v51 = vrsqrt.pop %v49
    %v52 = vmul.f32 %v36, %v50
    %v53 = vmul.f32 %v37, %v51
    %v55 = vlaneseq
    %v56 = vshrl.u32 %v55, 7
    %v57 = vsub.s32 0, %v56
    %v58 = vrot.slane %v24, %v57
    %v60 = vmul.f32 %v52, %v58
    %v61 = vmul.f32 %v53, %v58
    %v63 = vlaneseq
    %v64 = vshrl.u32 %v63, 7
    %v65 = vsub.s32 0, %v64
    %v66 = vrot.slane %v25, %v65
    %v68 = vadd.f32 %v60, %v66
    %v69 = vadd.f32 %v61, %v66
    %v70 = vpack.c.bf16 %v69, %v68
    %v71 = vld [vmem:[%s3] sm:$0xf]
    %v72 = vld [vmem:[%s3 + $0x4] sm:$0xf]
    %v73 = vld [vmem:[%s3 + $0x8] sm:$0xf]
    %v74 = vld [vmem:[%s3 + $0xc] sm:$0xf]
    %v75 = vld [vmem:[%s4] sm:$0x1]
    %v77 = vlaneseq
    %v78 = vshrl.u32 %v77, 7
    %v79 = vsub.s32 0, %v78
    %v80 = vrot.slane %v75, %v79
    %v86 = vunpack.c.l.b16 %v71
    %v87 = vunpack.c.l.b16 %v72
    %v88 = vunpack.c.l.b16 %v73
    %v89 = vunpack.c.l.b16 %v74
    %v90 = vpack.c.b16 %v87, %v86
    %v91 = vpack.c.b16 %v89, %v88
    %v95 = vsel %vm26, %v70, 0
    %97 = vmatprep.subr.bf16.mxu0 0
    %98 = vmatpush1.bf16.msra.mxu0 %v90
    %99 = vmatprep.subr.bf16.mxu0 0
    %100 = vmatpush1.bf16.msra.mxu0 %v91
    %101 = vmatprep.subr.bf16.mxu0 0
    %102 = vmatpush1.bf16.msra.mxu0 0
    %103 = vmatprep.subr.bf16.mxu0 0
    %104 = vmatpush1.bf16.msra.mxu0 0
    %105 = vmatprep.subr.bf16.mxu0 0
    %106 = vmatpush1.bf16.msra.mxu0 0
    %107 = vmatprep.subr.bf16.mxu0 0
    %108 = vmatpush1.bf16.msra.mxu0 0
    %109 = vmatprep.subr.bf16.mxu0 0
    %110 = vmatpush1.bf16.msra.mxu0 0
    %111 = vmatprep.subr.bf16.mxu0 0
    %112 = vmatpush1.bf16.msra.mxu0 0
    %113 = vmatprep.subr.bf16.mxu0 0
    %114 = vmatpush1.bf16.msra.mxu0 0
    %115 = vmatprep.subr.bf16.mxu0 0
    %116 = vmatpush1.bf16.msra.mxu0 0
    %117 = vmatprep.subr.bf16.mxu0 0
    %118 = vmatpush1.bf16.msra.mxu0 0
    %119 = vmatprep.subr.bf16.mxu0 0
    %120 = vmatpush1.bf16.msra.mxu0 0
    %121 = vmatprep.subr.bf16.mxu0 0
    %122 = vmatpush1.bf16.msra.mxu0 0
    %123 = vmatprep.subr.bf16.mxu0 0
    %124 = vmatpush1.bf16.msra.mxu0 0
    %125 = vmatprep.subr.bf16.mxu0 0
    %126 = vmatpush1.bf16.msra.mxu0 0
    %127 = vmatprep.subr.bf16.mxu0 0
    %128 = vmatpush1.bf16.msra.mxu0 0
    %129 = vmatprep.mubr.bf16.mxu0 0
    %130 = vmatmul.mubr.bf16.gmra.mrb[0].mxu0 %v95
    %v131 = vpop.f32.mrb[0].mxu0
    %v132 = vadd.f32 %v80, %v131
    %v133 = vpop.f32.mrb[0].mxu0
    %v134 = vpop.f32.mrb[0].mxu0
    %v135 = vadd.f32 %v80, %v134
    %v136 = vpop.f32.mrb[0].mxu0
    %137 = vdwg.mxu0
    %vm138 = vcmask 523264
    %139 = vst.msk [vmem:[#allocation2] sm:$0xff] %vm138, %v132
    %140 = vst.msk [vmem:[#allocation2 + $0x8] sm:$0xff] %vm138, %v135
    // Predicated region
    $region22: #{export_conette_forward.13} parent=1 // pred_check
      _
    $region23: #{export_conette_forward.13} parent=1 // pred_check_branch
      %142 = sbr.rel (0) target = $region25
    $region24: #{export_conette_forward.13} parent=1 // pred_region
      %s144 = ssub.s32 256, 256
      %145 = vsyncadd [#allocation3], %s144
      %s146 = sshll.u32 [#allocation2], 4
      %s147 = int_to_ptr.vmem [resolvable:$true] %s146
      %152 = dma.vmem_to_hbm [thread:$0]  %s147, 256, %s5, [#allocation3], 128, 128, 8
    $region25: #{export_conette_forward.13} parent=1 // pred_fallthru
      _
    // Predicated region
    $region26: #{export_conette_forward.13} parent=1 // pred_check
      _
    $region27: #{export_conette_forward.13} parent=1 // pred_check_branch
      %154 = sbr.rel (0) target = $region29
    $region28: #{export_conette_forward.13} parent=1 // pred_region
      %155 = dma.done [#allocation3], 256
    $region29: #{export_conette_forward.13} parent=1 // pred_fallthru
      _
    %156 = vsyncpa [#allocation3], 1

// kernel: export_conette_forward.9
$region0: #{export_conette_forward.9}
  #allocation0 [shape = 'u32[]', space=smem, size = 0x4, offset = 0x4, fixed_abs, tag = 'smem constant byte address 0x4 - core index']
  #allocation1 [shape = 'u32[144,128]{1,0:T(1,128)}', space=vmem, size = 0x12000, scoped, tag = 'internal scratch']
  %s0 = inlined_call_operand.vmem [shape: f32[16,32], index: 0, kind: input, shape index: {}]
  %s1 = inlined_call_operand.vmem [shape: bf16[32,64], index: 1, kind: input, shape index: {}]
  %s2 = inlined_call_operand.vmem [shape: f32[1,64], index: 2, kind: input, shape index: {}]
  %s3 = inlined_call_operand.vmem [shape: bf16[64,32], index: 3, kind: input, shape index: {}]
  %s4 = inlined_call_operand.vmem [shape: f32[1,32], index: 4, kind: input, shape index: {}, may-alias: {4,6}]
  %s5 = inlined_call_operand.vmem [shape: f32[1,32], index: 5, kind: input, shape index: {}]
  %s6 = inlined_call_operand.vmem [shape: f32[1,32], index: 6, kind: input, shape index: {}, may-alias: {4,6}]
  %s7 = inlined_call_operand.vmem [shape: f32[16,32], index: 7, kind: output, shape index: {}]
  %s8 = sld [smem:[#allocation0]]
  $region38: #{export_conette_forward.9} parent=0
    _
  %s10 = ssub.s32 1, %s8
  %s11 = scalar_select 0, %s10, %s8
  // Predicated region
  $region2: #{export_conette_forward.9} parent=0 // pred_check
    _
  $region3: #{export_conette_forward.9} parent=0 // pred_check_branch
    %13 = sbr.rel (0) target = $region5
  $region4: #{export_conette_forward.9} parent=0 // pred_region
    _
  $region5: #{export_conette_forward.9} parent=0 // pred_fallthru
    _
  // Predicated region
  $region6: #{export_conette_forward.9} parent=0 // pred_check
    _
  $region7: #{export_conette_forward.9} parent=0 // pred_check_branch
    %15 = sbr.rel (0) target = $region9
  $region8: #{export_conette_forward.9} parent=0 // pred_region
    _
  $region9: #{export_conette_forward.9} parent=0 // pred_fallthru
    _
  // Predicated region
  $region10: #{export_conette_forward.9} parent=0 // pred_check
    _
  $region11: #{export_conette_forward.9} parent=0 // pred_check_branch
    %17 = sbr.rel (0) target = $region13
  $region12: #{export_conette_forward.9} parent=0 // pred_region
    _
  $region13: #{export_conette_forward.9} parent=0 // pred_fallthru
    _
  // Predicated region
  $region14: #{export_conette_forward.9} parent=0 // pred_check
    _
  $region15: #{export_conette_forward.9} parent=0 // pred_check_branch
    %19 = sbr.rel (0) target = $region17
  $region16: #{export_conette_forward.9} parent=0 // pred_region
    _
  $region17: #{export_conette_forward.9} parent=0 // pred_fallthru
    _
  // Predicated region
  $region18: #{export_conette_forward.9} parent=0 // pred_check
    _
  $region19: #{export_conette_forward.9} parent=0 // pred_check_branch
    %21 = sbr.rel (0) target = $region21
  $region20: #{export_conette_forward.9} parent=0 // pred_region
    _
  $region21: #{export_conette_forward.9} parent=0 // pred_fallthru
    _
  // Predicated region
  $region22: #{export_conette_forward.9} parent=0 // pred_check
    _
  $region23: #{export_conette_forward.9} parent=0 // pred_check_branch
    %23 = sbr.rel (0) target = $region25
  $region24: #{export_conette_forward.9} parent=0 // pred_region
    _
  $region25: #{export_conette_forward.9} parent=0 // pred_fallthru
    _
  // Predicated region
  $region26: #{export_conette_forward.9} parent=0 // pred_check
    _
  $region27: #{export_conette_forward.9} parent=0 // pred_check_branch
    %25 = sbr.rel (0) target = $region29
  $region28: #{export_conette_forward.9} parent=0 // pred_region
    _
  $region29: #{export_conette_forward.9} parent=0 // pred_fallthru
    _
  %v27 = vld [vmem:[%s0] sm:$0xff]
  %v28 = vld [vmem:[%s0 + $0x8] sm:$0xff]
  %v29 = vpack.c.bf16 %v28, %v27
  %v30 = vld [vmem:[%s1] sm:$0xf]
  %v31 = vld [vmem:[%s1 + $0x4] sm:$0xf]
  %v32 = vld [vmem:[%s1 + $0x8] sm:$0xf]
  %v33 = vld [vmem:[%s1 + $0xc] sm:$0xf]
  %v34 = vld [vmem:[%s2] sm:$0x1]
  %v36 = vlaneseq
  %v37 = vshrl.u32 %v36, 7
  %v38 = vsub.s32 0, %v37
  %v39 = vrot.slane %v34, %v38
  %v45 = vunpack.c.l.b16 %v30
  %v46 = vunpack.c.l.b16 %v31
  %v47 = vunpack.c.l.b16 %v32
  %v48 = vunpack.c.l.b16 %v33
  %v49 = vpack.c.b16 %v46, %v45
  %v50 = vpack.c.b16 %v48, %v47
  %vm53 = vcmask 261120
  %v55 = vsel %vm53, %v29, 0
  %57 = vmatprep.subr.bf16.mxu0 0
  %58 = vmatpush1.bf16.msra.mxu0 %v49
  %59 = vmatprep.subr.bf16.mxu0 0
  %60 = vmatpush1.bf16.msra.mxu0 %v50
  %61 = vmatprep.subr.bf16.mxu0 0
  %62 = vmatpush1.bf16.msra.mxu0 0
  %63 = vmatprep.subr.bf16.mxu0 0
  %64 = vmatpush1.bf16.msra.mxu0 0
  %65 = vmatprep.subr.bf16.mxu0 0
  %66 = vmatpush1.bf16.msra.mxu0 0
  %67 = vmatprep.subr.bf16.mxu0 0
  %68 = vmatpush1.bf16.msra.mxu0 0
  %69 = vmatprep.subr.bf16.mxu0 0
  %70 = vmatpush1.bf16.msra.mxu0 0
  %71 = vmatprep.subr.bf16.mxu0 0
  %72 = vmatpush1.bf16.msra.mxu0 0
  %73 = vmatprep.subr.bf16.mxu0 0
  %74 = vmatpush1.bf16.msra.mxu0 0
  %75 = vmatprep.subr.bf16.mxu0 0
  %76 = vmatpush1.bf16.msra.mxu0 0
  %77 = vmatprep.subr.bf16.mxu0 0
  %78 = vmatpush1.bf16.msra.mxu0 0
  %79 = vmatprep.subr.bf16.mxu0 0
  %80 = vmatpush1.bf16.msra.mxu0 0
  %81 = vmatprep.subr.bf16.mxu0 0
  %82 = vmatpush1.bf16.msra.mxu0 0
  %83 = vmatprep.subr.bf16.mxu0 0
  %84 = vmatpush1.bf16.msra.mxu0 0
  %85 = vmatprep.subr.bf16.mxu0 0
  %86 = vmatpush1.bf16.msra.mxu0 0
  %87 = vmatprep.subr.bf16.mxu0 0
  %88 = vmatpush1.bf16.msra.mxu0 0
  %89 = vmatprep.mubr.bf16.mxu0 0
  %90 = vmatmul.mubr.bf16.gmra.mrb[0].mxu0 %v55
  %v91 = vpop.f32.mrb[0].mxu0
  %v92 = vadd.f32 %v39, %v91
  %v93 = vpop.f32.mrb[0].mxu0
  %v94 = vpop.f32.mrb[0].mxu0
  %v95 = vadd.f32 %v39, %v94
  %v96 = vpop.f32.mrb[0].mxu0
  %97 = vdwg.mxu0
  %v98 = vmul.f32 %v92, %v92
  %v99 = vmul.f32 %v95, %v95
  %v100 = vmul.f32 %v92, %v98
  %v101 = vmul.f32 %v95, %v99
  %v102 = vmul.f32 %v100, 0.044715
  %v103 = vmul.f32 %v101, 0.044715
  %v104 = vadd.f32 %v92, %v102
  %v105 = vadd.f32 %v95, %v103
  %v106 = vmul.f32 %v104, 0.7978846
  %v107 = vmul.f32 %v105, 0.7978846
  %v108 = vtanh.pop %v106
  %v109 = vtanh.pop %v107
  %v110 = vadd.f32 %v108, 1.0
  %v111 = vadd.f32 %v109, 1.0
  %v112 = vmul.f32 %v110, 0.5
  %v113 = vmul.f32 %v111, 0.5
  %v114 = vmul.f32 %v92, %v112
  %v115 = vmul.f32 %v95, %v113
  %v116 = vpack.c.bf16 %v115, %v114
  %v117 = vld [vmem:[%s3] sm:$0xf]
  %v118 = vld [vmem:[%s3 + $0x4] sm:$0xf]
  %v119 = vld [vmem:[%s3 + $0x8] sm:$0xf]
  %v120 = vld [vmem:[%s3 + $0xc] sm:$0xf]
  %v121 = vld [vmem:[%s3 + $0x10] sm:$0xf]
  %v122 = vld [vmem:[%s3 + $0x14] sm:$0xf]
  %v123 = vld [vmem:[%s3 + $0x18] sm:$0xf]
  %v124 = vld [vmem:[%s3 + $0x1c] sm:$0xf]
  %v133 = vunpack.c.l.b16 %v117
  %v134 = vunpack.c.l.b16 %v118
  %v135 = vunpack.c.l.b16 %v119
  %v136 = vunpack.c.l.b16 %v120
  %v137 = vunpack.c.l.b16 %v121
  %v138 = vunpack.c.l.b16 %v122
  %v139 = vunpack.c.l.b16 %v123
  %v140 = vunpack.c.l.b16 %v124
  %v141 = vpack.c.b16 %v134, %v133
  %v142 = vpack.c.b16 %v136, %v135
  %v143 = vpack.c.b16 %v138, %v137
  %v144 = vpack.c.b16 %v140, %v139
  %vm149 = vcmask 523264
  %v151 = vsel %vm149, %v116, 0
  %153 = vmatprep.subr.bf16.mxu0 0
  %154 = vmatpush1.bf16.msra.mxu0 %v141
  %155 = vmatprep.subr.bf16.mxu0 0
  %156 = vmatpush1.bf16.msra.mxu0 %v142
  %157 = vmatprep.subr.bf16.mxu0 0
  %158 = vmatpush1.bf16.msra.mxu0 %v143
  %159 = vmatprep.subr.bf16.mxu0 0
  %160 = vmatpush1.bf16.msra.mxu0 %v144
  %161 = vmatprep.subr.bf16.mxu0 0
  %162 = vmatpush1.bf16.msra.mxu0 0
  %163 = vmatprep.subr.bf16.mxu0 0
  %164 = vmatpush1.bf16.msra.mxu0 0
  %165 = vmatprep.subr.bf16.mxu0 0
  %166 = vmatpush1.bf16.msra.mxu0 0
  %167 = vmatprep.subr.bf16.mxu0 0
  %168 = vmatpush1.bf16.msra.mxu0 0
  %169 = vmatprep.subr.bf16.mxu0 0
  %170 = vmatpush1.bf16.msra.mxu0 0
  %171 = vmatprep.subr.bf16.mxu0 0
  %172 = vmatpush1.bf16.msra.mxu0 0
  %173 = vmatprep.subr.bf16.mxu0 0
  %174 = vmatpush1.bf16.msra.mxu0 0
  %175 = vmatprep.subr.bf16.mxu0 0
  %176 = vmatpush1.bf16.msra.mxu0 0
  %177 = vmatprep.subr.bf16.mxu0 0
  %178 = vmatpush1.bf16.msra.mxu0 0
  %179 = vmatprep.subr.bf16.mxu0 0
  %180 = vmatpush1.bf16.msra.mxu0 0
  %181 = vmatprep.subr.bf16.mxu0 0
  %182 = vmatpush1.bf16.msra.mxu0 0
  %183 = vmatprep.subr.bf16.mxu0 0
  %184 = vmatpush1.bf16.msra.mxu0 0
  %185 = vmatprep.mubr.bf16.mxu0 0
  %186 = vmatmul.mubr.bf16.gmra.mrb[0].mxu0 %v151
  %v187 = vpop.f32.mrb[0].mxu0
  %v188 = vadd.f32 0.0, %v187
  %v189 = vpop.f32.mrb[0].mxu0
  %v190 = vpop.f32.mrb[0].mxu0
  %v191 = vadd.f32 0.0, %v190
  %v192 = vpop.f32.mrb[0].mxu0
  %193 = vdwg.mxu0
  %v194 = vadd.f32 %v27, %v188
  %v195 = vadd.f32 %v28, %v191
  %v196 = vld [vmem:[%s4] sm:$0x1]
  %v198 = vlaneseq
  %v199 = vshrl.u32 %v198, 7
  %v200 = vsub.s32 0, %v199
  %v201 = vrot.slane %v196, %v200
  %v203 = vadd.f32 %v194, %v201
  %v204 = vadd.f32 %v195, %v201
  %v205 = vld [vmem:[%s5] sm:$0x1]
  %v206 = vld [vmem:[%s6] sm:$0x1]
  %v207 = vsel %vm53, %v203, 0.0
  %208 = vadd.xlane.f32.xlu0 %v207
  %v209 = vpop.xlane.xlu0 %208
  %v210 = vsel %vm53, %v204, 0.0
  %211 = vadd.xlane.f32.xlu0 %v210
  %v212 = vpop.xlane.xlu0 %211
  %v213 = vrcp.pop 32.0
  %v214 = vmul.f32 %v209, %v213
  %v215 = vmul.f32 %v212, %v213
  %v216 = vsub.f32 %v203, %v214
  %v217 = vsub.f32 %v204, %v215
  %v218 = vmul.f32 %v216, %v216
  %v219 = vmul.f32 %v217, %v217
  %v220 = vsel %vm53, %v218, 0.0
  %221 = vadd.xlane.f32.xlu0 %v220
  %v222 = vpop.xlane.xlu0 %221
  %v223 = vsel %vm53, %v219, 0.0
  %224 = vadd.xlane.f32.xlu0 %v223
  %v225 = vpop.xlane.xlu0 %224
  %v226 = vmul.f32 %v222, %v213
  %v227 = vmul.f32 %v225, %v213
  %v228 = vadd.f32 %v226, 1e-05
  %v229 = vadd.f32 %v227, 1e-05
  %v230 = vrsqrt.pop %v228
  %v231 = vrsqrt.pop %v229
  %v232 = vmul.f32 %v216, %v230
  %v233 = vmul.f32 %v217, %v231
  %v235 = vlaneseq
  %v236 = vshrl.u32 %v235, 7
  %v237 = vsub.s32 0, %v236
  %v238 = vrot.slane %v205, %v237
  %v240 = vmul.f32 %v232, %v238
  %v241 = vmul.f32 %v233, %v238
  %v243 = vlaneseq
  %v244 = vshrl.u32 %v243, 7
  %v245 = vsub.s32 0, %v244
  %v246 = vrot.slane %v206, %v245
  %v248 = vadd.f32 %v240, %v246
  %v249 = vadd.f32 %v241, %v246
  %250 = vst.msk [vmem:[%s7] sm:$0xff] %vm53, %v248
  %251 = vst.msk [vmem:[%s7 + $0x8] sm:$0xff] %vm53, %v249
  // Predicated region
  $region30: #{export_conette_forward.9} parent=0 // pred_check
    _
  $region31: #{export_conette_forward.9} parent=0 // pred_check_branch
    %253 = sbr.rel (0) target = $region33
  $region32: #{export_conette_forward.9} parent=0 // pred_region
    _
  $region33: #{export_conette_forward.9} parent=0 // pred_fallthru
    _
  // Predicated region
  $region34: #{export_conette_forward.9} parent=0 // pred_check
    _
  $region35: #{export_conette_forward.9} parent=0 // pred_check_branch
    %255 = sbr.rel (0) target = $region37
  $region36: #{export_conette_forward.9} parent=0 // pred_region
    _
  $region37: #{export_conette_forward.9} parent=0 // pred_fallthru
    _

// kernel: export_conette_forward.8
$region0: #{export_conette_forward.8}
  #allocation0 [shape = 'u32[]', space=smem, size = 0x4, offset = 0x4, fixed_abs, tag = 'smem constant byte address 0x4 - core index']
  #allocation1 [shape = 'u32[144,128]{1,0:T(1,128)}', space=vmem, size = 0x12000, scoped, tag = 'internal scratch']
  %s0 = inlined_call_operand.vmem [shape: f32[2,8,32], index: 0, kind: input, shape index: {}]
  %s1 = inlined_call_operand.vmem [shape: f32[2,16,32], index: 1, kind: input, shape index: {}]
  %s2 = inlined_call_operand.vmem [shape: bf16[32,32], index: 2, kind: input, shape index: {}]
  %s3 = inlined_call_operand.vmem [shape: f32[1,32], index: 3, kind: input, shape index: {}, may-alias: {3,7,9}]
  %s4 = inlined_call_operand.vmem [shape: bf16[32,64], index: 4, kind: input, shape index: {}]
  %s5 = inlined_call_operand.vmem [shape: f32[1,64], index: 5, kind: input, shape index: {}]
  %s6 = inlined_call_operand.vmem [shape: bf16[32,32], index: 6, kind: input, shape index: {}]
  %s7 = inlined_call_operand.vmem [shape: f32[1,32], index: 7, kind: input, shape index: {}, may-alias: {3,7,9}]
  %s8 = inlined_call_operand.vmem [shape: f32[1,32], index: 8, kind: input, shape index: {}]
  %s9 = inlined_call_operand.vmem [shape: f32[1,32], index: 9, kind: input, shape index: {}, may-alias: {3,7,9}]
  %s10 = inlined_call_operand.vmem [shape: f32[2,8,32], index: 10, kind: output, shape index: {}]
  %s11 = sld [smem:[#allocation0]]
  $region73: #{export_conette_forward.8} parent=0
    _
  %s13 = ssub.s32 1, %s11
  %s14 = scalar_select 0, %s13, %s11
  loop: start=0, step=1, limit=4
  $region2: #{export_conette_forward.8} parent=0 // loop_pre_header
    _
  $region3: #{export_conette_forward.8} parent=0 // loop_header
    %s16 = sphi 0, %s20
    %p17 = scmp.ge.s32.totalorder %s16, 4
    %s26 = sphi 0, %s28
    %s29 = sphi 0, %s26
    %s30 = sphi 0, %s29
    %s46 = sphi 0, %s30
    %s52 = sphi 0, %s54
    %s55 = sphi 0, %s52
    %s56 = sphi 0, %s55
    %s72 = sphi 0, %s56
    %s76 = sphi 0, %s76
    %s78 = sphi 0, %s76
    %s79 = sphi 0, %s78
    %s93 = sphi 0, %s79
    %s97 = sphi 0, %s97
    %s99 = sphi 0, %s97
    %s100 = sphi 0, %s99
    %s114 = sphi 0, %s100
    %s118 = sphi 0, %s118
    %s120 = sphi 0, %s118
    %s121 = sphi 0, %s120
    %s135 = sphi 0, %s121
    %s139 = sphi 0, %s139
    %s141 = sphi 0, %s139
    %s142 = sphi 0, %s141
    %s156 = sphi 0, %s142
    %s160 = sphi 0, %s160
    %s162 = sphi 0, %s160
    %s163 = sphi 0, %s162
    %s177 = sphi 0, %s163
    %s181 = sphi 0, %s181
    %s183 = sphi 0, %s181
    %s184 = sphi 0, %s183
    %s198 = sphi 0, %s184
    %s202 = sphi 0, %s202
    %s204 = sphi 0, %s202
    %s205 = sphi 0, %s204
    %s219 = sphi 0, %s205
    %s223 = sphi 0, %s223
    %s225 = sphi 0, %s223
    %s226 = sphi 0, %s225
    %s240 = sphi 0, %s226
    %s246 = sphi 0, %s248
    %s249 = sphi 0, %s246
    %s250 = sphi 0, %s249
    %s266 = sphi 0, %s250
  $region4: #{export_conette_forward.8} parent=0 // loop_header_branch
    %19 = sbr.rel (%p17) target = $region8
  $region5: #{export_conette_forward.8} parent=0 // loop_body
    %s21 = ssub.s32 %s16, 1
    %s22 = ssub.s32 %s16, 2
    %s23 = sadd.s32 %s16, 1
    %s24 = ssub.s32 %s16, %s23
    %p25 = scmp.eq.s32.totalorder %s24, 0
    %s27 = sadd.s32 %s26, 1
    %s28 = scalar_select %p25, %s26, %s27
    %p31 = pneg %p25
    %p32 = scmp.eq.s32.totalorder %s16, 1
    %p33 = por %p31, %p32
    %p34 = scmp.ne.s32.totalorder %s26, %s29
    %p35 = scmp.eq.s32.totalorder %s16, 0
    %p36 = por %p34, %p35
    %p37 = scmp.ne.s32.totalorder %s26, %s29
    %p38 = scmp.eq.s32.totalorder %s21, 1
    %p39 = por %p37, %p38
    %p40 = scmp.ne.s32.totalorder %s29, %s30
    %p41 = scmp.eq.s32.totalorder %s21, 0
    %p42 = por %p40, %p41
    %p43 = scmp.ne.s32.totalorder %s29, %s30
    %p44 = scmp.eq.s32.totalorder %s22, 1
    %p45 = por %p43, %p44
    %p47 = scmp.ne.s32.totalorder %s30, %s46
    %p48 = scmp.eq.s32.totalorder %s22, 0
    %p49 = por %p47, %p48
    %s50 = ssub.s32 %s16, %s23
    %p51 = scmp.eq.s32.totalorder %s50, 0
    %s53 = sadd.s32 %s52, 1
    %s54 = scalar_select %p51, %s52, %s53
    %p57 = pneg %p51
    %p58 = scmp.eq.s32.totalorder %s16, 1
    %p59 = por %p57, %p58
    %p60 = scmp.ne.s32.totalorder %s52, %s55
    %p61 = scmp.eq.s32.totalorder %s16, 0
    %p62 = por %p60, %p61
    %p63 = scmp.ne.s32.totalorder %s52, %s55
    %p64 = scmp.eq.s32.totalorder %s21, 1
    %p65 = por %p63, %p64
    %p66 = scmp.ne.s32.totalorder %s55, %s56
    %p67 = scmp.eq.s32.totalorder %s21, 0
    %p68 = por %p66, %p67
    %p69 = scmp.ne.s32.totalorder %s55, %s56
    %p70 = scmp.eq.s32.totalorder %s22, 1
    %p71 = por %p69, %p70
    %p73 = scmp.ne.s32.totalorder %s56, %s72
    %p74 = scmp.eq.s32.totalorder %s22, 0
    %p75 = por %p73, %p74
    %s77 = sadd.s32 %s76, 1
    %p80 = scmp.eq.s32.totalorder %s16, 1
    %p81 = scmp.ne.s32.totalorder %s76, %s78
    %p82 = scmp.eq.s32.totalorder %s16, 0
    %p83 = por %p81, %p82
    %p84 = scmp.ne.s32.totalorder %s76, %s78
    %p85 = scmp.eq.s32.totalorder %s21, 1
    %p86 = por %p84, %p85
    %p87 = scmp.ne.s32.totalorder %s78, %s79
    %p88 = scmp.eq.s32.totalorder %s21, 0
    %p89 = por %p87, %p88
    %p90 = scmp.ne.s32.totalorder %s78, %s79
    %p91 = scmp.eq.s32.totalorder %s22, 1
    %p92 = por %p90, %p91
    %p94 = scmp.ne.s32.totalorder %s79, %s93
    %p95 = scmp.eq.s32.totalorder %s22, 0
    %p96 = por %p94, %p95
    %s98 = sadd.s32 %s97, 1
    %p101 = scmp.eq.s32.totalorder %s16, 1
    %p102 = scmp.ne.s32.totalorder %s97, %s99
    %p103 = scmp.eq.s32.totalorder %s16, 0
    %p104 = por %p102, %p103
    %p105 = scmp.ne.s32.totalorder %s97, %s99
    %p106 = scmp.eq.s32.totalorder %s21, 1
    %p107 = por %p105, %p106
    %p108 = scmp.ne.s32.totalorder %s99, %s100
    %p109 = scmp.eq.s32.totalorder %s21, 0
    %p110 = por %p108, %p109
    %p111 = scmp.ne.s32.totalorder %s99, %s100
    %p112 = scmp.eq.s32.totalorder %s22, 1
    %p113 = por %p111, %p112
    %p115 = scmp.ne.s32.totalorder %s100, %s114
    %p116 = scmp.eq.s32.totalorder %s22, 0
    %p117 = por %p115, %p116
    %s119 = sadd.s32 %s118, 1
    %p122 = scmp.eq.s32.totalorder %s16, 1
    %p123 = scmp.ne.s32.totalorder %s118, %s120
    %p124 = scmp.eq.s32.totalorder %s16, 0
    %p125 = por %p123, %p124
    %p126 = scmp.ne.s32.totalorder %s118, %s120
    %p127 = scmp.eq.s32.totalorder %s21, 1
    %p128 = por %p126, %p127
    %p129 = scmp.ne.s32.totalorder %s120, %s121
    %p130 = scmp.eq.s32.totalorder %s21, 0
    %p131 = por %p129, %p130
    %p132 = scmp.ne.s32.totalorder %s120, %s121
    %p133 = scmp.eq.s32.totalorder %s22, 1
    %p134 = por %p132, %p133
    %p136 = scmp.ne.s32.totalorder %s121, %s135
    %p137 = scmp.eq.s32.totalorder %s22, 0
    %p138 = por %p136, %p137
    %s140 = sadd.s32 %s139, 1
    %p143 = scmp.eq.s32.totalorder %s16, 1
    %p144 = scmp.ne.s32.totalorder %s139, %s141
    %p145 = scmp.eq.s32.totalorder %s16, 0
    %p146 = por %p144, %p145
    %p147 = scmp.ne.s32.totalorder %s139, %s141
    %p148 = scmp.eq.s32.totalorder %s21, 1
    %p149 = por %p147, %p148
    %p150 = scmp.ne.s32.totalorder %s141, %s142
    %p151 = scmp.eq.s32.totalorder %s21, 0
    %p152 = por %p150, %p151
    %p153 = scmp.ne.s32.totalorder %s141, %s142
    %p154 = scmp.eq.s32.totalorder %s22, 1
    %p155 = por %p153, %p154
    %p157 = scmp.ne.s32.totalorder %s142, %s156
    %p158 = scmp.eq.s32.totalorder %s22, 0
    %p159 = por %p157, %p158
    %s161 = sadd.s32 %s160, 1
    %p164 = scmp.eq.s32.totalorder %s16, 1
    %p165 = scmp.ne.s32.totalorder %s160, %s162
    %p166 = scmp.eq.s32.totalorder %s16, 0
    %p167 = por %p165, %p166
    %p168 = scmp.ne.s32.totalorder %s160, %s162
    %p169 = scmp.eq.s32.totalorder %s21, 1
    %p170 = por %p168, %p169
    %p171 = scmp.ne.s32.totalorder %s162, %s163
    %p172 = scmp.eq.s32.totalorder %s21, 0
    %p173 = por %p171, %p172
    %p174 = scmp.ne.s32.totalorder %s162, %s163
    %p175 = scmp.eq.s32.totalorder %s22, 1
    %p176 = por %p174, %p175
    %p178 = scmp.ne.s32.totalorder %s163, %s177
    %p179 = scmp.eq.s32.totalorder %s22, 0
    %p180 = por %p178, %p179
    %s182 = sadd.s32 %s181, 1
    %p185 = scmp.eq.s32.totalorder %s16, 1
    %p186 = scmp.ne.s32.totalorder %s181, %s183
    %p187 = scmp.eq.s32.totalorder %s16, 0
    %p188 = por %p186, %p187
    %p189 = scmp.ne.s32.totalorder %s181, %s183
    %p190 = scmp.eq.s32.totalorder %s21, 1
    %p191 = por %p189, %p190
    %p192 = scmp.ne.s32.totalorder %s183, %s184
    %p193 = scmp.eq.s32.totalorder %s21, 0
    %p194 = por %p192, %p193
    %p195 = scmp.ne.s32.totalorder %s183, %s184
    %p196 = scmp.eq.s32.totalorder %s22, 1
    %p197 = por %p195, %p196
    %p199 = scmp.ne.s32.totalorder %s184, %s198
    %p200 = scmp.eq.s32.totalorder %s22, 0
    %p201 = por %p199, %p200
    %s203 = sadd.s32 %s202, 1
    %p206 = scmp.eq.s32.totalorder %s16, 1
    %p207 = scmp.ne.s32.totalorder %s202, %s204
    %p208 = scmp.eq.s32.totalorder %s16, 0
    %p209 = por %p207, %p208
    %p210 = scmp.ne.s32.totalorder %s202, %s204
    %p211 = scmp.eq.s32.totalorder %s21, 1
    %p212 = por %p210, %p211
    %p213 = scmp.ne.s32.totalorder %s204, %s205
    %p214 = scmp.eq.s32.totalorder %s21, 0
    %p215 = por %p213, %p214
    %p216 = scmp.ne.s32.totalorder %s204, %s205
    %p217 = scmp.eq.s32.totalorder %s22, 1
    %p218 = por %p216, %p217
    %p220 = scmp.ne.s32.totalorder %s205, %s219
    %p221 = scmp.eq.s32.totalorder %s22, 0
    %p222 = por %p220, %p221
    %s224 = sadd.s32 %s223, 1
    %p227 = scmp.eq.s32.totalorder %s16, 1
    %p228 = scmp.ne.s32.totalorder %s223, %s225
    %p229 = scmp.eq.s32.totalorder %s16, 0
    %p230 = por %p228, %p229
    %p231 = scmp.ne.s32.totalorder %s223, %s225
    %p232 = scmp.eq.s32.totalorder %s21, 1
    %p233 = por %p231, %p232
    %p234 = scmp.ne.s32.totalorder %s225, %s226
    %p235 = scmp.eq.s32.totalorder %s21, 0
    %p236 = por %p234, %p235
    %p237 = scmp.ne.s32.totalorder %s225, %s226
    %p238 = scmp.eq.s32.totalorder %s22, 1
    %p239 = por %p237, %p238
    %p241 = scmp.ne.s32.totalorder %s226, %s240
    %p242 = scmp.eq.s32.totalorder %s22, 0
    %p243 = por %p241, %p242
    %s244 = ssub.s32 %s16, %s23
    %p245 = scmp.eq.s32.totalorder %s244, 0
    %s247 = sadd.s32 %s246, 1
    %s248 = scalar_select %p245, %s246, %s247
    %p251 = pneg %p245
    %p252 = scmp.eq.s32.totalorder %s16, 1
    %p253 = por %p251, %p252
    %p254 = scmp.ne.s32.totalorder %s246, %s249
    %p255 = scmp.eq.s32.totalorder %s16, 0
    %p256 = por %p254, %p255
    %p257 = scmp.ne.s32.totalorder %s246, %s249
    %p258 = scmp.eq.s32.totalorder %s21, 1
    %p259 = por %p257, %p258
    %p260 = scmp.ne.s32.totalorder %s249, %s250
    %p261 = scmp.eq.s32.totalorder %s21, 0
    %p262 = por %p260, %p261
    %p263 = scmp.ne.s32.totalorder %s249, %s250
    %p264 = scmp.eq.s32.totalorder %s22, 1
    %p265 = por %p263, %p264
    %p267 = scmp.ne.s32.totalorder %s250, %s266
    %p268 = scmp.eq.s32.totalorder %s22, 0
    %p269 = por %p267, %p268
    %p270 = scmp.le.s32.totalorder 1, %s16
    %p271 = scmp.lt.s32.totalorder %s16, 3
    %p272 = pnand %p270, %p271
    %p273 = pneg %p272
    // Predicated region
    $region9: #{export_conette_forward.8} parent=5 // pred_check
      _
    $region10: #{export_conette_forward.8} parent=5 // pred_check_branch
      %275 = sbr.rel (%p272) target = $region12
    $region11: #{export_conette_forward.8} parent=5 // pred_region
      %s276 = ssub.s32 %s16, 1
      // Predicated region
      $region13: #{export_conette_forward.8} parent=11 // pred_check
        %p277 = pneg %p89
      $region14: #{export_conette_forward.8} parent=11 // pred_check_branch
        %279 = sbr.rel (%p277) target = $region16
      $region15: #{export_conette_forward.8} parent=11 // pred_region
        _
      $region16: #{export_conette_forward.8} parent=11 // pred_fallthru
        _
      // Predicated region
      $region17: #{export_conette_forward.8} parent=11 // pred_check
        %p280 = pneg %p110
      $region18: #{export_conette_forward.8} parent=11 // pred_check_branch
        %282 = sbr.rel (%p280) target = $region20
      $region19: #{export_conette_forward.8} parent=11 // pred_region
        _
      $region20: #{export_conette_forward.8} parent=11 // pred_fallthru
        _
      // Predicated region
      $region21: #{export_conette_forward.8} parent=11 // pred_check
        %p283 = pneg %p131
      $region22: #{export_conette_forward.8} parent=11 // pred_check_branch
        %285 = sbr.rel (%p283) target = $region24
      $region23: #{export_conette_forward.8} parent=11 // pred_region
        _
      $region24: #{export_conette_forward.8} parent=11 // pred_fallthru
        _
      // Predicated region
      $region25: #{export_conette_forward.8} parent=11 // pred_check
        %p286 = pneg %p152
      $region26: #{export_conette_forward.8} parent=11 // pred_check_branch
        %288 = sbr.rel (%p286) target = $region28
      $region27: #{export_conette_forward.8} parent=11 // pred_region
        _
      $region28: #{export_conette_forward.8} parent=11 // pred_fallthru
        _
      // Predicated region
      $region29: #{export_conette_forward.8} parent=11 // pred_check
        %p289 = pneg %p173
      $region30: #{export_conette_forward.8} parent=11 // pred_check_branch
        %291 = sbr.rel (%p289) target = $region32
      $region31: #{export_conette_forward.8} parent=11 // pred_region
        _
      $region32: #{export_conette_forward.8} parent=11 // pred_fallthru
        _
      // Predicated region
      $region33: #{export_conette_forward.8} parent=11 // pred_check
        %p292 = pneg %p194
      $region34: #{export_conette_forward.8} parent=11 // pred_check_branch
        %294 = sbr.rel (%p292) target = $region36
      $region35: #{export_conette_forward.8} parent=11 // pred_region
        _
      $region36: #{export_conette_forward.8} parent=11 // pred_fallthru
        _
      // Predicated region
      $region37: #{export_conette_forward.8} parent=11 // pred_check
        %p295 = pneg %p215
      $region38: #{export_conette_forward.8} parent=11 // pred_check_branch
        %297 = sbr.rel (%p295) target = $region40
      $region39: #{export_conette_forward.8} parent=11 // pred_region
        _
      $region40: #{export_conette_forward.8} parent=11 // pred_fallthru
        _
      // Predicated region
      $region41: #{export_conette_forward.8} parent=11 // pred_check
        %p298 = pneg %p236
      $region42: #{export_conette_forward.8} parent=11 // pred_check_branch
        %300 = sbr.rel (%p298) target = $region44
      $region43: #{export_conette_forward.8} parent=11 // pred_region
        _
      $region44: #{export_conette_forward.8} parent=11 // pred_fallthru
        _
    $region12: #{export_conette_forward.8} parent=5 // pred_fallthru
      _
    %p301 = scmp.lt.s32.totalorder %s16, 2
    // Predicated region
    $region45: #{export_conette_forward.8} parent=5 // pred_check
      %p302 = pneg %p301
    $region46: #{export_conette_forward.8} parent=5 // pred_check_branch
      %304 = sbr.rel (%p302) target = $region48
    $region47: #{export_conette_forward.8} parent=5 // pred_region
      // Predicated region
      $region49: #{export_conette_forward.8} parent=47 // pred_check
        %p305 = pneg %p36
      $region50: #{export_conette_forward.8} parent=47 // pred_check_branch
        %307 = sbr.rel (%p305) target = $region52
      $region51: #{export_conette_forward.8} parent=47 // pred_region
        %p308 = scmp.lt.s32.totalorder %s16, 1
        %s309 = scalar_select %p308, %s16, 1
        %s310 = smul.addr %s309, 8
        %s311 = scalar_lea.vmem %s0, %s310
      $region52: #{export_conette_forward.8} parent=47 // pred_fallthru
        _
      // Predicated region
      $region53: #{export_conette_forward.8} parent=47 // pred_check
        %p312 = pneg %p62
      $region54: #{export_conette_forward.8} parent=47 // pred_check_branch
        %314 = sbr.rel (%p312) target = $region56
      $region55: #{export_conette_forward.8} parent=47 // pred_region
        %p315 = scmp.lt.s32.totalorder %s16, 1
        %s316 = scalar_select %p315, %s16, 1
        %s317 = smul.addr %s316, 2
        %s318 = smul.addr %s317, 8
        %s319 = scalar_lea.vmem %s1, %s318
      $region56: #{export_conette_forward.8} parent=47 // pred_fallthru
        _
    $region48: #{export_conette_forward.8} parent=5 // pred_fallthru
      _
    %p320 = scmp.le.s32.totalorder 1, %s16
    %p321 = scmp.lt.s32.totalorder %s16, 3
    %p322 = pnand %p320, %p321
    %p323 = pneg %p322
    // Predicated region
    $region57: #{export_conette_forward.8} parent=5 // pred_check
      _
    $region58: #{export_conette_forward.8} parent=5 // pred_check_branch
      %325 = sbr.rel (%p322) target = $region60
    $region59: #{export_conette_forward.8} parent=5 // pred_region
      %s326 = ssub.s32 %s16, 1
      %p327 = scmp.lt.s32.totalorder %s21, 1
      %s328 = scalar_select %p327, %s21, 1
      %s329 = smul.addr %s328, 8
      %s330 = scalar_lea.vmem %s0, %s329
      %p331 = pneg %p42
      %p332 = pneg %p39
      %p333 = scmp.lt.s32.totalorder %s21, 1
      %s334 = scalar_select %p333, %s21, 1
      %s335 = smul.addr %s334, 2
      %s336 = smul.addr %s335, 8
      %s337 = scalar_lea.vmem %s1, %s336
      %p338 = pneg %p68
      %p339 = pneg %p65
      %p340 = pneg %p89
      %p341 = pneg %p86
      %p342 = pneg %p110
      %p343 = pneg %p107
      %p344 = pneg %p131
      %p345 = pneg %p128
      %p346 = pneg %p152
      %p347 = pneg %p149
      %p348 = pneg %p173
      %p349 = pneg %p170
      %p350 = pneg %p194
      %p351 = pneg %p191
      %p352 = pneg %p215
      %p353 = pneg %p212
      %p354 = pneg %p236
      %p355 = pneg %p233
      %p356 = pneg %p262
      %p357 = pneg %p259
      %p358 = scmp.lt.s32.totalorder %s21, 1
      %s359 = scalar_select %p358, %s21, 1
      %s360 = smul.addr %s359, 8
      %s361 = scalar_lea.vmem %s10, %s360
      %p362 = scmp.lt.s32.totalorder %s21, 1
      %s363 = scalar_select %p362, %s21, 1
      %s364 = smul.addr %s363, 8
      %s365 = scalar_lea.vmem %s0, %s364
      %p366 = scmp.lt.s32.totalorder %s21, 1
      %s367 = scalar_select %p366, %s21, 1
      %s368 = smul.addr %s367, 2
      %s369 = smul.addr %s368, 8
      %s370 = scalar_lea.vmem %s1, %s369
      %p371 = scmp.lt.s32.totalorder %s21, 1
      %s372 = scalar_select %p371, %s21, 1
      %s373 = smul.addr %s372, 8
      %s374 = scalar_lea.vmem %s10, %s373
      %v376 = vld [vmem:[%s365] sm:$0xff]
      %v377 = vld [vmem:[%s370] sm:$0xff]
      %v378 = vld [vmem:[%s370 + $0x8] sm:$0xff]
      %v379 = vpack.c.bf16 %v376, %v376
      %v380 = vld [vmem:[%s2] sm:$0xf]
      %v381 = vld [vmem:[%s2 + $0x4] sm:$0xf]
      %v382 = vld [vmem:[%s2 + $0x8] sm:$0xf]
      %v383 = vld [vmem:[%s2 + $0xc] sm:$0xf]
      %v384 = vld [vmem:[%s3] sm:$0x1]
      %v386 = vlaneseq
      %v387 = vshrl.u32 %v386, 7
      %v388 = vsub.s32 0, %v387
      %v389 = vrot.slane %v384, %v388
      %v395 = vunpack.c.l.b16 %v380
      %v396 = vunpack.c.l.b16 %v381
      %v397 = vunpack.c.l.b16 %v382
      %v398 = vunpack.c.l.b16 %v383
      %v399 = vpack.c.b16 %v396, %v395
      %v400 = vpack.c.b16 %v398, %v397
      %vm403 = vcmask 261120
      %v405 = vsel %vm403, %v379, 0
      %407 = vmatprep.subr.bf16.mxu0 0
      %408 = vmatpush1.bf16.msra.mxu0 %v399
      %409 = vmatprep.subr.bf16.mxu0 0
      %410 = vmatpush1.bf16.msra.mxu0 %v400
      %411 = vmatprep.subr.bf16.mxu0 0
      %412 = vmatpush1.bf16.msra.mxu0 0
      %413 = vmatprep.subr.bf16.mxu0 0
      %414 = vmatpush1.bf16.msra.mxu0 0
      %415 = vmatprep.subr.bf16.mxu0 0
      %416 = vmatpush1.bf16.msra.mxu0 0
      %417 = vmatprep.subr.bf16.mxu0 0
      %418 = vmatpush1.bf16.msra.mxu0 0
      %419 = vmatprep.subr.bf16.mxu0 0
      %420 = vmatpush1.bf16.msra.mxu0 0
      %421 = vmatprep.subr.bf16.mxu0 0
      %422 = vmatpush1.bf16.msra.mxu0 0
      %423 = vmatprep.subr.bf16.mxu0 0
      %424 = vmatpush1.bf16.msra.mxu0 0
      %425 = vmatprep.subr.bf16.mxu0 0
      %426 = vmatpush1.bf16.msra.mxu0 0
      %427 = vmatprep.subr.bf16.mxu0 0
      %428 = vmatpush1.bf16.msra.mxu0 0
      %429 = vmatprep.subr.bf16.mxu0 0
      %430 = vmatpush1.bf16.msra.mxu0 0
      %431 = vmatprep.subr.bf16.mxu0 0
      %432 = vmatpush1.bf16.msra.mxu0 0
      %433 = vmatprep.subr.bf16.mxu0 0
      %434 = vmatpush1.bf16.msra.mxu0 0
      %435 = vmatprep.subr.bf16.mxu0 0
      %436 = vmatpush1.bf16.msra.mxu0 0
      %437 = vmatprep.subr.bf16.mxu0 0
      %438 = vmatpush1.bf16.msra.mxu0 0
      %439 = vmatprep.mubr.bf16.mxu0 0
      %440 = vmatmul.mubr.bf16.gmra.mrb[0].mxu0 %v405
      %v441 = vpop.f32.mrb[0].mxu0
      %v442 = vadd.f32 %v389, %v441
      %v443 = vpop.f32.mrb[0].mxu0
      %v444 = vpop.f32.mrb[0].mxu0
      %v445 = vpop.f32.mrb[0].mxu0
      %446 = vdwg.mxu0
      %v447 = vpack.c.bf16 %v378, %v377
      %v448 = vld [vmem:[%s4] sm:$0xf]
      %v449 = vld [vmem:[%s4 + $0x4] sm:$0xf]
      %v450 = vld [vmem:[%s4 + $0x8] sm:$0xf]
      %v451 = vld [vmem:[%s4 + $0xc] sm:$0xf]
      %v452 = vld [vmem:[%s5] sm:$0x1]
      %v454 = vlaneseq
      %v455 = vshrl.u32 %v454, 7
      %v456 = vsub.s32 0, %v455
      %v457 = vrot.slane %v452, %v456
      %v463 = vunpack.c.l.b16 %v448
      %v464 = vunpack.c.l.b16 %v449
      %v465 = vunpack.c.l.b16 %v450
      %v466 = vunpack.c.l.b16 %v451
      %v467 = vpack.c.b16 %v464, %v463
      %v468 = vpack.c.b16 %v466, %v465
      %v472 = vsel %vm403, %v447, 0
      %474 = vmatprep.subr.bf16.mxu0 0
      %475 = vmatpush1.bf16.msra.mxu0 %v467
      %476 = vmatprep.subr.bf16.mxu0 0
      %477 = vmatpush1.bf16.msra.mxu0 %v468
      %478 = vmatprep.subr.bf16.mxu0 0
      %479 = vmatpush1.bf16.msra.mxu0 0
      %480 = vmatprep.subr.bf16.mxu0 0
      %481 = vmatpush1.bf16.msra.mxu0 0
      %482 = vmatprep.subr.bf16.mxu0 0
      %483 = vmatpush1.bf16.msra.mxu0 0
      %484 = vmatprep.subr.bf16.mxu0 0
      %485 = vmatpush1.bf16.msra.mxu0 0
      %486 = vmatprep.subr.bf16.mxu0 0
      %487 = vmatpush1.bf16.msra.mxu0 0
      %488 = vmatprep.subr.bf16.mxu0 0
      %489 = vmatpush1.bf16.msra.mxu0 0
      %490 = vmatprep.subr.bf16.mxu0 0
      %491 = vmatpush1.bf16.msra.mxu0 0
      %492 = vmatprep.subr.bf16.mxu0 0
      %493 = vmatpush1.bf16.msra.mxu0 0
      %494 = vmatprep.subr.bf16.mxu0 0
      %495 = vmatpush1.bf16.msra.mxu0 0
      %496 = vmatprep.subr.bf16.mxu0 0
      %497 = vmatpush1.bf16.msra.mxu0 0
      %498 = vmatprep.subr.bf16.mxu0 0
      %499 = vmatpush1.bf16.msra.mxu0 0
      %500 = vmatprep.subr.bf16.mxu0 0
      %501 = vmatpush1.bf16.msra.mxu0 0
      %502 = vmatprep.subr.bf16.mxu0 0
      %503 = vmatpush1.bf16.msra.mxu0 0
      %504 = vmatprep.subr.bf16.mxu0 0
      %505 = vmatpush1.bf16.msra.mxu0 0
      %506 = vmatprep.mubr.bf16.mxu0 0
      %507 = vmatmul.mubr.bf16.gmra.mrb[0].mxu0 %v472
      %v508 = vpop.f32.mrb[0].mxu0
      %v509 = vadd.f32 %v457, %v508
      %v510 = vpop.f32.mrb[0].mxu0
      %v511 = vpop.f32.mrb[0].mxu0
      %v512 = vadd.f32 %v457, %v511
      %v513 = vpop.f32.mrb[0].mxu0
      %514 = vdwg.mxu0
      %vm515 = vcmask 64512
      %v517 = vsel %vm515, %v442, 0
      %v520 = vsel %vm515, %v509, 0
      %v523 = vsel %vm515, %v512, 0
      %525 = vmatprep.subr.mxu0 0.0
      %526 = vmatpush1.xpose.msra.mxu0 %v520
      %527 = vmatprep.subr.mxu0 0.0
      %528 = vmatpush1.xpose.msra.mxu0 %v523
      %529 = vmatprep.subr.mxu0 0.0
      %530 = vmatpush1.xpose.msra.mxu0 0.0
      %531 = vmatprep.subr.mxu0 0.0
      %532 = vmatpush1.xpose.msra.mxu0 0.0
      %533 = vmatprep.subr.mxu0 0.0
      %534 = vmatpush1.xpose.msra.mxu0 0.0
      %535 = vmatprep.subr.mxu0 0.0
      %536 = vmatpush1.xpose.msra.mxu0 0.0
      %537 = vmatprep.subr.mxu0 0.0
      %538 = vmatpush1.xpose.msra.mxu0 0.0
      %539 = vmatprep.subr.mxu0 0.0
      %540 = vmatpush1.xpose.msra.mxu0 0.0
      %541 = vmatprep.subr.mxu0 0.0
      %542 = vmatpush1.xpose.msra.mxu0 0.0
      %543 = vmatprep.subr.mxu0 0.0
      %544 = vmatpush1.xpose.msra.mxu0 0.0
      %545 = vmatprep.subr.mxu0 0.0
      %546 = vmatpush1.xpose.msra.mxu0 0.0
      %547 = vmatprep.subr.mxu0 0.0
      %548 = vmatpush1.xpose.msra.mxu0 0.0
      %549 = vmatprep.subr.mxu0 0.0
      %550 = vmatpush1.xpose.msra.mxu0 0.0
      %551 = vmatprep.subr.mxu0 0.0
      %552 = vmatpush1.xpose.msra.mxu0 0.0
      %553 = vmatprep.subr.mxu0 0.0
      %554 = vmatpush1.xpose.msra.mxu0 0.0
      %555 = vmatprep.subr.mxu0 0.0
      %556 = vmatpush1.xpose.msra.mxu0 0.0
      %557 = vmatprep.subr.mxu0 0.0
      %558 = vmatpush1.xpose.msra.mxu0 0.0
      %559 = vmatprep.subr.mxu0 0.0
      %560 = vmatpush1.xpose.msra.mxu0 0.0
      %561 = vmatprep.subr.mxu0 0.0
      %562 = vmatpush1.xpose.msra.mxu0 0.0
      %563 = vmatprep.subr.mxu0 0.0
      %564 = vmatpush1.xpose.msra.mxu0 0.0
      %565 = vmatprep.subr.mxu0 0.0
      %566 = vmatpush1.xpose.msra.mxu0 0.0
      %567 = vmatprep.subr.mxu0 0.0
      %568 = vmatpush1.xpose.msra.mxu0 0.0
      %569 = vmatprep.subr.mxu0 0.0
      %570 = vmatpush1.xpose.msra.mxu0 0.0
      %571 = vmatprep.subr.mxu0 0.0
      %572 = vmatpush1.xpose.msra.mxu0 0.0
      %573 = vmatprep.subr.mxu0 0.0
      %574 = vmatpush1.xpose.msra.mxu0 0.0
      %575 = vmatprep.subr.mxu0 0.0
      %576 = vmatpush1.xpose.msra.mxu0 0.0
      %577 = vmatprep.subr.mxu0 0.0
      %578 = vmatpush1.xpose.msra.mxu0 0.0
      %579 = vmatprep.subr.mxu0 0.0
      %580 = vmatpush1.xpose.msra.mxu0 0.0
      %581 = vmatprep.subr.mxu0 0.0
      %582 = vmatpush1.xpose.msra.mxu0 0.0
      %583 = vmatprep.subr.mxu0 0.0
      %584 = vmatpush1.xpose.msra.mxu0 0.0
      %585 = vmatprep.subr.mxu0 0.0
      %586 = vmatpush1.xpose.msra.mxu0 0.0
      %587 = vmatprep.subr.mxu0 0.0
      %588 = vmatpush1.xpose.msra.mxu0 0.0
      %589 = vmatprep.mubr.f32.mxu0 0.0
      %590 = vmatmul.mubr.f32.gmra.mrb[0].mxu0 %v517
      %v591 = vpop.f32.mrb[0].mxu0
      %v592 = vadd.f32 0.0, %v591
      %v593 = vpop.f32.mrb[0].mxu0
      %594 = vdwg.mxu0
      %v595 = vmul.f32 %v592, 0.35355338
      %vm596 = vcmask 130048
      %v597 = vsel %vm596, %v595, -inf
      %598 = vmax.xlane.f32.xlu0 %v597
      %v599 = vpop.xlane.xlu0 %598
      %v600 = vsub.f32 %v595, %v599
      %v601 = vmul.f32 %v600, 1.442695
      %v602 = vpow.pop %v601
      %v603 = vsel %vm596, %v602, 0.0
      %604 = vadd.xlane.f32.xlu0 %v603
      %v605 = vpop.xlane.xlu0 %604
      %v606 = vrcp.pop %v605
      %v607 = vmul.f32 %v602, %v606
      %608 = vrot.lane.b32.xlu0 %v509, 96
      %v609 = vpop.permute.xlu0 %608
      %610 = vrot.lane.b32.xlu0 %v512, 96
      %v611 = vpop.permute.xlu0 %610
      %v615 = vsel %vm596, %v607, 0
      %617 = vmatprep.subr.mxu0 0.0
      %618 = vmatpush1.msra.mxu0 %v609
      %619 = vmatprep.subr.mxu0 0.0
      %620 = vmatpush1.msra.mxu0 %v611
      %621 = vmatprep.subr.mxu0 0.0
      %622 = vmatpush1.msra.mxu0 0.0
      %623 = vmatprep.subr.mxu0 0.0
      %624 = vmatpush1.msra.mxu0 0.0
      %625 = vmatprep.subr.mxu0 0.0
      %626 = vmatpush1.msra.mxu0 0.0
      %627 = vmatprep.subr.mxu0 0.0
      %628 = vmatpush1.msra.mxu0 0.0
      %629 = vmatprep.subr.mxu0 0.0
      %630 = vmatpush1.msra.mxu0 0.0
      %631 = vmatprep.subr.mxu0 0.0
      %632 = vmatpush1.msra.mxu0 0.0
      %633 = vmatprep.subr.mxu0 0.0
      %634 = vmatpush1.msra.mxu0 0.0
      %635 = vmatprep.subr.mxu0 0.0
      %636 = vmatpush1.msra.mxu0 0.0
      %637 = vmatprep.subr.mxu0 0.0
      %638 = vmatpush1.msra.mxu0 0.0
      %639 = vmatprep.subr.mxu0 0.0
      %640 = vmatpush1.msra.mxu0 0.0
      %641 = vmatprep.subr.mxu0 0.0
      %642 = vmatpush1.msra.mxu0 0.0
      %643 = vmatprep.subr.mxu0 0.0
      %644 = vmatpush1.msra.mxu0 0.0
      %645 = vmatprep.subr.mxu0 0.0
      %646 = vmatpush1.msra.mxu0 0.0
      %647 = vmatprep.subr.mxu0 0.0
      %648 = vmatpush1.msra.mxu0 0.0
      %649 = vmatprep.subr.mxu0 0.0
      %650 = vmatpush1.msra.mxu0 0.0
      %651 = vmatprep.subr.mxu0 0.0
      %652 = vmatpush1.msra.mxu0 0.0
      %653 = vmatprep.subr.mxu0 0.0
      %654 = vmatpush1.msra.mxu0 0.0
      %655 = vmatprep.subr.mxu0 0.0
      %656 = vmatpush1.msra.mxu0 0.0
      %657 = vmatprep.subr.mxu0 0.0
      %658 = vmatpush1.msra.mxu0 0.0
      %659 = vmatprep.subr.mxu0 0.0
      %660 = vmatpush1.msra.mxu0 0.0
      %661 = vmatprep.subr.mxu0 0.0
      %662 = vmatpush1.msra.mxu0 0.0
      %663 = vmatprep.subr.mxu0 0.0
      %664 = vmatpush1.msra.mxu0 0.0
      %665 = vmatprep.subr.mxu0 0.0
      %666 = vmatpush1.msra.mxu0 0.0
      %667 = vmatprep.subr.mxu0 0.0
      %668 = vmatpush1.msra.mxu0 0.0
      %669 = vmatprep.subr.mxu0 0.0
      %670 = vmatpush1.msra.mxu0 0.0
      %671 = vmatprep.subr.mxu0 0.0
      %672 = vmatpush1.msra.mxu0 0.0
      %673 = vmatprep.subr.mxu0 0.0
      %674 = vmatpush1.msra.mxu0 0.0
      %675 = vmatprep.subr.mxu0 0.0
      %676 = vmatpush1.msra.mxu0 0.0
      %677 = vmatprep.subr.mxu0 0.0
      %678 = vmatpush1.msra.mxu0 0.0
      %679 = vmatprep.subr.mxu0 0.0
      %680 = vmatpush1.msra.mxu0 0.0
      %681 = vmatprep.mubr.f32.mxu0 0.0
      %682 = vmatmul.mubr.f32.gmra.mrb[0].mxu0 %v615
      %v683 = vpop.f32.mrb[0].mxu0
      %v684 = vadd.f32 0.0, %v683
      %v685 = vpop.f32.mrb[0].mxu0
      %686 = vdwg.mxu0
      %687 = vrot.lane.b32.xlu0 %v442, 120
      %v688 = vpop.permute.xlu0 %687
      %689 = vrot.lane.b32.xlu0 %v509, 120
      %v690 = vpop.permute.xlu0 %689
      %691 = vrot.lane.b32.xlu0 %v512, 120
      %v692 = vpop.permute.xlu0 %691
      %v693 = vsel %vm515, %v688, 0
      %v695 = vsel %vm515, %v690, 0
      %v697 = vsel %vm515, %v692, 0
      %699 = vmatprep.subr.mxu0 0.0
      %700 = vmatpush1.xpose.msra.mxu0 %v695
      %701 = vmatprep.subr.mxu0 0.0
      %702 = vmatpush1.xpose.msra.mxu0 %v697
      %703 = vmatprep.subr.mxu0 0.0
      %704 = vmatpush1.xpose.msra.mxu0 0.0
      %705 = vmatprep.subr.mxu0 0.0
      %706 = vmatpush1.xpose.msra.mxu0 0.0
      %707 = vmatprep.subr.mxu0 0.0
      %708 = vmatpush1.xpose.msra.mxu0 0.0
      %709 = vmatprep.subr.mxu0 0.0
      %710 = vmatpush1.xpose.msra.mxu0 0.0
      %711 = vmatprep.subr.mxu0 0.0
      %712 = vmatpush1.xpose.msra.mxu0 0.0
      %713 = vmatprep.subr.mxu0 0.0
      %714 = vmatpush1.xpose.msra.mxu0 0.0
      %715 = vmatprep.subr.mxu0 0.0
      %716 = vmatpush1.xpose.msra.mxu0 0.0
      %717 = vmatprep.subr.mxu0 0.0
      %718 = vmatpush1.xpose.msra.mxu0 0.0
      %719 = vmatprep.subr.mxu0 0.0
      %720 = vmatpush1.xpose.msra.mxu0 0.0
      %721 = vmatprep.subr.mxu0 0.0
      %722 = vmatpush1.xpose.msra.mxu0 0.0
      %723 = vmatprep.subr.mxu0 0.0
      %724 = vmatpush1.xpose.msra.mxu0 0.0
      %725 = vmatprep.subr.mxu0 0.0
      %726 = vmatpush1.xpose.msra.mxu0 0.0
      %727 = vmatprep.subr.mxu0 0.0
      %728 = vmatpush1.xpose.msra.mxu0 0.0
      %729 = vmatprep.subr.mxu0 0.0
      %730 = vmatpush1.xpose.msra.mxu0 0.0
      %731 = vmatprep.subr.mxu0 0.0
      %732 = vmatpush1.xpose.msra.mxu0 0.0
      %733 = vmatprep.subr.mxu0 0.0
      %734 = vmatpush1.xpose.msra.mxu0 0.0
      %735 = vmatprep.subr.mxu0 0.0
      %736 = vmatpush1.xpose.msra.mxu0 0.0
      %737 = vmatprep.subr.mxu0 0.0
      %738 = vmatpush1.xpose.msra.mxu0 0.0
      %739 = vmatprep.subr.mxu0 0.0
      %740 = vmatpush1.xpose.msra.mxu0 0.0
      %741 = vmatprep.subr.mxu0 0.0
      %742 = vmatpush1.xpose.msra.mxu0 0.0
      %743 = vmatprep.subr.mxu0 0.0
      %744 = vmatpush1.xpose.msra.mxu0 0.0
      %745 = vmatprep.subr.mxu0 0.0
      %746 = vmatpush1.xpose.msra.mxu0 0.0
      %747 = vmatprep.subr.mxu0 0.0
      %748 = vmatpush1.xpose.msra.mxu0 0.0
      %749 = vmatprep.subr.mxu0 0.0
      %750 = vmatpush1.xpose.msra.mxu0 0.0
      %751 = vmatprep.subr.mxu0 0.0
      %752 = vmatpush1.xpose.msra.mxu0 0.0
      %753 = vmatprep.subr.mxu0 0.0
      %754 = vmatpush1.xpose.msra.mxu0 0.0
      %755 = vmatprep.subr.mxu0 0.0
      %756 = vmatpush1.xpose.msra.mxu0 0.0
      %757 = vmatprep.subr.mxu0 0.0
      %758 = vmatpush1.xpose.msra.mxu0 0.0
      %759 = vmatprep.subr.mxu0 0.0
      %760 = vmatpush1.xpose.msra.mxu0 0.0
      %761 = vmatprep.subr.mxu0 0.0
      %762 = vmatpush1.xpose.msra.mxu0 0.0
      %763 = vmatprep.mubr.f32.mxu0 0.0
      %764 = vmatmul.mubr.f32.gmra.mrb[0].mxu0 %v693
      %v765 = vpop.f32.mrb[0].mxu0
      %v766 = vadd.f32 0.0, %v765
      %v767 = vpop.f32.mrb[0].mxu0
      %768 = vdwg.mxu0
      %v769 = vmul.f32 %v766, 0.35355338
      %v770 = vsel %vm596, %v769, -inf
      %771 = vmax.xlane.f32.xlu0 %v770
      %v772 = vpop.xlane.xlu0 %771
      %v773 = vsub.f32 %v769, %v772
      %v774 = vmul.f32 %v773, 1.442695
      %v775 = vpow.pop %v774
      %v776 = vsel %vm596, %v775, 0.0
      %777 = vadd.xlane.f32.xlu0 %v776
      %v778 = vpop.xlane.xlu0 %777
      %v779 = vrcp.pop %v778
      %v780 = vmul.f32 %v775, %v779
      %781 = vrot.lane.b32.xlu0 %v509, 88
      %v782 = vpop.permute.xlu0 %781
      %783 = vrot.lane.b32.xlu0 %v512, 88
      %v784 = vpop.permute.xlu0 %783
      %v788 = vsel %vm596, %v780, 0
      %790 = vmatprep.subr.mxu0 0.0
      %791 = vmatpush1.msra.mxu0 %v782
      %792 = vmatprep.subr.mxu0 0.0
      %793 = vmatpush1.msra.mxu0 %v784
      %794 = vmatprep.subr.mxu0 0.0
      %795 = vmatpush1.msra.mxu0 0.0
      %796 = vmatprep.subr.mxu0 0.0
      %797 = vmatpush1.msra.mxu0 0.0
      %798 = vmatprep.subr.mxu0 0.0
      %799 = vmatpush1.msra.mxu0 0.0
      %800 = vmatprep.subr.mxu0 0.0
      %801 = vmatpush1.msra.mxu0 0.0
      %802 = vmatprep.subr.mxu0 0.0
      %803 = vmatpush1.msra.mxu0 0.0
      %804 = vmatprep.subr.mxu0 0.0
      %805 = vmatpush1.msra.mxu0 0.0
      %806 = vmatprep.subr.mxu0 0.0
      %807 = vmatpush1.msra.mxu0 0.0
      %808 = vmatprep.subr.mxu0 0.0
      %809 = vmatpush1.msra.mxu0 0.0
      %810 = vmatprep.subr.mxu0 0.0
      %811 = vmatpush1.msra.mxu0 0.0
      %812 = vmatprep.subr.mxu0 0.0
      %813 = vmatpush1.msra.mxu0 0.0
      %814 = vmatprep.subr.mxu0 0.0
      %815 = vmatpush1.msra.mxu0 0.0
      %816 = vmatprep.subr.mxu0 0.0
      %817 = vmatpush1.msra.mxu0 0.0
      %818 = vmatprep.subr.mxu0 0.0
      %819 = vmatpush1.msra.mxu0 0.0
      %820 = vmatprep.subr.mxu0 0.0
      %821 = vmatpush1.msra.mxu0 0.0
      %822 = vmatprep.subr.mxu0 0.0
      %823 = vmatpush1.msra.mxu0 0.0
      %824 = vmatprep.subr.mxu0 0.0
      %825 = vmatpush1.msra.mxu0 0.0
      %826 = vmatprep.subr.mxu0 0.0
      %827 = vmatpush1.msra.mxu0 0.0
      %828 = vmatprep.subr.mxu0 0.0
      %829 = vmatpush1.msra.mxu0 0.0
      %830 = vmatprep.subr.mxu0 0.0
      %831 = vmatpush1.msra.mxu0 0.0
      %832 = vmatprep.subr.mxu0 0.0
      %833 = vmatpush1.msra.mxu0 0.0
      %834 = vmatprep.subr.mxu0 0.0
      %835 = vmatpush1.msra.mxu0 0.0
      %836 = vmatprep.subr.mxu0 0.0
      %837 = vmatpush1.msra.mxu0 0.0
      %838 = vmatprep.subr.mxu0 0.0
      %839 = vmatpush1.msra.mxu0 0.0
      %840 = vmatprep.subr.mxu0 0.0
      %841 = vmatpush1.msra.mxu0 0.0
      %842 = vmatprep.subr.mxu0 0.0
      %843 = vmatpush1.msra.mxu0 0.0
      %844 = vmatprep.subr.mxu0 0.0
      %845 = vmatpush1.msra.mxu0 0.0
      %846 = vmatprep.subr.mxu0 0.0
      %847 = vmatpush1.msra.mxu0 0.0
      %848 = vmatprep.subr.mxu0 0.0
      %849 = vmatpush1.msra.mxu0 0.0
      %850 = vmatprep.subr.mxu0 0.0
      %851 = vmatpush1.msra.mxu0 0.0
      %852 = vmatprep.subr.mxu0 0.0
      %853 = vmatpush1.msra.mxu0 0.0
      %854 = vmatprep.mubr.f32.mxu0 0.0
      %855 = vmatmul.mubr.f32.gmra.mrb[0].mxu0 %v788
      %v856 = vpop.f32.mrb[0].mxu0
      %v857 = vadd.f32 0.0, %v856
      %v858 = vpop.f32.mrb[0].mxu0
      %859 = vdwg.mxu0
      %860 = vrot.lane.b32.xlu0 %v442, 112
      %v861 = vpop.permute.xlu0 %860
      %862 = vrot.lane.b32.xlu0 %v509, 112
      %v863 = vpop.permute.xlu0 %862
      %864 = vrot.lane.b32.xlu0 %v512, 112
      %v865 = vpop.permute.xlu0 %864
      %v866 = vsel %vm515, %v861, 0
      %v868 = vsel %vm515, %v863, 0
      %v870 = vsel %vm515, %v865, 0
      %872 = vmatprep.subr.mxu0 0.0
      %873 = vmatpush1.xpose.msra.mxu0 %v868
      %874 = vmatprep.subr.mxu0 0.0
      %875 = vmatpush1.xpose.msra.mxu0 %v870
      %876 = vmatprep.subr.mxu0 0.0
      %877 = vmatpush1.xpose.msra.mxu0 0.0
      %878 = vmatprep.subr.mxu0 0.0
      %879 = vmatpush1.xpose.msra.mxu0 0.0
      %880 = vmatprep.subr.mxu0 0.0
      %881 = vmatpush1.xpose.msra.mxu0 0.0
      %882 = vmatprep.subr.mxu0 0.0
      %883 = vmatpush1.xpose.msra.mxu0 0.0
      %884 = vmatprep.subr.mxu0 0.0
      %885 = vmatpush1.xpose.msra.mxu0 0.0
      %886 = vmatprep.subr.mxu0 0.0
      %887 = vmatpush1.xpose.msra.mxu0 0.0
      %888 = vmatprep.subr.mxu0 0.0
      %889 = vmatpush1.xpose.msra.mxu0 0.0
      %890 = vmatprep.subr.mxu0 0.0
      %891 = vmatpush1.xpose.msra.mxu0 0.0
      %892 = vmatprep.subr.mxu0 0.0
      %893 = vmatpush1.xpose.msra.mxu0 0.0
      %894 = vmatprep.subr.mxu0 0.0
      %895 = vmatpush1.xpose.msra.mxu0 0.0
      %896 = vmatprep.subr.mxu0 0.0
      %897 = vmatpush1.xpose.msra.mxu0 0.0
      %898 = vmatprep.subr.mxu0 0.0
      %899 = vmatpush1.xpose.msra.mxu0 0.0
      %900 = vmatprep.subr.mxu0 0.0
      %901 = vmatpush1.xpose.msra.mxu0 0.0
      %902 = vmatprep.subr.mxu0 0.0
      %903 = vmatpush1.xpose.msra.mxu0 0.0
      %904 = vmatprep.subr.mxu0 0.0
      %905 = vmatpush1.xpose.msra.mxu0 0.0
      %906 = vmatprep.subr.mxu0 0.0
      %907 = vmatpush1.xpose.msra.mxu0 0.0
      %908 = vmatprep.subr.mxu0 0.0
      %909 = vmatpush1.xpose.msra.mxu0 0.0
      %910 = vmatprep.subr.mxu0 0.0
      %911 = vmatpush1.xpose.msra.mxu0 0.0
      %912 = vmatprep.subr.mxu0 0.0
      %913 = vmatpush1.xpose.msra.mxu0 0.0
      %914 = vmatprep.subr.mxu0 0.0
      %915 = vmatpush1.xpose.msra.mxu0 0.0
      %916 = vmatprep.subr.mxu0 0.0
      %917 = vmatpush1.xpose.msra.mxu0 0.0
      %918 = vmatprep.subr.mxu0 0.0
      %919 = vmatpush1.xpose.msra.mxu0 0.0
      %920 = vmatprep.subr.mxu0 0.0
      %921 = vmatpush1.xpose.msra.mxu0 0.0
      %922 = vmatprep.subr.mxu0 0.0
      %923 = vmatpush1.xpose.msra.mxu0 0.0
      %924 = vmatprep.subr.mxu0 0.0
      %925 = vmatpush1.xpose.msra.mxu0 0.0
      %926 = vmatprep.subr.mxu0 0.0
      %927 = vmatpush1.xpose.msra.mxu0 0.0
      %928 = vmatprep.subr.mxu0 0.0
      %929 = vmatpush1.xpose.msra.mxu0 0.0
      %930 = vmatprep.subr.mxu0 0.0
      %931 = vmatpush1.xpose.msra.mxu0 0.0
      %932 = vmatprep.subr.mxu0 0.0
      %933 = vmatpush1.xpose.msra.mxu0 0.0
      %934 = vmatprep.subr.mxu0 0.0
      %935 = vmatpush1.xpose.msra.mxu0 0.0
      %936 = vmatprep.mubr.f32.mxu0 0.0
      %937 = vmatmul.mubr.f32.gmra.mrb[0].mxu0 %v866
      %v938 = vpop.f32.mrb[0].mxu0
      %v939 = vadd.f32 0.0, %v938
      %v940 = vpop.f32.mrb[0].mxu0
      %941 = vdwg.mxu0
      %v942 = vmul.f32 %v939, 0.35355338
      %v943 = vsel %vm596, %v942, -inf
      %944 = vmax.xlane.f32.xlu0 %v943
      %v945 = vpop.xlane.xlu0 %944
      %v946 = vsub.f32 %v942, %v945
      %v947 = vmul.f32 %v946, 1.442695
      %v948 = vpow.pop %v947
      %v949 = vsel %vm596, %v948, 0.0
      %950 = vadd.xlane.f32.xlu0 %v949
      %v951 = vpop.xlane.xlu0 %950
      %v952 = vrcp.pop %v951
      %v953 = vmul.f32 %v948, %v952
      %954 = vrot.lane.b32.xlu0 %v509, 80
      %v955 = vpop.permute.xlu0 %954
      %956 = vrot.lane.b32.xlu0 %v512, 80
      %v957 = vpop.permute.xlu0 %956
      %v961 = vsel %vm596, %v953, 0
      %963 = vmatprep.subr.mxu0 0.0
      %964 = vmatpush1.msra.mxu0 %v955
      %965 = vmatprep.subr.mxu0 0.0
      %966 = vmatpush1.msra.mxu0 %v957
      %967 = vmatprep.subr.mxu0 0.0
      %968 = vmatpush1.msra.mxu0 0.0
      %969 = vmatprep.subr.mxu0 0.0
      %970 = vmatpush1.msra.mxu0 0.0
      %971 = vmatprep.subr.mxu0 0.0
      %972 = vmatpush1.msra.mxu0 0.0
      %973 = vmatprep.subr.mxu0 0.0
      %974 = vmatpush1.msra.mxu0 0.0
      %975 = vmatprep.subr.mxu0 0.0
      %976 = vmatpush1.msra.mxu0 0.0
      %977 = vmatprep.subr.mxu0 0.0
      %978 = vmatpush1.msra.mxu0 0.0
      %979 = vmatprep.subr.mxu0 0.0
      %980 = vmatpush1.msra.mxu0 0.0
      %981 = vmatprep.subr.mxu0 0.0
      %982 = vmatpush1.msra.mxu0 0.0
      %983 = vmatprep.subr.mxu0 0.0
      %984 = vmatpush1.msra.mxu0 0.0
      %985 = vmatprep.subr.mxu0 0.0
      %986 = vmatpush1.msra.mxu0 0.0
      %987 = vmatprep.subr.mxu0 0.0
      %988 = vmatpush1.msra.mxu0 0.0
      %989 = vmatprep.subr.mxu0 0.0
      %990 = vmatpush1.msra.mxu0 0.0
      %991 = vmatprep.subr.mxu0 0.0
      %992 = vmatpush1.msra.mxu0 0.0
      %993 = vmatprep.subr.mxu0 0.0
      %994 = vmatpush1.msra.mxu0 0.0
      %995 = vmatprep.subr.mxu0 0.0
      %996 = vmatpush1.msra.mxu0 0.0
      %997 = vmatprep.subr.mxu0 0.0
      %998 = vmatpush1.msra.mxu0 0.0
      %999 = vmatprep.subr.mxu0 0.0
      %1000 = vmatpush1.msra.mxu0 0.0
      %1001 = vmatprep.subr.mxu0 0.0
      %1002 = vmatpush1.msra.mxu0 0.0
      %1003 = vmatprep.subr.mxu0 0.0
      %1004 = vmatpush1.msra.mxu0 0.0
      %1005 = vmatprep.subr.mxu0 0.0
      %1006 = vmatpush1.msra.mxu0 0.0
      %1007 = vmatprep.subr.mxu0 0.0
      %1008 = vmatpush1.msra.mxu0 0.0
      %1009 = vmatprep.subr.mxu0 0.0
      %1010 = vmatpush1.msra.mxu0 0.0
      %1011 = vmatprep.subr.mxu0 0.0
      %1012 = vmatpush1.msra.mxu0 0.0
      %1013 = vmatprep.subr.mxu0 0.0
      %1014 = vmatpush1.msra.mxu0 0.0
      %1015 = vmatprep.subr.mxu0 0.0
      %1016 = vmatpush1.msra.mxu0 0.0
      %1017 = vmatprep.subr.mxu0 0.0
      %1018 = vmatpush1.msra.mxu0 0.0
      %1019 = vmatprep.subr.mxu0 0.0
      %1020 = vmatpush1.msra.mxu0 0.0
      %1021 = vmatprep.subr.mxu0 0.0
      %1022 = vmatpush1.msra.mxu0 0.0
      %1023 = vmatprep.subr.mxu0 0.0
      %1024 = vmatpush1.msra.mxu0 0.0
      %1025 = vmatprep.subr.mxu0 0.0
      %1026 = vmatpush1.msra.mxu0 0.0
      %1027 = vmatprep.mubr.f32.mxu0 0.0
      %1028 = vmatmul.mubr.f32.gmra.mrb[0].mxu0 %v961
      %v1029 = vpop.f32.mrb[0].mxu0
      %v1030 = vadd.f32 0.0, %v1029
      %v1031 = vpop.f32.mrb[0].mxu0
      %1032 = vdwg.mxu0
      %1033 = vrot.lane.b32.xlu0 %v442, 104
      %v1034 = vpop.permute.xlu0 %1033
      %1035 = vrot.lane.b32.xlu0 %v509, 104
      %v1036 = vpop.permute.xlu0 %1035
      %1037 = vrot.lane.b32.xlu0 %v512, 104
      %v1038 = vpop.permute.xlu0 %1037
      %v1039 = vsel %vm515, %v1034, 0
      %v1041 = vsel %vm515, %v1036, 0
      %v1043 = vsel %vm515, %v1038, 0
      %1045 = vmatprep.subr.mxu0 0.0
      %1046 = vmatpush1.xpose.msra.mxu0 %v1041
      %1047 = vmatprep.subr.mxu0 0.0
      %1048 = vmatpush1.xpose.msra.mxu0 %v1043
      %1049 = vmatprep.subr.mxu0 0.0
      %1050 = vmatpush1.xpose.msra.mxu0 0.0
      %1051 = vmatprep.subr.mxu0 0.0
      %1052 = vmatpush1.xpose.msra.mxu0 0.0
      %1053 = vmatprep.subr.mxu0 0.0
      %1054 = vmatpush1.xpose.msra.mxu0 0.0
      %1055 = vmatprep.subr.mxu0 0.0
      %1056 = vmatpush1.xpose.msra.mxu0 0.0
      %1057 = vmatprep.subr.mxu0 0.0
      %1058 = vmatpush1.xpose.msra.mxu0 0.0
      %1059 = vmatprep.subr.mxu0 0.0
      %1060 = vmatpush1.xpose.msra.mxu0 0.0
      %1061 = vmatprep.subr.mxu0 0.0
      %1062 = vmatpush1.xpose.msra.mxu0 0.0
      %1063 = vmatprep.subr.mxu0 0.0
      %1064 = vmatpush1.xpose.msra.mxu0 0.0
      %1065 = vmatprep.subr.mxu0 0.0
      %1066 = vmatpush1.xpose.msra.mxu0 0.0
      %1067 = vmatprep.subr.mxu0 0.0
      %1068 = vmatpush1.xpose.msra.mxu0 0.0
      %1069 = vmatprep.subr.mxu0 0.0
      %1070 = vmatpush1.xpose.msra.mxu0 0.0
      %1071 = vmatprep.subr.mxu0 0.0
      %1072 = vmatpush1.xpose.msra.mxu0 0.0
      %1073 = vmatprep.subr.mxu0 0.0
      %1074 = vmatpush1.xpose.msra.mxu0 0.0
      %1075 = vmatprep.subr.mxu0 0.0
      %1076 = vmatpush1.xpose.msra.mxu0 0.0
      %1077 = vmatprep.subr.mxu0 0.0
      %1078 = vmatpush1.xpose.msra.mxu0 0.0
      %1079 = vmatprep.subr.mxu0 0.0
      %1080 = vmatpush1.xpose.msra.mxu0 0.0
      %1081 = vmatprep.subr.mxu0 0.0
      %1082 = vmatpush1.xpose.msra.mxu0 0.0
      %1083 = vmatprep.subr.mxu0 0.0
      %1084 = vmatpush1.xpose.msra.mxu0 0.0
      %1085 = vmatprep.subr.mxu0 0.0
      %1086 = vmatpush1.xpose.msra.mxu0 0.0
      %1087 = vmatprep.subr.mxu0 0.0
      %1088 = vmatpush1.xpose.msra.mxu0 0.0
      %1089 = vmatprep.subr.mxu0 0.0
      %1090 = vmatpush1.xpose.msra.mxu0 0.0
      %1091 = vmatprep.subr.mxu0 0.0
      %1092 = vmatpush1.xpose.msra.mxu0 0.0
      %1093 = vmatprep.subr.mxu0 0.0
      %1094 = vmatpush1.xpose.msra.mxu0 0.0
      %1095 = vmatprep.subr.mxu0 0.0
      %1096 = vmatpush1.xpose.msra.mxu0 0.0
      %1097 = vmatprep.subr.mxu0 0.0
      %1098 = vmatpush1.xpose.msra.mxu0 0.0
      %1099 = vmatprep.subr.mxu0 0.0
      %1100 = vmatpush1.xpose.msra.mxu0 0.0
      %1101 = vmatprep.subr.mxu0 0.0
      %1102 = vmatpush1.xpose.msra.mxu0 0.0
      %1103 = vmatprep.subr.mxu0 0.0
      %1104 = vmatpush1.xpose.msra.mxu0 0.0
      %1105 = vmatprep.subr.mxu0 0.0
      %1106 = vmatpush1.xpose.msra.mxu0 0.0
      %1107 = vmatprep.subr.mxu0 0.0
      %1108 = vmatpush1.xpose.msra.mxu0 0.0
      %1109 = vmatprep.mubr.f32.mxu0 0.0
      %1110 = vmatmul.mubr.f32.gmra.mrb[0].mxu0 %v1039
      %v1111 = vpop.f32.mrb[0].mxu0
      %v1112 = vadd.f32 0.0, %v1111
      %v1113 = vpop.f32.mrb[0].mxu0
      %1114 = vdwg.mxu0
      %v1115 = vmul.f32 %v1112, 0.35355338
      %v1116 = vsel %vm596, %v1115, -inf
      %1117 = vmax.xlane.f32.xlu0 %v1116
      %v1118 = vpop.xlane.xlu0 %1117
      %v1119 = vsub.f32 %v1115, %v1118
      %v1120 = vmul.f32 %v1119, 1.442695
      %v1121 = vpow.pop %v1120
      %v1122 = vsel %vm596, %v1121, 0.0
      %1123 = vadd.xlane.f32.xlu0 %v1122
      %v1124 = vpop.xlane.xlu0 %1123
      %v1125 = vrcp.pop %v1124
      %v1126 = vmul.f32 %v1121, %v1125
      %1127 = vrot.lane.b32.xlu0 %v509, 72
      %v1128 = vpop.permute.xlu0 %1127
      %1129 = vrot.lane.b32.xlu0 %v512, 72
      %v1130 = vpop.permute.xlu0 %1129
      %v1134 = vsel %vm596, %v1126, 0
      %1136 = vmatprep.subr.mxu0 0.0
      %1137 = vmatpush1.msra.mxu0 %v1128
      %1138 = vmatprep.subr.mxu0 0.0
      %1139 = vmatpush1.msra.mxu0 %v1130
      %1140 = vmatprep.subr.mxu0 0.0
      %1141 = vmatpush1.msra.mxu0 0.0
      %1142 = vmatprep.subr.mxu0 0.0
      %1143 = vmatpush1.msra.mxu0 0.0
      %1144 = vmatprep.subr.mxu0 0.0
      %1145 = vmatpush1.msra.mxu0 0.0
      %1146 = vmatprep.subr.mxu0 0.0
      %1147 = vmatpush1.msra.mxu0 0.0
      %1148 = vmatprep.subr.mxu0 0.0
      %1149 = vmatpush1.msra.mxu0 0.0
      %1150 = vmatprep.subr.mxu0 0.0
      %1151 = vmatpush1.msra.mxu0 0.0
      %1152 = vmatprep.subr.mxu0 0.0
      %1153 = vmatpush1.msra.mxu0 0.0
      %1154 = vmatprep.subr.mxu0 0.0
      %1155 = vmatpush1.msra.mxu0 0.0
      %1156 = vmatprep.subr.mxu0 0.0
      %1157 = vmatpush1.msra.mxu0 0.0
      %1158 = vmatprep.subr.mxu0 0.0
      %1159 = vmatpush1.msra.mxu0 0.0
      %1160 = vmatprep.subr.mxu0 0.0
      %1161 = vmatpush1.msra.mxu0 0.0
      %1162 = vmatprep.subr.mxu0 0.0
      %1163 = vmatpush1.msra.mxu0 0.0
      %1164 = vmatprep.subr.mxu0 0.0
      %1165 = vmatpush1.msra.mxu0 0.0
      %1166 = vmatprep.subr.mxu0 0.0
      %1167 = vmatpush1.msra.mxu0 0.0
      %1168 = vmatprep.subr.mxu0 0.0
      %1169 = vmatpush1.msra.mxu0 0.0
      %1170 = vmatprep.subr.mxu0 0.0
      %1171 = vmatpush1.msra.mxu0 0.0
      %1172 = vmatprep.subr.mxu0 0.0
      %1173 = vmatpush1.msra.mxu0 0.0
      %1174 = vmatprep.subr.mxu0 0.0
      %1175 = vmatpush1.msra.mxu0 0.0
      %1176 = vmatprep.subr.mxu0 0.0
      %1177 = vmatpush1.msra.mxu0 0.0
      %1178 = vmatprep.subr.mxu0 0.0
      %1179 = vmatpush1.msra.mxu0 0.0
      %1180 = vmatprep.subr.mxu0 0.0
      %1181 = vmatpush1.msra.mxu0 0.0
      %1182 = vmatprep.subr.mxu0 0.0
      %1183 = vmatpush1.msra.mxu0 0.0
      %1184 = vmatprep.subr.mxu0 0.0
      %1185 = vmatpush1.msra.mxu0 0.0
      %1186 = vmatprep.subr.mxu0 0.0
      %1187 = vmatpush1.msra.mxu0 0.0
      %1188 = vmatprep.subr.mxu0 0.0
      %1189 = vmatpush1.msra.mxu0 0.0
      %1190 = vmatprep.subr.mxu0 0.0
      %1191 = vmatpush1.msra.mxu0 0.0
      %1192 = vmatprep.subr.mxu0 0.0
      %1193 = vmatpush1.msra.mxu0 0.0
      %1194 = vmatprep.subr.mxu0 0.0
      %1195 = vmatpush1.msra.mxu0 0.0
      %1196 = vmatprep.subr.mxu0 0.0
      %1197 = vmatpush1.msra.mxu0 0.0
      %1198 = vmatprep.subr.mxu0 0.0
      %1199 = vmatpush1.msra.mxu0 0.0
      %1200 = vmatprep.mubr.f32.mxu0 0.0
      %1201 = vmatmul.mubr.f32.gmra.mrb[0].mxu0 %v1134
      %v1202 = vpop.f32.mrb[0].mxu0
      %v1203 = vadd.f32 0.0, %v1202
      %v1204 = vpop.f32.mrb[0].mxu0
      %1205 = vdwg.mxu0
      %1207 = vrot.lane.b32.xlu0 %v857, 8
      %v1208 = vpop.permute.xlu0 %1207
      %1211 = vrot.lane.b32.xlu0 %v1030, 16
      %v1212 = vpop.permute.xlu0 %1211
      %1215 = vrot.lane.b32.xlu0 %v1203, 24
      %v1216 = vpop.permute.xlu0 %1215
      %v1218 = vsel %vm515, %v684, %v1208
      %v1219 = vsel %vm596, %v1218, %v1212
      %vm1220 = vcmask 195584
      %v1221 = vsel %vm1220, %v1219, %v1216
      %v1222 = vpack.c.bf16 %v1221, %v1221
      %v1223 = vld [vmem:[%s6] sm:$0xf]
      %v1224 = vld [vmem:[%s6 + $0x4] sm:$0xf]
      %v1225 = vld [vmem:[%s6 + $0x8] sm:$0xf]
      %v1226 = vld [vmem:[%s6 + $0xc] sm:$0xf]
      %v1227 = vld [vmem:[%s7] sm:$0x1]
      %v1229 = vlaneseq
      %v1230 = vshrl.u32 %v1229, 7
      %v1231 = vsub.s32 0, %v1230
      %v1232 = vrot.slane %v1227, %v1231
      %v1238 = vunpack.c.l.b16 %v1223
      %v1239 = vunpack.c.l.b16 %v1224
      %v1240 = vunpack.c.l.b16 %v1225
      %v1241 = vunpack.c.l.b16 %v1226
      %v1242 = vpack.c.b16 %v1239, %v1238
      %v1243 = vpack.c.b16 %v1241, %v1240
      %v1247 = vsel %vm403, %v1222, 0
      %1249 = vmatprep.subr.bf16.mxu0 0
      %1250 = vmatpush1.bf16.msra.mxu0 %v1242
      %1251 = vmatprep.subr.bf16.mxu0 0
      %1252 = vmatpush1.bf16.msra.mxu0 %v1243
      %1253 = vmatprep.subr.bf16.mxu0 0
      %1254 = vmatpush1.bf16.msra.mxu0 0
      %1255 = vmatprep.subr.bf16.mxu0 0
      %1256 = vmatpush1.bf16.msra.mxu0 0
      %1257 = vmatprep.subr.bf16.mxu0 0
      %1258 = vmatpush1.bf16.msra.mxu0 0
      %1259 = vmatprep.subr.bf16.mxu0 0
      %1260 = vmatpush1.bf16.msra.mxu0 0
      %1261 = vmatprep.subr.bf16.mxu0 0
      %1262 = vmatpush1.bf16.msra.mxu0 0
      %1263 = vmatprep.subr.bf16.mxu0 0
      %1264 = vmatpush1.bf16.msra.mxu0 0
      %1265 = vmatprep.subr.bf16.mxu0 0
      %1266 = vmatpush1.bf16.msra.mxu0 0
      %1267 = vmatprep.subr.bf16.mxu0 0
      %1268 = vmatpush1.bf16.msra.mxu0 0
      %1269 = vmatprep.subr.bf16.mxu0 0
      %1270 = vmatpush1.bf16.msra.mxu0 0
      %1271 = vmatprep.subr.bf16.mxu0 0
      %1272 = vmatpush1.bf16.msra.mxu0 0
      %1273 = vmatprep.subr.bf16.mxu0 0
      %1274 = vmatpush1.bf16.msra.mxu0 0
      %1275 = vmatprep.subr.bf16.mxu0 0
      %1276 = vmatpush1.bf16.msra.mxu0 0
      %1277 = vmatprep.subr.bf16.mxu0 0
      %1278 = vmatpush1.bf16.msra.mxu0 0
      %1279 = vmatprep.subr.bf16.mxu0 0
      %1280 = vmatpush1.bf16.msra.mxu0 0
      %1281 = vmatprep.mubr.bf16.mxu0 0
      %1282 = vmatmul.mubr.bf16.gmra.mrb[0].mxu0 %v1247
      %v1283 = vpop.f32.mrb[0].mxu0
      %v1284 = vadd.f32 %v1232, %v1283
      %v1285 = vpop.f32.mrb[0].mxu0
      %v1286 = vpop.f32.mrb[0].mxu0
      %v1287 = vpop.f32.mrb[0].mxu0
      %1288 = vdwg.mxu0
      %v1289 = vadd.f32 %v376, %v1284
      %v1290 = vld [vmem:[%s8] sm:$0x1]
      %v1291 = vld [vmem:[%s9] sm:$0x1]
      %v1292 = vsel %vm403, %v1289, 0.0
      %1293 = vadd.xlane.f32.xlu0 %v1292
      %v1294 = vpop.xlane.xlu0 %1293
      %v1295 = vrcp.pop 32.0
      %v1296 = vmul.f32 %v1294, %v1295
      %v1297 = vsub.f32 %v1289, %v1296
      %v1298 = vmul.f32 %v1297, %v1297
      %v1299 = vsel %vm403, %v1298, 0.0
      %1300 = vadd.xlane.f32.xlu0 %v1299
      %v1301 = vpop.xlane.xlu0 %1300
      %v1302 = vmul.f32 %v1301, %v1295
      %v1303 = vadd.f32 %v1302, 1e-05
      %v1304 = vrsqrt.pop %v1303
      %v1305 = vmul.f32 %v1297, %v1304
      %v1307 = vlaneseq
      %v1308 = vshrl.u32 %v1307, 7
      %v1309 = vsub.s32 0, %v1308
      %v1310 = vrot.slane %v1290, %v1309
      %v1312 = vmul.f32 %v1305, %v1310
      %v1314 = vlaneseq
      %v1315 = vshrl.u32 %v1314, 7
      %v1316 = vsub.s32 0, %v1315
      %v1317 = vrot.slane %v1291, %v1316
      %v1319 = vadd.f32 %v1312, %v1317
      %1320 = vst.msk [vmem:[%s374] sm:$0xff] %vm403, %v1319
      %p1321 = scmp.lt.s32.totalorder %s21, 1
      %s1322 = scalar_select %p1321, %s21, 1
      %s1323 = smul.addr %s1322, 8
      %s1324 = scalar_lea.vmem %s10, %s1323
      // Predicated region
      $region61: #{export_conette_forward.8} parent=59 // pred_check
        %p1325 = pneg %p259
      $region62: #{export_conette_forward.8} parent=59 // pred_check_branch
        %1327 = sbr.rel (%p1325) target = $region64
      $region63: #{export_conette_forward.8} parent=59 // pred_region
        _
      $region64: #{export_conette_forward.8} parent=59 // pred_fallthru
        _
    $region60: #{export_conette_forward.8} parent=5 // pred_fallthru
      _
    %p1328 = scmp.le.s32.totalorder 2, %s16
    // Predicated region
    $region65: #{export_conette_forward.8} parent=5 // pred_check
      %p1329 = pneg %p1328
    $region66: #{export_conette_forward.8} parent=5 // pred_check_branch
      %1331 = sbr.rel (%p1329) target = $region68
    $region67: #{export_conette_forward.8} parent=5 // pred_region
      %s1332 = ssub.s32 %s16, 2
      // Predicated region
      $region69: #{export_conette_forward.8} parent=67 // pred_check
        %p1333 = pneg %p265
      $region70: #{export_conette_forward.8} parent=67 // pred_check_branch
        %1335 = sbr.rel (%p1333) target = $region72
      $region71: #{export_conette_forward.8} parent=67 // pred_region
        %p1336 = scmp.lt.s32.totalorder %s22, 1
        %s1337 = scalar_select %p1336, %s22, 1
        %s1338 = smul.addr %s1337, 8
        %s1339 = scalar_lea.vmem %s10, %s1338
      $region72: #{export_conette_forward.8} parent=67 // pred_fallthru
        _
    $region68: #{export_conette_forward.8} parent=5 // pred_fallthru
      _
  $region6: #{export_conette_forward.8} parent=0 // loop_footer
    %s20 = sadd.s32 1, %s16
  $region7: #{export_conette_forward.8} parent=0 // loop_footer_branch
    %15 = sbr.rel target = $region3
  $region8: #{export_conette_forward.8} parent=0 // loop_exit
    _

// kernel: export_conette_forward.7
$region0: #{export_conette_forward.7}
  #allocation0 [shape = 'u32[]', space=smem, size = 0x4, offset = 0x4, fixed_abs, tag = 'smem constant byte address 0x4 - core index']
  #allocation1 [shape = 'u32[144,128]{1,0:T(1,128)}', space=vmem, size = 0x12000, scoped, tag = 'internal scratch']
  %s0 = inlined_call_operand.vmem [shape: f32[2,8,32], index: 0, kind: input, shape index: {}]
  %s1 = inlined_call_operand.vmem [shape: f32[8,8], index: 1, kind: input, shape index: {}]
  %s2 = inlined_call_operand.vmem [shape: bf16[32,96], index: 2, kind: input, shape index: {}]
  %s3 = inlined_call_operand.vmem [shape: f32[1,96], index: 3, kind: input, shape index: {}]
  %s4 = inlined_call_operand.vmem [shape: bf16[32,32], index: 4, kind: input, shape index: {}]
  %s5 = inlined_call_operand.vmem [shape: f32[1,32], index: 5, kind: input, shape index: {}, may-alias: {5,7}]
  %s6 = inlined_call_operand.vmem [shape: f32[1,32], index: 6, kind: input, shape index: {}]
  %s7 = inlined_call_operand.vmem [shape: f32[1,32], index: 7, kind: input, shape index: {}, may-alias: {5,7}]
  %s8 = inlined_call_operand.vmem [shape: f32[2,8,32], index: 8, kind: output, shape index: {}]
  %s9 = sld [smem:[#allocation0]]
  $region65: #{export_conette_forward.7} parent=0
    _
  %s11 = ssub.s32 1, %s9
  %s12 = scalar_select 0, %s11, %s9
  loop: start=0, step=1, limit=4
  $region2: #{export_conette_forward.7} parent=0 // loop_pre_header
    _
  $region3: #{export_conette_forward.7} parent=0 // loop_header
    %s14 = sphi 0, %s18
    %p15 = scmp.ge.s32.totalorder %s14, 4
    %s24 = sphi 0, %s26
    %s27 = sphi 0, %s24
    %s28 = sphi 0, %s27
    %s44 = sphi 0, %s28
    %s48 = sphi 0, %s48
    %s50 = sphi 0, %s48
    %s51 = sphi 0, %s50
    %s65 = sphi 0, %s51
    %s69 = sphi 0, %s69
    %s71 = sphi 0, %s69
    %s72 = sphi 0, %s71
    %s86 = sphi 0, %s72
    %s90 = sphi 0, %s90
    %s92 = sphi 0, %s90
    %s93 = sphi 0, %s92
    %s107 = sphi 0, %s93
    %s111 = sphi 0, %s111
    %s113 = sphi 0, %s111
    %s114 = sphi 0, %s113
    %s128 = sphi 0, %s114
    %s132 = sphi 0, %s132
    %s134 = sphi 0, %s132
    %s135 = sphi 0, %s134
    %s149 = sphi 0, %s135
    %s153 = sphi 0, %s153
    %s155 = sphi 0, %s153
    %s156 = sphi 0, %s155
    %s170 = sphi 0, %s156
    %s174 = sphi 0, %s174
    %s176 = sphi 0, %s174
    %s177 = sphi 0, %s176
    %s191 = sphi 0, %s177
    %s197 = sphi 0, %s199
    %s200 = sphi 0, %s197
    %s201 = sphi 0, %s200
    %s217 = sphi 0, %s201
  $region4: #{export_conette_forward.7} parent=0 // loop_header_branch
    %17 = sbr.rel (%p15) target = $region8
  $region5: #{export_conette_forward.7} parent=0 // loop_body
    %s19 = ssub.s32 %s14, 1
    %s20 = ssub.s32 %s14, 2
    %s21 = sadd.s32 %s14, 1
    %s22 = ssub.s32 %s14, %s21
    %p23 = scmp.eq.s32.totalorder %s22, 0
    %s25 = sadd.s32 %s24, 1
    %s26 = scalar_select %p23, %s24, %s25
    %p29 = pneg %p23
    %p30 = scmp.eq.s32.totalorder %s14, 1
    %p31 = por %p29, %p30
    %p32 = scmp.ne.s32.totalorder %s24, %s27
    %p33 = scmp.eq.s32.totalorder %s14, 0
    %p34 = por %p32, %p33
    %p35 = scmp.ne.s32.totalorder %s24, %s27
    %p36 = scmp.eq.s32.totalorder %s19, 1
    %p37 = por %p35, %p36
    %p38 = scmp.ne.s32.totalorder %s27, %s28
    %p39 = scmp.eq.s32.totalorder %s19, 0
    %p40 = por %p38, %p39
    %p41 = scmp.ne.s32.totalorder %s27, %s28
    %p42 = scmp.eq.s32.totalorder %s20, 1
    %p43 = por %p41, %p42
    %p45 = scmp.ne.s32.totalorder %s28, %s44
    %p46 = scmp.eq.s32.totalorder %s20, 0
    %p47 = por %p45, %p46
    %s49 = sadd.s32 %s48, 1
    %p52 = scmp.eq.s32.totalorder %s14, 1
    %p53 = scmp.ne.s32.totalorder %s48, %s50
    %p54 = scmp.eq.s32.totalorder %s14, 0
    %p55 = por %p53, %p54
    %p56 = scmp.ne.s32.totalorder %s48, %s50
    %p57 = scmp.eq.s32.totalorder %s19, 1
    %p58 = por %p56, %p57
    %p59 = scmp.ne.s32.totalorder %s50, %s51
    %p60 = scmp.eq.s32.totalorder %s19, 0
    %p61 = por %p59, %p60
    %p62 = scmp.ne.s32.totalorder %s50, %s51
    %p63 = scmp.eq.s32.totalorder %s20, 1
    %p64 = por %p62, %p63
    %p66 = scmp.ne.s32.totalorder %s51, %s65
    %p67 = scmp.eq.s32.totalorder %s20, 0
    %p68 = por %p66, %p67
    %s70 = sadd.s32 %s69, 1
    %p73 = scmp.eq.s32.totalorder %s14, 1
    %p74 = scmp.ne.s32.totalorder %s69, %s71
    %p75 = scmp.eq.s32.totalorder %s14, 0
    %p76 = por %p74, %p75
    %p77 = scmp.ne.s32.totalorder %s69, %s71
    %p78 = scmp.eq.s32.totalorder %s19, 1
    %p79 = por %p77, %p78
    %p80 = scmp.ne.s32.totalorder %s71, %s72
    %p81 = scmp.eq.s32.totalorder %s19, 0
    %p82 = por %p80, %p81
    %p83 = scmp.ne.s32.totalorder %s71, %s72
    %p84 = scmp.eq.s32.totalorder %s20, 1
    %p85 = por %p83, %p84
    %p87 = scmp.ne.s32.totalorder %s72, %s86
    %p88 = scmp.eq.s32.totalorder %s20, 0
    %p89 = por %p87, %p88
    %s91 = sadd.s32 %s90, 1
    %p94 = scmp.eq.s32.totalorder %s14, 1
    %p95 = scmp.ne.s32.totalorder %s90, %s92
    %p96 = scmp.eq.s32.totalorder %s14, 0
    %p97 = por %p95, %p96
    %p98 = scmp.ne.s32.totalorder %s90, %s92
    %p99 = scmp.eq.s32.totalorder %s19, 1
    %p100 = por %p98, %p99
    %p101 = scmp.ne.s32.totalorder %s92, %s93
    %p102 = scmp.eq.s32.totalorder %s19, 0
    %p103 = por %p101, %p102
    %p104 = scmp.ne.s32.totalorder %s92, %s93
    %p105 = scmp.eq.s32.totalorder %s20, 1
    %p106 = por %p104, %p105
    %p108 = scmp.ne.s32.totalorder %s93, %s107
    %p109 = scmp.eq.s32.totalorder %s20, 0
    %p110 = por %p108, %p109
    %s112 = sadd.s32 %s111, 1
    %p115 = scmp.eq.s32.totalorder %s14, 1
    %p116 = scmp.ne.s32.totalorder %s111, %s113
    %p117 = scmp.eq.s32.totalorder %s14, 0
    %p118 = por %p116, %p117
    %p119 = scmp.ne.s32.totalorder %s111, %s113
    %p120 = scmp.eq.s32.totalorder %s19, 1
    %p121 = por %p119, %p120
    %p122 = scmp.ne.s32.totalorder %s113, %s114
    %p123 = scmp.eq.s32.totalorder %s19, 0
    %p124 = por %p122, %p123
    %p125 = scmp.ne.s32.totalorder %s113, %s114
    %p126 = scmp.eq.s32.totalorder %s20, 1
    %p127 = por %p125, %p126
    %p129 = scmp.ne.s32.totalorder %s114, %s128
    %p130 = scmp.eq.s32.totalorder %s20, 0
    %p131 = por %p129, %p130
    %s133 = sadd.s32 %s132, 1
    %p136 = scmp.eq.s32.totalorder %s14, 1
    %p137 = scmp.ne.s32.totalorder %s132, %s134
    %p138 = scmp.eq.s32.totalorder %s14, 0
    %p139 = por %p137, %p138
    %p140 = scmp.ne.s32.totalorder %s132, %s134
    %p141 = scmp.eq.s32.totalorder %s19, 1
    %p142 = por %p140, %p141
    %p143 = scmp.ne.s32.totalorder %s134, %s135
    %p144 = scmp.eq.s32.totalorder %s19, 0
    %p145 = por %p143, %p144
    %p146 = scmp.ne.s32.totalorder %s134, %s135
    %p147 = scmp.eq.s32.totalorder %s20, 1
    %p148 = por %p146, %p147
    %p150 = scmp.ne.s32.totalorder %s135, %s149
    %p151 = scmp.eq.s32.totalorder %s20, 0
    %p152 = por %p150, %p151
    %s154 = sadd.s32 %s153, 1
    %p157 = scmp.eq.s32.totalorder %s14, 1
    %p158 = scmp.ne.s32.totalorder %s153, %s155
    %p159 = scmp.eq.s32.totalorder %s14, 0
    %p160 = por %p158, %p159
    %p161 = scmp.ne.s32.totalorder %s153, %s155
    %p162 = scmp.eq.s32.totalorder %s19, 1
    %p163 = por %p161, %p162
    %p164 = scmp.ne.s32.totalorder %s155, %s156
    %p165 = scmp.eq.s32.totalorder %s19, 0
    %p166 = por %p164, %p165
    %p167 = scmp.ne.s32.totalorder %s155, %s156
    %p168 = scmp.eq.s32.totalorder %s20, 1
    %p169 = por %p167, %p168
    %p171 = scmp.ne.s32.totalorder %s156, %s170
    %p172 = scmp.eq.s32.totalorder %s20, 0
    %p173 = por %p171, %p172
    %s175 = sadd.s32 %s174, 1
    %p178 = scmp.eq.s32.totalorder %s14, 1
    %p179 = scmp.ne.s32.totalorder %s174, %s176
    %p180 = scmp.eq.s32.totalorder %s14, 0
    %p181 = por %p179, %p180
    %p182 = scmp.ne.s32.totalorder %s174, %s176
    %p183 = scmp.eq.s32.totalorder %s19, 1
    %p184 = por %p182, %p183
    %p185 = scmp.ne.s32.totalorder %s176, %s177
    %p186 = scmp.eq.s32.totalorder %s19, 0
    %p187 = por %p185, %p186
    %p188 = scmp.ne.s32.totalorder %s176, %s177
    %p189 = scmp.eq.s32.totalorder %s20, 1
    %p190 = por %p188, %p189
    %p192 = scmp.ne.s32.totalorder %s177, %s191
    %p193 = scmp.eq.s32.totalorder %s20, 0
    %p194 = por %p192, %p193
    %s195 = ssub.s32 %s14, %s21
    %p196 = scmp.eq.s32.totalorder %s195, 0
    %s198 = sadd.s32 %s197, 1
    %s199 = scalar_select %p196, %s197, %s198
    %p202 = pneg %p196
    %p203 = scmp.eq.s32.totalorder %s14, 1
    %p204 = por %p202, %p203
    %p205 = scmp.ne.s32.totalorder %s197, %s200
    %p206 = scmp.eq.s32.totalorder %s14, 0
    %p207 = por %p205, %p206
    %p208 = scmp.ne.s32.totalorder %s197, %s200
    %p209 = scmp.eq.s32.totalorder %s19, 1
    %p210 = por %p208, %p209
    %p211 = scmp.ne.s32.totalorder %s200, %s201
    %p212 = scmp.eq.s32.totalorder %s19, 0
    %p213 = por %p211, %p212
    %p214 = scmp.ne.s32.totalorder %s200, %s201
    %p215 = scmp.eq.s32.totalorder %s20, 1
    %p216 = por %p214, %p215
    %p218 = scmp.ne.s32.totalorder %s201, %s217
    %p219 = scmp.eq.s32.totalorder %s20, 0
    %p220 = por %p218, %p219
    %p221 = scmp.le.s32.totalorder 1, %s14
    %p222 = scmp.lt.s32.totalorder %s14, 3
    %p223 = pnand %p221, %p222
    %p224 = pneg %p223
    // Predicated region
    $region9: #{export_conette_forward.7} parent=5 // pred_check
      _
    $region10: #{export_conette_forward.7} parent=5 // pred_check_branch
      %226 = sbr.rel (%p223) target = $region12
    $region11: #{export_conette_forward.7} parent=5 // pred_region
      %s227 = ssub.s32 %s14, 1
      // Predicated region
      $region13: #{export_conette_forward.7} parent=11 // pred_check
        %p228 = pneg %p61
      $region14: #{export_conette_forward.7} parent=11 // pred_check_branch
        %230 = sbr.rel (%p228) target = $region16
      $region15: #{export_conette_forward.7} parent=11 // pred_region
        _
      $region16: #{export_conette_forward.7} parent=11 // pred_fallthru
        _
      // Predicated region
      $region17: #{export_conette_forward.7} parent=11 // pred_check
        %p231 = pneg %p82
      $region18: #{export_conette_forward.7} parent=11 // pred_check_branch
        %233 = sbr.rel (%p231) target = $region20
      $region19: #{export_conette_forward.7} parent=11 // pred_region
        _
      $region20: #{export_conette_forward.7} parent=11 // pred_fallthru
        _
      // Predicated region
      $region21: #{export_conette_forward.7} parent=11 // pred_check
        %p234 = pneg %p103
      $region22: #{export_conette_forward.7} parent=11 // pred_check_branch
        %236 = sbr.rel (%p234) target = $region24
      $region23: #{export_conette_forward.7} parent=11 // pred_region
        _
      $region24: #{export_conette_forward.7} parent=11 // pred_fallthru
        _
      // Predicated region
      $region25: #{export_conette_forward.7} parent=11 // pred_check
        %p237 = pneg %p124
      $region26: #{export_conette_forward.7} parent=11 // pred_check_branch
        %239 = sbr.rel (%p237) target = $region28
      $region27: #{export_conette_forward.7} parent=11 // pred_region
        _
      $region28: #{export_conette_forward.7} parent=11 // pred_fallthru
        _
      // Predicated region
      $region29: #{export_conette_forward.7} parent=11 // pred_check
        %p240 = pneg %p145
      $region30: #{export_conette_forward.7} parent=11 // pred_check_branch
        %242 = sbr.rel (%p240) target = $region32
      $region31: #{export_conette_forward.7} parent=11 // pred_region
        _
      $region32: #{export_conette_forward.7} parent=11 // pred_fallthru
        _
      // Predicated region
      $region33: #{export_conette_forward.7} parent=11 // pred_check
        %p243 = pneg %p166
      $region34: #{export_conette_forward.7} parent=11 // pred_check_branch
        %245 = sbr.rel (%p243) target = $region36
      $region35: #{export_conette_forward.7} parent=11 // pred_region
        _
      $region36: #{export_conette_forward.7} parent=11 // pred_fallthru
        _
      // Predicated region
      $region37: #{export_conette_forward.7} parent=11 // pred_check
        %p246 = pneg %p187
      $region38: #{export_conette_forward.7} parent=11 // pred_check_branch
        %248 = sbr.rel (%p246) target = $region40
      $region39: #{export_conette_forward.7} parent=11 // pred_region
        _
      $region40: #{export_conette_forward.7} parent=11 // pred_fallthru
        _
    $region12: #{export_conette_forward.7} parent=5 // pred_fallthru
      _
    %p249 = scmp.lt.s32.totalorder %s14, 2
    // Predicated region
    $region41: #{export_conette_forward.7} parent=5 // pred_check
      %p250 = pneg %p249
    $region42: #{export_conette_forward.7} parent=5 // pred_check_branch
      %252 = sbr.rel (%p250) target = $region44
    $region43: #{export_conette_forward.7} parent=5 // pred_region
      // Predicated region
      $region45: #{export_conette_forward.7} parent=43 // pred_check
        %p253 = pneg %p34
      $region46: #{export_conette_forward.7} parent=43 // pred_check_branch
        %255 = sbr.rel (%p253) target = $region48
      $region47: #{export_conette_forward.7} parent=43 // pred_region
        %p256 = scmp.lt.s32.totalorder %s14, 1
        %s257 = scalar_select %p256, %s14, 1
        %s258 = smul.addr %s257, 8
        %s259 = scalar_lea.vmem %s0, %s258
      $region48: #{export_conette_forward.7} parent=43 // pred_fallthru
        _
    $region44: #{export_conette_forward.7} parent=5 // pred_fallthru
      _
    %p260 = scmp.le.s32.totalorder 1, %s14
    %p261 = scmp.lt.s32.totalorder %s14, 3
    %p262 = pnand %p260, %p261
    %p263 = pneg %p262
    // Predicated region
    $region49: #{export_conette_forward.7} parent=5 // pred_check
      _
    $region50: #{export_conette_forward.7} parent=5 // pred_check_branch
      %265 = sbr.rel (%p262) target = $region52
    $region51: #{export_conette_forward.7} parent=5 // pred_region
      %s266 = ssub.s32 %s14, 1
      %p267 = scmp.lt.s32.totalorder %s19, 1
      %s268 = scalar_select %p267, %s19, 1
      %s269 = smul.addr %s268, 8
      %s270 = scalar_lea.vmem %s0, %s269
      %p271 = pneg %p40
      %p272 = pneg %p37
      %p273 = pneg %p61
      %p274 = pneg %p58
      %p275 = pneg %p82
      %p276 = pneg %p79
      %p277 = pneg %p103
      %p278 = pneg %p100
      %p279 = pneg %p124
      %p280 = pneg %p121
      %p281 = pneg %p145
      %p282 = pneg %p142
      %p283 = pneg %p166
      %p284 = pneg %p163
      %p285 = pneg %p187
      %p286 = pneg %p184
      %p287 = pneg %p213
      %p288 = pneg %p210
      %p289 = scmp.lt.s32.totalorder %s19, 1
      %s290 = scalar_select %p289, %s19, 1
      %s291 = smul.addr %s290, 8
      %s292 = scalar_lea.vmem %s8, %s291
      %p293 = scmp.lt.s32.totalorder %s19, 1
      %s294 = scalar_select %p293, %s19, 1
      %s295 = smul.addr %s294, 8
      %s296 = scalar_lea.vmem %s0, %s295
      %p297 = scmp.lt.s32.totalorder %s19, 1
      %s298 = scalar_select %p297, %s19, 1
      %s299 = smul.addr %s298, 8
      %s300 = scalar_lea.vmem %s8, %s299
      %v302 = vld [vmem:[%s296] sm:$0xff]
      %v303 = vpack.c.bf16 %v302, %v302
      %v304 = vld [vmem:[%s2] sm:$0xf]
      %v305 = vld [vmem:[%s2 + $0x4] sm:$0xf]
      %v306 = vld [vmem:[%s2 + $0x8] sm:$0xf]
      %v307 = vld [vmem:[%s2 + $0xc] sm:$0xf]
      %v308 = vld [vmem:[%s3] sm:$0x1]
      %v310 = vlaneseq
      %v311 = vshrl.u32 %v310, 7
      %v312 = vsub.s32 0, %v311
      %v313 = vrot.slane %v308, %v312
      %v319 = vunpack.c.l.b16 %v304
      %v320 = vunpack.c.l.b16 %v305
      %v321 = vunpack.c.l.b16 %v306
      %v322 = vunpack.c.l.b16 %v307
      %v323 = vpack.c.b16 %v320, %v319
      %v324 = vpack.c.b16 %v322, %v321
      %vm327 = vcmask 261120
      %v329 = vsel %vm327, %v303, 0
      %331 = vmatprep.subr.bf16.mxu0 0
      %332 = vmatpush1.bf16.msra.mxu0 %v323
      %333 = vmatprep.subr.bf16.mxu0 0
      %334 = vmatpush1.bf16.msra.mxu0 %v324
      %335 = vmatprep.subr.bf16.mxu0 0
      %336 = vmatpush1.bf16.msra.mxu0 0
      %337 = vmatprep.subr.bf16.mxu0 0
      %338 = vmatpush1.bf16.msra.mxu0 0
      %339 = vmatprep.subr.bf16.mxu0 0
      %340 = vmatpush1.bf16.msra.mxu0 0
      %341 = vmatprep.subr.bf16.mxu0 0
      %342 = vmatpush1.bf16.msra.mxu0 0
      %343 = vmatprep.subr.bf16.mxu0 0
      %344 = vmatpush1.bf16.msra.mxu0 0
      %345 = vmatprep.subr.bf16.mxu0 0
      %346 = vmatpush1.bf16.msra.mxu0 0
      %347 = vmatprep.subr.bf16.mxu0 0
      %348 = vmatpush1.bf16.msra.mxu0 0
      %349 = vmatprep.subr.bf16.mxu0 0
      %350 = vmatpush1.bf16.msra.mxu0 0
      %351 = vmatprep.subr.bf16.mxu0 0
      %352 = vmatpush1.bf16.msra.mxu0 0
      %353 = vmatprep.subr.bf16.mxu0 0
      %354 = vmatpush1.bf16.msra.mxu0 0
      %355 = vmatprep.subr.bf16.mxu0 0
      %356 = vmatpush1.bf16.msra.mxu0 0
      %357 = vmatprep.subr.bf16.mxu0 0
      %358 = vmatpush1.bf16.msra.mxu0 0
      %359 = vmatprep.subr.bf16.mxu0 0
      %360 = vmatpush1.bf16.msra.mxu0 0
      %361 = vmatprep.subr.bf16.mxu0 0
      %362 = vmatpush1.bf16.msra.mxu0 0
      %363 = vmatprep.mubr.bf16.mxu0 0
      %364 = vmatmul.mubr.bf16.gmra.mrb[0].mxu0 %v329
      %v365 = vpop.f32.mrb[0].mxu0
      %v366 = vadd.f32 %v313, %v365
      %v367 = vpop.f32.mrb[0].mxu0
      %v368 = vpop.f32.mrb[0].mxu0
      %v369 = vpop.f32.mrb[0].mxu0
      %370 = vdwg.mxu0
      %v371 = vld [vmem:[%s1] sm:$0xff]
      %373 = vrot.lane.b32.xlu0 %v366, 96
      %v374 = vpop.permute.xlu0 %373
      %vm375 = vcmask 64512
      %v376 = vsel %vm375, %v366, 0
      %v378 = vsel %vm375, %v374, 0
      %380 = vmatprep.subr.mxu0 0.0
      %381 = vmatpush1.xpose.msra.mxu0 %v378
      %382 = vmatprep.subr.mxu0 0.0
      %383 = vmatpush1.xpose.msra.mxu0 0.0
      %384 = vmatprep.subr.mxu0 0.0
      %385 = vmatpush1.xpose.msra.mxu0 0.0
      %386 = vmatprep.subr.mxu0 0.0
      %387 = vmatpush1.xpose.msra.mxu0 0.0
      %388 = vmatprep.subr.mxu0 0.0
      %389 = vmatpush1.xpose.msra.mxu0 0.0
      %390 = vmatprep.subr.mxu0 0.0
      %391 = vmatpush1.xpose.msra.mxu0 0.0
      %392 = vmatprep.subr.mxu0 0.0
      %393 = vmatpush1.xpose.msra.mxu0 0.0
      %394 = vmatprep.subr.mxu0 0.0
      %395 = vmatpush1.xpose.msra.mxu0 0.0
      %396 = vmatprep.subr.mxu0 0.0
      %397 = vmatpush1.xpose.msra.mxu0 0.0
      %398 = vmatprep.subr.mxu0 0.0
      %399 = vmatpush1.xpose.msra.mxu0 0.0
      %400 = vmatprep.subr.mxu0 0.0
      %401 = vmatpush1.xpose.msra.mxu0 0.0
      %402 = vmatprep.subr.mxu0 0.0
      %403 = vmatpush1.xpose.msra.mxu0 0.0
      %404 = vmatprep.subr.mxu0 0.0
      %405 = vmatpush1.xpose.msra.mxu0 0.0
      %406 = vmatprep.subr.mxu0 0.0
      %407 = vmatpush1.xpose.msra.mxu0 0.0
      %408 = vmatprep.subr.mxu0 0.0
      %409 = vmatpush1.xpose.msra.mxu0 0.0
      %410 = vmatprep.subr.mxu0 0.0
      %411 = vmatpush1.xpose.msra.mxu0 0.0
      %412 = vmatprep.subr.mxu0 0.0
      %413 = vmatpush1.xpose.msra.mxu0 0.0
      %414 = vmatprep.subr.mxu0 0.0
      %415 = vmatpush1.xpose.msra.mxu0 0.0
      %416 = vmatprep.subr.mxu0 0.0
      %417 = vmatpush1.xpose.msra.mxu0 0.0
      %418 = vmatprep.subr.mxu0 0.0
      %419 = vmatpush1.xpose.msra.mxu0 0.0
      %420 = vmatprep.subr.mxu0 0.0
      %421 = vmatpush1.xpose.msra.mxu0 0.0
      %422 = vmatprep.subr.mxu0 0.0
      %423 = vmatpush1.xpose.msra.mxu0 0.0
      %424 = vmatprep.subr.mxu0 0.0
      %425 = vmatpush1.xpose.msra.mxu0 0.0
      %426 = vmatprep.subr.mxu0 0.0
      %427 = vmatpush1.xpose.msra.mxu0 0.0
      %428 = vmatprep.subr.mxu0 0.0
      %429 = vmatpush1.xpose.msra.mxu0 0.0
      %430 = vmatprep.subr.mxu0 0.0
      %431 = vmatpush1.xpose.msra.mxu0 0.0
      %432 = vmatprep.subr.mxu0 0.0
      %433 = vmatpush1.xpose.msra.mxu0 0.0
      %434 = vmatprep.subr.mxu0 0.0
      %435 = vmatpush1.xpose.msra.mxu0 0.0
      %436 = vmatprep.subr.mxu0 0.0
      %437 = vmatpush1.xpose.msra.mxu0 0.0
      %438 = vmatprep.subr.mxu0 0.0
      %439 = vmatpush1.xpose.msra.mxu0 0.0
      %440 = vmatprep.subr.mxu0 0.0
      %441 = vmatpush1.xpose.msra.mxu0 0.0
      %442 = vmatprep.subr.mxu0 0.0
      %443 = vmatpush1.xpose.msra.mxu0 0.0
      %444 = vmatprep.mubr.f32.mxu0 0.0
      %445 = vmatmul.mubr.f32.gmra.mrb[0].mxu0 %v376
      %v446 = vpop.f32.mrb[0].mxu0
      %v447 = vadd.f32 0.0, %v446
      %v448 = vpop.f32.mrb[0].mxu0
      %449 = vdwg.mxu0
      %v450 = vmul.f32 %v447, 0.35355338
      %v451 = vadd.f32 %v450, %v371
      %v452 = vsel %vm375, %v451, -inf
      %453 = vmax.xlane.f32.xlu0 %v452
      %v454 = vpop.xlane.xlu0 %453
      %v455 = vsub.f32 %v451, %v454
      %v456 = vmul.f32 %v455, 1.442695
      %v457 = vpow.pop %v456
      %v458 = vsel %vm375, %v457, 0.0
      %459 = vadd.xlane.f32.xlu0 %v458
      %v460 = vpop.xlane.xlu0 %459
      %v461 = vrcp.pop %v460
      %v462 = vmul.f32 %v457, %v461
      %463 = vrot.lane.b32.xlu0 %v366, 64
      %v464 = vpop.permute.xlu0 %463
      %v467 = vsel %vm375, %v462, 0
      %469 = vmatprep.subr.mxu0 0.0
      %470 = vmatpush1.msra.mxu0 %v464
      %471 = vmatprep.subr.mxu0 0.0
      %472 = vmatpush1.msra.mxu0 0.0
      %473 = vmatprep.subr.mxu0 0.0
      %474 = vmatpush1.msra.mxu0 0.0
      %475 = vmatprep.subr.mxu0 0.0
      %476 = vmatpush1.msra.mxu0 0.0
      %477 = vmatprep.subr.mxu0 0.0
      %478 = vmatpush1.msra.mxu0 0.0
      %479 = vmatprep.subr.mxu0 0.0
      %480 = vmatpush1.msra.mxu0 0.0
      %481 = vmatprep.subr.mxu0 0.0
      %482 = vmatpush1.msra.mxu0 0.0
      %483 = vmatprep.subr.mxu0 0.0
      %484 = vmatpush1.msra.mxu0 0.0
      %485 = vmatprep.subr.mxu0 0.0
      %486 = vmatpush1.msra.mxu0 0.0
      %487 = vmatprep.subr.mxu0 0.0
      %488 = vmatpush1.msra.mxu0 0.0
      %489 = vmatprep.subr.mxu0 0.0
      %490 = vmatpush1.msra.mxu0 0.0
      %491 = vmatprep.subr.mxu0 0.0
      %492 = vmatpush1.msra.mxu0 0.0
      %493 = vmatprep.subr.mxu0 0.0
      %494 = vmatpush1.msra.mxu0 0.0
      %495 = vmatprep.subr.mxu0 0.0
      %496 = vmatpush1.msra.mxu0 0.0
      %497 = vmatprep.subr.mxu0 0.0
      %498 = vmatpush1.msra.mxu0 0.0
      %499 = vmatprep.subr.mxu0 0.0
      %500 = vmatpush1.msra.mxu0 0.0
      %501 = vmatprep.subr.mxu0 0.0
      %502 = vmatpush1.msra.mxu0 0.0
      %503 = vmatprep.subr.mxu0 0.0
      %504 = vmatpush1.msra.mxu0 0.0
      %505 = vmatprep.subr.mxu0 0.0
      %506 = vmatpush1.msra.mxu0 0.0
      %507 = vmatprep.subr.mxu0 0.0
      %508 = vmatpush1.msra.mxu0 0.0
      %509 = vmatprep.subr.mxu0 0.0
      %510 = vmatpush1.msra.mxu0 0.0
      %511 = vmatprep.subr.mxu0 0.0
      %512 = vmatpush1.msra.mxu0 0.0
      %513 = vmatprep.subr.mxu0 0.0
      %514 = vmatpush1.msra.mxu0 0.0
      %515 = vmatprep.subr.mxu0 0.0
      %516 = vmatpush1.msra.mxu0 0.0
      %517 = vmatprep.subr.mxu0 0.0
      %518 = vmatpush1.msra.mxu0 0.0
      %519 = vmatprep.subr.mxu0 0.0
      %520 = vmatpush1.msra.mxu0 0.0
      %521 = vmatprep.subr.mxu0 0.0
      %522 = vmatpush1.msra.mxu0 0.0
      %523 = vmatprep.subr.mxu0 0.0
      %524 = vmatpush1.msra.mxu0 0.0
      %525 = vmatprep.subr.mxu0 0.0
      %526 = vmatpush1.msra.mxu0 0.0
      %527 = vmatprep.subr.mxu0 0.0
      %528 = vmatpush1.msra.mxu0 0.0
      %529 = vmatprep.subr.mxu0 0.0
      %530 = vmatpush1.msra.mxu0 0.0
      %531 = vmatprep.subr.mxu0 0.0
      %532 = vmatpush1.msra.mxu0 0.0
      %533 = vmatprep.mubr.f32.mxu0 0.0
      %534 = vmatmul.mubr.f32.gmra.mrb[0].mxu0 %v467
      %v535 = vpop.f32.mrb[0].mxu0
      %v536 = vadd.f32 0.0, %v535
      %v537 = vpop.f32.mrb[0].mxu0
      %538 = vdwg.mxu0
      %539 = vrot.lane.b32.xlu0 %v366, 120
      %v540 = vpop.permute.xlu0 %539
      %541 = vrot.lane.b32.xlu0 %v366, 88
      %v542 = vpop.permute.xlu0 %541
      %v543 = vsel %vm375, %v540, 0
      %v545 = vsel %vm375, %v542, 0
      %547 = vmatprep.subr.mxu0 0.0
      %548 = vmatpush1.xpose.msra.mxu0 %v545
      %549 = vmatprep.subr.mxu0 0.0
      %550 = vmatpush1.xpose.msra.mxu0 0.0
      %551 = vmatprep.subr.mxu0 0.0
      %552 = vmatpush1.xpose.msra.mxu0 0.0
      %553 = vmatprep.subr.mxu0 0.0
      %554 = vmatpush1.xpose.msra.mxu0 0.0
      %555 = vmatprep.subr.mxu0 0.0
      %556 = vmatpush1.xpose.msra.mxu0 0.0
      %557 = vmatprep.subr.mxu0 0.0
      %558 = vmatpush1.xpose.msra.mxu0 0.0
      %559 = vmatprep.subr.mxu0 0.0
      %560 = vmatpush1.xpose.msra.mxu0 0.0
      %561 = vmatprep.subr.mxu0 0.0
      %562 = vmatpush1.xpose.msra.mxu0 0.0
      %563 = vmatprep.subr.mxu0 0.0
      %564 = vmatpush1.xpose.msra.mxu0 0.0
      %565 = vmatprep.subr.mxu0 0.0
      %566 = vmatpush1.xpose.msra.mxu0 0.0
      %567 = vmatprep.subr.mxu0 0.0
      %568 = vmatpush1.xpose.msra.mxu0 0.0
      %569 = vmatprep.subr.mxu0 0.0
      %570 = vmatpush1.xpose.msra.mxu0 0.0
      %571 = vmatprep.subr.mxu0 0.0
      %572 = vmatpush1.xpose.msra.mxu0 0.0
      %573 = vmatprep.subr.mxu0 0.0
      %574 = vmatpush1.xpose.msra.mxu0 0.0
      %575 = vmatprep.subr.mxu0 0.0
      %576 = vmatpush1.xpose.msra.mxu0 0.0
      %577 = vmatprep.subr.mxu0 0.0
      %578 = vmatpush1.xpose.msra.mxu0 0.0
      %579 = vmatprep.subr.mxu0 0.0
      %580 = vmatpush1.xpose.msra.mxu0 0.0
      %581 = vmatprep.subr.mxu0 0.0
      %582 = vmatpush1.xpose.msra.mxu0 0.0
      %583 = vmatprep.subr.mxu0 0.0
      %584 = vmatpush1.xpose.msra.mxu0 0.0
      %585 = vmatprep.subr.mxu0 0.0
      %586 = vmatpush1.xpose.msra.mxu0 0.0
      %587 = vmatprep.subr.mxu0 0.0
      %588 = vmatpush1.xpose.msra.mxu0 0.0
      %589 = vmatprep.subr.mxu0 0.0
      %590 = vmatpush1.xpose.msra.mxu0 0.0
      %591 = vmatprep.subr.mxu0 0.0
      %592 = vmatpush1.xpose.msra.mxu0 0.0
      %593 = vmatprep.subr.mxu0 0.0
      %594 = vmatpush1.xpose.msra.mxu0 0.0
      %595 = vmatprep.subr.mxu0 0.0
      %596 = vmatpush1.xpose.msra.mxu0 0.0
      %597 = vmatprep.subr.mxu0 0.0
      %598 = vmatpush1.xpose.msra.mxu0 0.0
      %599 = vmatprep.subr.mxu0 0.0
      %600 = vmatpush1.xpose.msra.mxu0 0.0
      %601 = vmatprep.subr.mxu0 0.0
      %602 = vmatpush1.xpose.msra.mxu0 0.0
      %603 = vmatprep.subr.mxu0 0.0
      %604 = vmatpush1.xpose.msra.mxu0 0.0
      %605 = vmatprep.subr.mxu0 0.0
      %606 = vmatpush1.xpose.msra.mxu0 0.0
      %607 = vmatprep.subr.mxu0 0.0
      %608 = vmatpush1.xpose.msra.mxu0 0.0
      %609 = vmatprep.subr.mxu0 0.0
      %610 = vmatpush1.xpose.msra.mxu0 0.0
      %611 = vmatprep.mubr.f32.mxu0 0.0
      %612 = vmatmul.mubr.f32.gmra.mrb[0].mxu0 %v543
      %v613 = vpop.f32.mrb[0].mxu0
      %v614 = vadd.f32 0.0, %v613
      %v615 = vpop.f32.mrb[0].mxu0
      %616 = vdwg.mxu0
      %v617 = vmul.f32 %v614, 0.35355338
      %v618 = vadd.f32 %v617, %v371
      %v619 = vsel %vm375, %v618, -inf
      %620 = vmax.xlane.f32.xlu0 %v619
      %v621 = vpop.xlane.xlu0 %620
      %v622 = vsub.f32 %v618, %v621
      %v623 = vmul.f32 %v622, 1.442695
      %v624 = vpow.pop %v623
      %v625 = vsel %vm375, %v624, 0.0
      %626 = vadd.xlane.f32.xlu0 %v625
      %v627 = vpop.xlane.xlu0 %626
      %v628 = vrcp.pop %v627
      %v629 = vmul.f32 %v624, %v628
      %630 = vrot.lane.b32.xlu0 %v366, 56
      %v631 = vpop.permute.xlu0 %630
      %v634 = vsel %vm375, %v629, 0
      %636 = vmatprep.subr.mxu0 0.0
      %637 = vmatpush1.msra.mxu0 %v631
      %638 = vmatprep.subr.mxu0 0.0
      %639 = vmatpush1.msra.mxu0 0.0
      %640 = vmatprep.subr.mxu0 0.0
      %641 = vmatpush1.msra.mxu0 0.0
      %642 = vmatprep.subr.mxu0 0.0
      %643 = vmatpush1.msra.mxu0 0.0
      %644 = vmatprep.subr.mxu0 0.0
      %645 = vmatpush1.msra.mxu0 0.0
      %646 = vmatprep.subr.mxu0 0.0
      %647 = vmatpush1.msra.mxu0 0.0
      %648 = vmatprep.subr.mxu0 0.0
      %649 = vmatpush1.msra.mxu0 0.0
      %650 = vmatprep.subr.mxu0 0.0
      %651 = vmatpush1.msra.mxu0 0.0
      %652 = vmatprep.subr.mxu0 0.0
      %653 = vmatpush1.msra.mxu0 0.0
      %654 = vmatprep.subr.mxu0 0.0
      %655 = vmatpush1.msra.mxu0 0.0
      %656 = vmatprep.subr.mxu0 0.0
      %657 = vmatpush1.msra.mxu0 0.0
      %658 = vmatprep.subr.mxu0 0.0
      %659 = vmatpush1.msra.mxu0 0.0
      %660 = vmatprep.subr.mxu0 0.0
      %661 = vmatpush1.msra.mxu0 0.0
      %662 = vmatprep.subr.mxu0 0.0
      %663 = vmatpush1.msra.mxu0 0.0
      %664 = vmatprep.subr.mxu0 0.0
      %665 = vmatpush1.msra.mxu0 0.0
      %666 = vmatprep.subr.mxu0 0.0
      %667 = vmatpush1.msra.mxu0 0.0
      %668 = vmatprep.subr.mxu0 0.0
      %669 = vmatpush1.msra.mxu0 0.0
      %670 = vmatprep.subr.mxu0 0.0
      %671 = vmatpush1.msra.mxu0 0.0
      %672 = vmatprep.subr.mxu0 0.0
      %673 = vmatpush1.msra.mxu0 0.0
      %674 = vmatprep.subr.mxu0 0.0
      %675 = vmatpush1.msra.mxu0 0.0
      %676 = vmatprep.subr.mxu0 0.0
      %677 = vmatpush1.msra.mxu0 0.0
      %678 = vmatprep.subr.mxu0 0.0
      %679 = vmatpush1.msra.mxu0 0.0
      %680 = vmatprep.subr.mxu0 0.0
      %681 = vmatpush1.msra.mxu0 0.0
      %682 = vmatprep.subr.mxu0 0.0
      %683 = vmatpush1.msra.mxu0 0.0
      %684 = vmatprep.subr.mxu0 0.0
      %685 = vmatpush1.msra.mxu0 0.0
      %686 = vmatprep.subr.mxu0 0.0
      %687 = vmatpush1.msra.mxu0 0.0
      %688 = vmatprep.subr.mxu0 0.0
      %689 = vmatpush1.msra.mxu0 0.0
      %690 = vmatprep.subr.mxu0 0.0
      %691 = vmatpush1.msra.mxu0 0.0
      %692 = vmatprep.subr.mxu0 0.0
      %693 = vmatpush1.msra.mxu0 0.0
      %694 = vmatprep.subr.mxu0 0.0
      %695 = vmatpush1.msra.mxu0 0.0
      %696 = vmatprep.subr.mxu0 0.0
      %697 = vmatpush1.msra.mxu0 0.0
      %698 = vmatprep.subr.mxu0 0.0
      %699 = vmatpush1.msra.mxu0 0.0
      %700 = vmatprep.mubr.f32.mxu0 0.0
      %701 = vmatmul.mubr.f32.gmra.mrb[0].mxu0 %v634
      %v702 = vpop.f32.mrb[0].mxu0
      %v703 = vadd.f32 0.0, %v702
      %v704 = vpop.f32.mrb[0].mxu0
      %705 = vdwg.mxu0
      %706 = vrot.lane.b32.xlu0 %v366, 112
      %v707 = vpop.permute.xlu0 %706
      %708 = vrot.lane.b32.xlu0 %v366, 80
      %v709 = vpop.permute.xlu0 %708
      %v710 = vsel %vm375, %v707, 0
      %v712 = vsel %vm375, %v709, 0
      %714 = vmatprep.subr.mxu0 0.0
      %715 = vmatpush1.xpose.msra.mxu0 %v712
      %716 = vmatprep.subr.mxu0 0.0
      %717 = vmatpush1.xpose.msra.mxu0 0.0
      %718 = vmatprep.subr.mxu0 0.0
      %719 = vmatpush1.xpose.msra.mxu0 0.0
      %720 = vmatprep.subr.mxu0 0.0
      %721 = vmatpush1.xpose.msra.mxu0 0.0
      %722 = vmatprep.subr.mxu0 0.0
      %723 = vmatpush1.xpose.msra.mxu0 0.0
      %724 = vmatprep.subr.mxu0 0.0
      %725 = vmatpush1.xpose.msra.mxu0 0.0
      %726 = vmatprep.subr.mxu0 0.0
      %727 = vmatpush1.xpose.msra.mxu0 0.0
      %728 = vmatprep.subr.mxu0 0.0
      %729 = vmatpush1.xpose.msra.mxu0 0.0
      %730 = vmatprep.subr.mxu0 0.0
      %731 = vmatpush1.xpose.msra.mxu0 0.0
      %732 = vmatprep.subr.mxu0 0.0
      %733 = vmatpush1.xpose.msra.mxu0 0.0
      %734 = vmatprep.subr.mxu0 0.0
      %735 = vmatpush1.xpose.msra.mxu0 0.0
      %736 = vmatprep.subr.mxu0 0.0
      %737 = vmatpush1.xpose.msra.mxu0 0.0
      %738 = vmatprep.subr.mxu0 0.0
      %739 = vmatpush1.xpose.msra.mxu0 0.0
      %740 = vmatprep.subr.mxu0 0.0
      %741 = vmatpush1.xpose.msra.mxu0 0.0
      %742 = vmatprep.subr.mxu0 0.0
      %743 = vmatpush1.xpose.msra.mxu0 0.0
      %744 = vmatprep.subr.mxu0 0.0
      %745 = vmatpush1.xpose.msra.mxu0 0.0
      %746 = vmatprep.subr.mxu0 0.0
      %747 = vmatpush1.xpose.msra.mxu0 0.0
      %748 = vmatprep.subr.mxu0 0.0
      %749 = vmatpush1.xpose.msra.mxu0 0.0
      %750 = vmatprep.subr.mxu0 0.0
      %751 = vmatpush1.xpose.msra.mxu0 0.0
      %752 = vmatprep.subr.mxu0 0.0
      %753 = vmatpush1.xpose.msra.mxu0 0.0
      %754 = vmatprep.subr.mxu0 0.0
      %755 = vmatpush1.xpose.msra.mxu0 0.0
      %756 = vmatprep.subr.mxu0 0.0
      %757 = vmatpush1.xpose.msra.mxu0 0.0
      %758 = vmatprep.subr.mxu0 0.0
      %759 = vmatpush1.xpose.msra.mxu0 0.0
      %760 = vmatprep.subr.mxu0 0.0
      %761 = vmatpush1.xpose.msra.mxu0 0.0
      %762 = vmatprep.subr.mxu0 0.0
      %763 = vmatpush1.xpose.msra.mxu0 0.0
      %764 = vmatprep.subr.mxu0 0.0
      %765 = vmatpush1.xpose.msra.mxu0 0.0
      %766 = vmatprep.subr.mxu0 0.0
      %767 = vmatpush1.xpose.msra.mxu0 0.0
      %768 = vmatprep.subr.mxu0 0.0
      %769 = vmatpush1.xpose.msra.mxu0 0.0
      %770 = vmatprep.subr.mxu0 0.0
      %771 = vmatpush1.xpose.msra.mxu0 0.0
      %772 = vmatprep.subr.mxu0 0.0
      %773 = vmatpush1.xpose.msra.mxu0 0.0
      %774 = vmatprep.subr.mxu0 0.0
      %775 = vmatpush1.xpose.msra.mxu0 0.0
      %776 = vmatprep.subr.mxu0 0.0
      %777 = vmatpush1.xpose.msra.mxu0 0.0
      %778 = vmatprep.mubr.f32.mxu0 0.0
      %779 = vmatmul.mubr.f32.gmra.mrb[0].mxu0 %v710
      %v780 = vpop.f32.mrb[0].mxu0
      %v781 = vadd.f32 0.0, %v780
      %v782 = vpop.f32.mrb[0].mxu0
      %783 = vdwg.mxu0
      %v784 = vmul.f32 %v781, 0.35355338
      %v785 = vadd.f32 %v784, %v371
      %v786 = vsel %vm375, %v785, -inf
      %787 = vmax.xlane.f32.xlu0 %v786
      %v788 = vpop.xlane.xlu0 %787
      %v789 = vsub.f32 %v785, %v788
      %v790 = vmul.f32 %v789, 1.442695
      %v791 = vpow.pop %v790
      %v792 = vsel %vm375, %v791, 0.0
      %793 = vadd.xlane.f32.xlu0 %v792
      %v794 = vpop.xlane.xlu0 %793
      %v795 = vrcp.pop %v794
      %v796 = vmul.f32 %v791, %v795
      %797 = vrot.lane.b32.xlu0 %v366, 48
      %v798 = vpop.permute.xlu0 %797
      %v801 = vsel %vm375, %v796, 0
      %803 = vmatprep.subr.mxu0 0.0
      %804 = vmatpush1.msra.mxu0 %v798
      %805 = vmatprep.subr.mxu0 0.0
      %806 = vmatpush1.msra.mxu0 0.0
      %807 = vmatprep.subr.mxu0 0.0
      %808 = vmatpush1.msra.mxu0 0.0
      %809 = vmatprep.subr.mxu0 0.0
      %810 = vmatpush1.msra.mxu0 0.0
      %811 = vmatprep.subr.mxu0 0.0
      %812 = vmatpush1.msra.mxu0 0.0
      %813 = vmatprep.subr.mxu0 0.0
      %814 = vmatpush1.msra.mxu0 0.0
      %815 = vmatprep.subr.mxu0 0.0
      %816 = vmatpush1.msra.mxu0 0.0
      %817 = vmatprep.subr.mxu0 0.0
      %818 = vmatpush1.msra.mxu0 0.0
      %819 = vmatprep.subr.mxu0 0.0
      %820 = vmatpush1.msra.mxu0 0.0
      %821 = vmatprep.subr.mxu0 0.0
      %822 = vmatpush1.msra.mxu0 0.0
      %823 = vmatprep.subr.mxu0 0.0
      %824 = vmatpush1.msra.mxu0 0.0
      %825 = vmatprep.subr.mxu0 0.0
      %826 = vmatpush1.msra.mxu0 0.0
      %827 = vmatprep.subr.mxu0 0.0
      %828 = vmatpush1.msra.mxu0 0.0
      %829 = vmatprep.subr.mxu0 0.0
      %830 = vmatpush1.msra.mxu0 0.0
      %831 = vmatprep.subr.mxu0 0.0
      %832 = vmatpush1.msra.mxu0 0.0
      %833 = vmatprep.subr.mxu0 0.0
      %834 = vmatpush1.msra.mxu0 0.0
      %835 = vmatprep.subr.mxu0 0.0
      %836 = vmatpush1.msra.mxu0 0.0
      %837 = vmatprep.subr.mxu0 0.0
      %838 = vmatpush1.msra.mxu0 0.0
      %839 = vmatprep.subr.mxu0 0.0
      %840 = vmatpush1.msra.mxu0 0.0
      %841 = vmatprep.subr.mxu0 0.0
      %842 = vmatpush1.msra.mxu0 0.0
      %843 = vmatprep.subr.mxu0 0.0
      %844 = vmatpush1.msra.mxu0 0.0
      %845 = vmatprep.subr.mxu0 0.0
      %846 = vmatpush1.msra.mxu0 0.0
      %847 = vmatprep.subr.mxu0 0.0
      %848 = vmatpush1.msra.mxu0 0.0
      %849 = vmatprep.subr.mxu0 0.0
      %850 = vmatpush1.msra.mxu0 0.0
      %851 = vmatprep.subr.mxu0 0.0
      %852 = vmatpush1.msra.mxu0 0.0
      %853 = vmatprep.subr.mxu0 0.0
      %854 = vmatpush1.msra.mxu0 0.0
      %855 = vmatprep.subr.mxu0 0.0
      %856 = vmatpush1.msra.mxu0 0.0
      %857 = vmatprep.subr.mxu0 0.0
      %858 = vmatpush1.msra.mxu0 0.0
      %859 = vmatprep.subr.mxu0 0.0
      %860 = vmatpush1.msra.mxu0 0.0
      %861 = vmatprep.subr.mxu0 0.0
      %862 = vmatpush1.msra.mxu0 0.0
      %863 = vmatprep.subr.mxu0 0.0
      %864 = vmatpush1.msra.mxu0 0.0
      %865 = vmatprep.subr.mxu0 0.0
      %866 = vmatpush1.msra.mxu0 0.0
      %867 = vmatprep.mubr.f32.mxu0 0.0
      %868 = vmatmul.mubr.f32.gmra.mrb[0].mxu0 %v801
      %v869 = vpop.f32.mrb[0].mxu0
      %v870 = vadd.f32 0.0, %v869
      %v871 = vpop.f32.mrb[0].mxu0
      %872 = vdwg.mxu0
      %873 = vrot.lane.b32.xlu0 %v366, 104
      %v874 = vpop.permute.xlu0 %873
      %875 = vrot.lane.b32.xlu0 %v366, 72
      %v876 = vpop.permute.xlu0 %875
      %v877 = vsel %vm375, %v874, 0
      %v879 = vsel %vm375, %v876, 0
      %881 = vmatprep.subr.mxu0 0.0
      %882 = vmatpush1.xpose.msra.mxu0 %v879
      %883 = vmatprep.subr.mxu0 0.0
      %884 = vmatpush1.xpose.msra.mxu0 0.0
      %885 = vmatprep.subr.mxu0 0.0
      %886 = vmatpush1.xpose.msra.mxu0 0.0
      %887 = vmatprep.subr.mxu0 0.0
      %888 = vmatpush1.xpose.msra.mxu0 0.0
      %889 = vmatprep.subr.mxu0 0.0
      %890 = vmatpush1.xpose.msra.mxu0 0.0
      %891 = vmatprep.subr.mxu0 0.0
      %892 = vmatpush1.xpose.msra.mxu0 0.0
      %893 = vmatprep.subr.mxu0 0.0
      %894 = vmatpush1.xpose.msra.mxu0 0.0
      %895 = vmatprep.subr.mxu0 0.0
      %896 = vmatpush1.xpose.msra.mxu0 0.0
      %897 = vmatprep.subr.mxu0 0.0
      %898 = vmatpush1.xpose.msra.mxu0 0.0
      %899 = vmatprep.subr.mxu0 0.0
      %900 = vmatpush1.xpose.msra.mxu0 0.0
      %901 = vmatprep.subr.mxu0 0.0
      %902 = vmatpush1.xpose.msra.mxu0 0.0
      %903 = vmatprep.subr.mxu0 0.0
      %904 = vmatpush1.xpose.msra.mxu0 0.0
      %905 = vmatprep.subr.mxu0 0.0
      %906 = vmatpush1.xpose.msra.mxu0 0.0
      %907 = vmatprep.subr.mxu0 0.0
      %908 = vmatpush1.xpose.msra.mxu0 0.0
      %909 = vmatprep.subr.mxu0 0.0
      %910 = vmatpush1.xpose.msra.mxu0 0.0
      %911 = vmatprep.subr.mxu0 0.0
      %912 = vmatpush1.xpose.msra.mxu0 0.0
      %913 = vmatprep.subr.mxu0 0.0
      %914 = vmatpush1.xpose.msra.mxu0 0.0
      %915 = vmatprep.subr.mxu0 0.0
      %916 = vmatpush1.xpose.msra.mxu0 0.0
      %917 = vmatprep.subr.mxu0 0.0
      %918 = vmatpush1.xpose.msra.mxu0 0.0
      %919 = vmatprep.subr.mxu0 0.0
      %920 = vmatpush1.xpose.msra.mxu0 0.0
      %921 = vmatprep.subr.mxu0 0.0
      %922 = vmatpush1.xpose.msra.mxu0 0.0
      %923 = vmatprep.subr.mxu0 0.0
      %924 = vmatpush1.xpose.msra.mxu0 0.0
      %925 = vmatprep.subr.mxu0 0.0
      %926 = vmatpush1.xpose.msra.mxu0 0.0
      %927 = vmatprep.subr.mxu0 0.0
      %928 = vmatpush1.xpose.msra.mxu0 0.0
      %929 = vmatprep.subr.mxu0 0.0
      %930 = vmatpush1.xpose.msra.mxu0 0.0
      %931 = vmatprep.subr.mxu0 0.0
      %932 = vmatpush1.xpose.msra.mxu0 0.0
      %933 = vmatprep.subr.mxu0 0.0
      %934 = vmatpush1.xpose.msra.mxu0 0.0
      %935 = vmatprep.subr.mxu0 0.0
      %936 = vmatpush1.xpose.msra.mxu0 0.0
      %937 = vmatprep.subr.mxu0 0.0
      %938 = vmatpush1.xpose.msra.mxu0 0.0
      %939 = vmatprep.subr.mxu0 0.0
      %940 = vmatpush1.xpose.msra.mxu0 0.0
      %941 = vmatprep.subr.mxu0 0.0
      %942 = vmatpush1.xpose.msra.mxu0 0.0
      %943 = vmatprep.subr.mxu0 0.0
      %944 = vmatpush1.xpose.msra.mxu0 0.0
      %945 = vmatprep.mubr.f32.mxu0 0.0
      %946 = vmatmul.mubr.f32.gmra.mrb[0].mxu0 %v877
      %v947 = vpop.f32.mrb[0].mxu0
      %v948 = vadd.f32 0.0, %v947
      %v949 = vpop.f32.mrb[0].mxu0
      %950 = vdwg.mxu0
      %v951 = vmul.f32 %v948, 0.35355338
      %v952 = vadd.f32 %v951, %v371
      %v953 = vsel %vm375, %v952, -inf
      %954 = vmax.xlane.f32.xlu0 %v953
      %v955 = vpop.xlane.xlu0 %954
      %v956 = vsub.f32 %v952, %v955
      %v957 = vmul.f32 %v956, 1.442695
      %v958 = vpow.pop %v957
      %v959 = vsel %vm375, %v958, 0.0
      %960 = vadd.xlane.f32.xlu0 %v959
      %v961 = vpop.xlane.xlu0 %960
      %v962 = vrcp.pop %v961
      %v963 = vmul.f32 %v958, %v962
      %964 = vrot.lane.b32.xlu0 %v366, 40
      %v965 = vpop.permute.xlu0 %964
      %v968 = vsel %vm375, %v963, 0
      %970 = vmatprep.subr.mxu0 0.0
      %971 = vmatpush1.msra.mxu0 %v965
      %972 = vmatprep.subr.mxu0 0.0
      %973 = vmatpush1.msra.mxu0 0.0
      %974 = vmatprep.subr.mxu0 0.0
      %975 = vmatpush1.msra.mxu0 0.0
      %976 = vmatprep.subr.mxu0 0.0
      %977 = vmatpush1.msra.mxu0 0.0
      %978 = vmatprep.subr.mxu0 0.0
      %979 = vmatpush1.msra.mxu0 0.0
      %980 = vmatprep.subr.mxu0 0.0
      %981 = vmatpush1.msra.mxu0 0.0
      %982 = vmatprep.subr.mxu0 0.0
      %983 = vmatpush1.msra.mxu0 0.0
      %984 = vmatprep.subr.mxu0 0.0
      %985 = vmatpush1.msra.mxu0 0.0
      %986 = vmatprep.subr.mxu0 0.0
      %987 = vmatpush1.msra.mxu0 0.0
      %988 = vmatprep.subr.mxu0 0.0
      %989 = vmatpush1.msra.mxu0 0.0
      %990 = vmatprep.subr.mxu0 0.0
      %991 = vmatpush1.msra.mxu0 0.0
      %992 = vmatprep.subr.mxu0 0.0
      %993 = vmatpush1.msra.mxu0 0.0
      %994 = vmatprep.subr.mxu0 0.0
      %995 = vmatpush1.msra.mxu0 0.0
      %996 = vmatprep.subr.mxu0 0.0
      %997 = vmatpush1.msra.mxu0 0.0
      %998 = vmatprep.subr.mxu0 0.0
      %999 = vmatpush1.msra.mxu0 0.0
      %1000 = vmatprep.subr.mxu0 0.0
      %1001 = vmatpush1.msra.mxu0 0.0
      %1002 = vmatprep.subr.mxu0 0.0
      %1003 = vmatpush1.msra.mxu0 0.0
      %1004 = vmatprep.subr.mxu0 0.0
      %1005 = vmatpush1.msra.mxu0 0.0
      %1006 = vmatprep.subr.mxu0 0.0
      %1007 = vmatpush1.msra.mxu0 0.0
      %1008 = vmatprep.subr.mxu0 0.0
      %1009 = vmatpush1.msra.mxu0 0.0
      %1010 = vmatprep.subr.mxu0 0.0
      %1011 = vmatpush1.msra.mxu0 0.0
      %1012 = vmatprep.subr.mxu0 0.0
      %1013 = vmatpush1.msra.mxu0 0.0
      %1014 = vmatprep.subr.mxu0 0.0
      %1015 = vmatpush1.msra.mxu0 0.0
      %1016 = vmatprep.subr.mxu0 0.0
      %1017 = vmatpush1.msra.mxu0 0.0
      %1018 = vmatprep.subr.mxu0 0.0
      %1019 = vmatpush1.msra.mxu0 0.0
      %1020 = vmatprep.subr.mxu0 0.0
      %1021 = vmatpush1.msra.mxu0 0.0
      %1022 = vmatprep.subr.mxu0 0.0
      %1023 = vmatpush1.msra.mxu0 0.0
      %1024 = vmatprep.subr.mxu0 0.0
      %1025 = vmatpush1.msra.mxu0 0.0
      %1026 = vmatprep.subr.mxu0 0.0
      %1027 = vmatpush1.msra.mxu0 0.0
      %1028 = vmatprep.subr.mxu0 0.0
      %1029 = vmatpush1.msra.mxu0 0.0
      %1030 = vmatprep.subr.mxu0 0.0
      %1031 = vmatpush1.msra.mxu0 0.0
      %1032 = vmatprep.subr.mxu0 0.0
      %1033 = vmatpush1.msra.mxu0 0.0
      %1034 = vmatprep.mubr.f32.mxu0 0.0
      %1035 = vmatmul.mubr.f32.gmra.mrb[0].mxu0 %v968
      %v1036 = vpop.f32.mrb[0].mxu0
      %v1037 = vadd.f32 0.0, %v1036
      %v1038 = vpop.f32.mrb[0].mxu0
      %1039 = vdwg.mxu0
      %1041 = vrot.lane.b32.xlu0 %v703, 8
      %v1042 = vpop.permute.xlu0 %1041
      %1045 = vrot.lane.b32.xlu0 %v870, 16
      %v1046 = vpop.permute.xlu0 %1045
      %1049 = vrot.lane.b32.xlu0 %v1037, 24
      %v1050 = vpop.permute.xlu0 %1049
      %v1052 = vsel %vm375, %v536, %v1042
      %vm1053 = vcmask 130048
      %v1054 = vsel %vm1053, %v1052, %v1046
      %vm1055 = vcmask 195584
      %v1056 = vsel %vm1055, %v1054, %v1050
      %v1057 = vpack.c.bf16 %v1056, %v1056
      %v1058 = vld [vmem:[%s4] sm:$0xf]
      %v1059 = vld [vmem:[%s4 + $0x4] sm:$0xf]
      %v1060 = vld [vmem:[%s4 + $0x8] sm:$0xf]
      %v1061 = vld [vmem:[%s4 + $0xc] sm:$0xf]
      %v1062 = vld [vmem:[%s5] sm:$0x1]
      %v1064 = vlaneseq
      %v1065 = vshrl.u32 %v1064, 7
      %v1066 = vsub.s32 0, %v1065
      %v1067 = vrot.slane %v1062, %v1066
      %v1073 = vunpack.c.l.b16 %v1058
      %v1074 = vunpack.c.l.b16 %v1059
      %v1075 = vunpack.c.l.b16 %v1060
      %v1076 = vunpack.c.l.b16 %v1061
      %v1077 = vpack.c.b16 %v1074, %v1073
      %v1078 = vpack.c.b16 %v1076, %v1075
      %v1082 = vsel %vm327, %v1057, 0
      %1084 = vmatprep.subr.bf16.mxu0 0
      %1085 = vmatpush1.bf16.msra.mxu0 %v1077
      %1086 = vmatprep.subr.bf16.mxu0 0
      %1087 = vmatpush1.bf16.msra.mxu0 %v1078
      %1088 = vmatprep.subr.bf16.mxu0 0
      %1089 = vmatpush1.bf16.msra.mxu0 0
      %1090 = vmatprep.subr.bf16.mxu0 0
      %1091 = vmatpush1.bf16.msra.mxu0 0
      %1092 = vmatprep.subr.bf16.mxu0 0
      %1093 = vmatpush1.bf16.msra.mxu0 0
      %1094 = vmatprep.subr.bf16.mxu0 0
      %1095 = vmatpush1.bf16.msra.mxu0 0
      %1096 = vmatprep.subr.bf16.mxu0 0
      %1097 = vmatpush1.bf16.msra.mxu0 0
      %1098 = vmatprep.subr.bf16.mxu0 0
      %1099 = vmatpush1.bf16.msra.mxu0 0
      %1100 = vmatprep.subr.bf16.mxu0 0
      %1101 = vmatpush1.bf16.msra.mxu0 0
      %1102 = vmatprep.subr.bf16.mxu0 0
      %1103 = vmatpush1.bf16.msra.mxu0 0
      %1104 = vmatprep.subr.bf16.mxu0 0
      %1105 = vmatpush1.bf16.msra.mxu0 0
      %1106 = vmatprep.subr.bf16.mxu0 0
      %1107 = vmatpush1.bf16.msra.mxu0 0
      %1108 = vmatprep.subr.bf16.mxu0 0
      %1109 = vmatpush1.bf16.msra.mxu0 0
      %1110 = vmatprep.subr.bf16.mxu0 0
      %1111 = vmatpush1.bf16.msra.mxu0 0
      %1112 = vmatprep.subr.bf16.mxu0 0
      %1113 = vmatpush1.bf16.msra.mxu0 0
      %1114 = vmatprep.subr.bf16.mxu0 0
      %1115 = vmatpush1.bf16.msra.mxu0 0
      %1116 = vmatprep.mubr.bf16.mxu0 0
      %1117 = vmatmul.mubr.bf16.gmra.mrb[0].mxu0 %v1082
      %v1118 = vpop.f32.mrb[0].mxu0
      %v1119 = vadd.f32 %v1067, %v1118
      %v1120 = vpop.f32.mrb[0].mxu0
      %v1121 = vpop.f32.mrb[0].mxu0
      %v1122 = vpop.f32.mrb[0].mxu0
      %1123 = vdwg.mxu0
      %v1124 = vadd.f32 %v302, %v1119
      %v1125 = vld [vmem:[%s6] sm:$0x1]
      %v1126 = vld [vmem:[%s7] sm:$0x1]
      %v1127 = vsel %vm327, %v1124, 0.0
      %1128 = vadd.xlane.f32.xlu0 %v1127
      %v1129 = vpop.xlane.xlu0 %1128
      %v1130 = vrcp.pop 32.0
      %v1131 = vmul.f32 %v1129, %v1130
      %v1132 = vsub.f32 %v1124, %v1131
      %v1133 = vmul.f32 %v1132, %v1132
      %v1134 = vsel %vm327, %v1133, 0.0
      %1135 = vadd.xlane.f32.xlu0 %v1134
      %v1136 = vpop.xlane.xlu0 %1135
      %v1137 = vmul.f32 %v1136, %v1130
      %v1138 = vadd.f32 %v1137, 1e-05
      %v1139 = vrsqrt.pop %v1138
      %v1140 = vmul.f32 %v1132, %v1139
      %v1142 = vlaneseq
      %v1143 = vshrl.u32 %v1142, 7
      %v1144 = vsub.s32 0, %v1143
      %v1145 = vrot.slane %v1125, %v1144
      %v1147 = vmul.f32 %v1140, %v1145
      %v1149 = vlaneseq
      %v1150 = vshrl.u32 %v1149, 7
      %v1151 = vsub.s32 0, %v1150
      %v1152 = vrot.slane %v1126, %v1151
      %v1154 = vadd.f32 %v1147, %v1152
      %1155 = vst.msk [vmem:[%s300] sm:$0xff] %vm327, %v1154
      %p1156 = scmp.lt.s32.totalorder %s19, 1
      %s1157 = scalar_select %p1156, %s19, 1
      %s1158 = smul.addr %s1157, 8
      %s1159 = scalar_lea.vmem %s8, %s1158
      // Predicated region
      $region53: #{export_conette_forward.7} parent=51 // pred_check
        %p1160 = pneg %p210
      $region54: #{export_conette_forward.7} parent=51 // pred_check_branch
        %1162 = sbr.rel (%p1160) target = $region56
      $region55: #{export_conette_forward.7} parent=51 // pred_region
        _
      $region56: #{export_conette_forward.7} parent=51 // pred_fallthru
        _
    $region52: #{export_conette_forward.7} parent=5 // pred_fallthru
      _
    %p1163 = scmp.le.s32.totalorder 2, %s14
    // Predicated region
    $region57: #{export_conette_forward.7} parent=5 // pred_check
      %p1164 = pneg %p1163
    $region58: #{export_conette_forward.7} parent=5 // pred_check_branch
      %1166 = sbr.rel (%p1164) target = $region60
    $region59: #{export_conette_forward.7} parent=5 // pred_region
      %s1167 = ssub.s32 %s14, 2
      // Predicated region
      $region61: #{export_conette_forward.7} parent=59 // pred_check
        %p1168 = pneg %p216
      $region62: #{export_conette_forward.7} parent=59 // pred_check_branch
        %1170 = sbr.rel (%p1168) target = $region64
      $region63: #{export_conette_forward.7} parent=59 // pred_region
        %p1171 = scmp.lt.s32.totalorder %s20, 1
        %s1172 = scalar_select %p1171, %s20, 1
        %s1173 = smul.addr %s1172, 8
        %s1174 = scalar_lea.vmem %s8, %s1173
      $region64: #{export_conette_forward.7} parent=59 // pred_fallthru
        _
    $region60: #{export_conette_forward.7} parent=5 // pred_fallthru
      _
  $region6: #{export_conette_forward.7} parent=0 // loop_footer
    %s18 = sadd.s32 1, %s14
  $region7: #{export_conette_forward.7} parent=0 // loop_footer_branch
    %13 = sbr.rel target = $region3
  $region8: #{export_conette_forward.7} parent=0 // loop_exit
    _

</llo_original>
